<compile_context>
chip_gen: v7x
topology: tpu7x:2x2x1
jax: 0.10.0
libtpu: 0.0.40
codegen_flags: <defaults>
</compile_context>

<pallas_src>
import functools

import jax
import jax.numpy as jnp
from jax.experimental import pallas as pl
from jax.experimental.pallas import tpu as pltpu

MM_DIM = 128      # multimodal_dim
NUM_CLASS = 2     # nb_class
FC_INPUT = 512    # resnet18 feature dim
REP_DIM = 768     # BERT/RoBERTa hidden dim
CONV1_OUT = 64
VOCAB = 100
KH = KW = 7
STRIDE = 2
PAD = 3

K_RAW = 3 * KH * KW          # 147 im2col contraction dim
K_PAD = 256                  # zero-padded to a clean lane multiple (bf16 tile aligned)
C1_PAD = 128                 # conv1 out channels padded 64 -> 128 (lane aligned)
MAX_SPATIAL_TILE = 2048      # ~9 MiB/step worst case -> safe within v7x 64 MiB VMEM


# ----------------------------------------------------------------------------
# Kernel 1: fused conv stem (im2col matmul) + pointwise + global average pool
# ----------------------------------------------------------------------------
def _conv_stem_kernel(p_ref, w1_ref, wp_ref, o_ref, *, inv_hw):
    s = pl.program_id(1)

    @pl.when(s == 0)
    def _():
        o_ref[...] = jnp.zeros_like(o_ref)

    # conv1 (as matmul over im2col patches) + ReLU; bf16 operands, f32 accumulate.
    c1 = jnp.dot(p_ref[0], w1_ref[...], preferred_element_type=jnp.float32)
    c1 = jnp.maximum(c1, 0.0).astype(jnp.bfloat16)
    # pointwise stand-in for layer1..4 + ReLU; 512-wide (lane-dense) result.
    f = jnp.dot(c1, wp_ref[...], preferred_element_type=jnp.float32)
    f = jnp.maximum(f, 0.0)
    # Fold AdaptiveAvgPool2d((1,1)) in here: accumulate the spatial mean directly
    # in the resident output block (same block index across the spatial grid axis).
    # Tail-padded spatial rows are all-zero patches -> contribute exactly 0.
    o_ref[0] = o_ref[0] + jnp.sum(f, axis=0, keepdims=True) * inv_hw


def conv_stem_gap(patches, w1t_bf16, wpt_bf16):
    """patches: (N, HW, K_RAW) bf16.  Returns GAP'd features (N, FC_INPUT) f32."""
    N, HW, K = patches.shape
    # Spatial tile: multiple of 8, capped; pad the tail with zeros instead of falling
    # back to one huge full-HW block (keeps per-step VMEM bounded on v7x).
    t_hw = min(MAX_SPATIAL_TILE, ((HW + 7) // 8) * 8)
    hw_pad = pl.cdiv(HW, t_hw) * t_hw
    if hw_pad != HW or K != K_PAD:
        patches = jnp.pad(patches, ((0, 0), (0, hw_pad - HW), (0, K_PAD - K)))
    n_spatial = hw_pad // t_hw

    if n_spatial >= 3:
        # Deeper input buffering hides patch-DMA jitter (mainly helps v5e bandwidth).
        p_spec = pl.BlockSpec((1, t_hw, K_PAD), lambda m, s: (m, s, 0),
                              pipeline_mode=pl.Buffered(3))
    else:
        p_spec = pl.BlockSpec((1, t_hw, K_PAD), lambda m, s: (m, s, 0))

    cost = pl.CostEstimate(
        flops=2 * N * hw_pad * (K_PAD * C1_PAD + C1_PAD * FC_INPUT),
        transcendentals=0,
        bytes_accessed=(N * hw_pad * K_PAD * 2                       # bf16 patches
                        + (K_PAD * C1_PAD + C1_PAD * FC_INPUT) * 2   # bf16 weights
                        + N * FC_INPUT * 4))                         # f32 output

    out = pl.pallas_call(
        functools.partial(_conv_stem_kernel, inv_hw=1.0 / HW),
        grid=(N, n_spatial),
        in_specs=[
            p_spec,
            # Constant block index -> Pallas does not re-issue the weight DMA per step.
            pl.BlockSpec((K_PAD, C1_PAD), lambda m, s: (0, 0)),
            pl.BlockSpec((C1_PAD, FC_INPUT), lambda m, s: (0, 0)),
        ],
        out_specs=pl.BlockSpec((1, 1, FC_INPUT), lambda m, s: (m, 0, 0)),
        out_shape=jax.ShapeDtypeStruct((N, 1, FC_INPUT), jnp.float32),
        compiler_params=pltpu.CompilerParams(
            dimension_semantics=("parallel", "arbitrary"),
            vmem_limit_bytes=32 * 1024 * 1024),
        cost_estimate=cost,
    )(patches, w1t_bf16, wpt_bf16)
    return out.reshape(N, FC_INPUT)


# ----------------------------------------------------------------------------
# Kernel 2: fused BERT pooler head + batched RSA_cs + Classifier ('proj') head
# ----------------------------------------------------------------------------
def _text_rsa_cls_kernel(emb_ref, h_ref, zsa_ref,
                         pool_wt_ref, pool_b_ref,
                         wrep_t_ref, wslice_t_ref,
                         pimg_t_ref, prep_t_ref,
                         sa_t_ref, sa_b_ref,
                         cls_t_ref, cls_b_ref,
                         out_ref, *, batch, n_slice, mm_dim, nc, slab):
    f32 = jnp.float32
    bf16 = jnp.bfloat16
    bd = batch * n_slice

    # --- RepEncoder pooler head: xcls = tanh(cls_token @ W_pool^T + b), bf16 MXU ---
    xcls = jnp.tanh(jnp.dot(emb_ref[...].astype(bf16), pool_wt_ref[...],
                            preferred_element_type=f32) + pool_b_ref[...])
    xcls_b = xcls.astype(bf16)

    # --- DIAMIT RSA_cs projections, batched (M = B and B*D, never M = 1) ---
    h = h_ref[...]
    xr = jnp.dot(xcls_b, wrep_t_ref[...], preferred_element_type=f32)          # (B, mm)
    xp = jnp.dot(h.astype(bf16), wslice_t_ref[...], preferred_element_type=f32)  # (B*D, mm)
    eps2 = 1e-24                              # F.normalize(eps=1e-12): x / max(||x||, eps)
    xr_n = xr * jax.lax.rsqrt(jnp.maximum(jnp.sum(xr * xr, -1, keepdims=True), eps2))
    xp_n = xp * jax.lax.rsqrt(jnp.maximum(jnp.sum(xp * xp, -1, keepdims=True), eps2))

    # --- batched cosine attention with block-diagonal mask (replaces per-sample loop) ---
    cos = jnp.dot(xr_n, xp_n.T, preferred_element_type=f32)                    # (B, B*D)
    row = jax.lax.broadcasted_iota(jnp.int32, (batch, bd), 0)
    col = jax.lax.broadcasted_iota(jnp.int32, (batch, bd), 1)
    valid = (col >= row * n_slice) & (col < (row + 1) * n_slice)
    cos = jnp.where(valid, cos, -1e30)
    cos = cos - jnp.max(cos, axis=-1, keepdims=True)
    e = jnp.exp(cos)
    att = e * pl.reciprocal(jnp.sum(e, axis=-1, keepdims=True), approx=True)   # (B, B*D)
    v = jnp.dot(att, h, preferred_element_type=f32)                            # (B, 512)

    # --- Classifier 'proj' fusion + XAI_contribution + final softmax ---
    zim = jnp.dot(v.astype(bf16), pimg_t_ref[...], preferred_element_type=f32)  # proj_img
    zrm = jnp.dot(xcls_b, prep_t_ref[...], preferred_element_type=f32)          # proj_rep
    zsa = jnp.dot(zsa_ref[...], sa_t_ref[...], preferred_element_type=f32) + sa_b_ref[...]
    wc = cls_t_ref[...]                       # (3*mm, nc)
    b3 = cls_b_ref[...] / 3.0                 # bias / 3 per modality (as in XAI_contribution)
    li = jnp.dot(zim, wc[:mm_dim, :], preferred_element_type=f32) + b3
    lr = jnp.dot(zrm, wc[mm_dim:2 * mm_dim, :], preferred_element_type=f32) + b3
    ld = jnp.dot(zsa, wc[2 * mm_dim:, :], preferred_element_type=f32) + b3
    # XAI_contribution: softmax over the 3 modality logit contributions.
    m = jnp.maximum(jnp.maximum(li, lr), ld)
    ei = jnp.exp(li - m)
    er = jnp.exp(lr - m)
    ed = jnp.exp(ld - m)
    inv_s = pl.reciprocal(ei + er + ed, approx=True)
    # Final class prediction: softmax(z_ @ Wc^T + b) == softmax(li + lr + ld)
    logits = li + lr + ld
    lm = jnp.max(logits, axis=-1, keepdims=True)
    ez = jnp.exp(logits - lm)
    inv_z = pl.reciprocal(jnp.sum(ez, axis=-1, keepdims=True), approx=True)

    # One merged lane-dense output slab (z | ci | cr | cd | att_full | 0-pad), written
    # with a single unmasked full-width store; split on the host.
    parts = [ez * inv_z, ei * inv_s, er * inv_s, ed * inv_s, att]
    pad = slab - (4 * nc + bd)
    if pad > 0:
        parts.append(jnp.zeros((batch, pad), f32))
    out_ref[...] = jnp.concatenate(parts, axis=-1)


def text_rsa_classifier(emb_cls, h_flat, zsa_in, prep):
    B = emb_cls.shape[0]
    D = h_flat.shape[0] // B
    slab = max(128, pl.cdiv(4 * NUM_CLASS + B * D, 128) * 128)
    kernel = functools.partial(_text_rsa_cls_kernel, batch=B, n_slice=D,
                               mm_dim=MM_DIM, nc=NUM_CLASS, slab=slab)
    # TODO(synk): for large B, grid this call over the batch ('parallel') so both v7x
    # TensorCores are used; at B=2 a single un-gridded call is the right shape.
    small = pl.pallas_call(
        kernel,
        out_shape=jax.ShapeDtypeStruct((B, slab), jnp.float32),
        compiler_params=pltpu.CompilerParams(vmem_limit_bytes=32 * 1024 * 1024),
    )(emb_cls, h_flat, zsa_in,
      prep["pool_wt"], prep["pool_b"],
      prep["w_rep_t"], prep["w_slice_t"],
      prep["proj_img_t"], prep["proj_rep_t"],
      prep["sa_t"], prep["sa_b"],
      prep["cls_t"], prep["cls_b"])
    return small, slab


# ----------------------------------------------------------------------------
# Host glue (im2col / parameter preparation)
# ----------------------------------------------------------------------------
def _im2col(x, kh, kw, stride, pad):
    """NCHW -> (N, Ho*Wo, C*kh*kw) bf16 patches; column order (c, i, j) matches
    torch conv weight .reshape(out_ch, -1).  The 49x replication is done in bf16
    so the materialized patch tensor costs half the HBM traffic of f32."""
    N, C, H, W = x.shape
    xb = x.astype(jnp.bfloat16)
    xp = jnp.pad(xb, ((0, 0), (0, 0), (pad, pad), (pad, pad)))
    Ho = (H + 2 * pad - kh) // stride + 1
    Wo = (W + 2 * pad - kw) // stride + 1
    taps = []
    for i in range(kh):
        for j in range(kw):
            taps.append(xp[:, :, i:i + stride * Ho:stride, j:j + stride * Wo:stride])
    p = jnp.stack(taps, axis=2)                                   # (N, C, kh*kw, Ho, Wo)
    p = p.transpose(0, 3, 4, 1, 2).reshape(N, Ho * Wo, C * kh * kw)
    return p, Ho * Wo


def init_params(key):
    ks = jax.random.split(key, 12)

    def nrm(k, shape, scale=0.05):
        return scale * jax.random.normal(k, shape, jnp.float32)

    return {
        "emb_table": nrm(ks[0], (VOCAB, REP_DIM)),
        "pool_w": nrm(ks[1], (REP_DIM, REP_DIM)),        # BERT pooler dense
        "pool_b": nrm(ks[2], (REP_DIM,)),
        "conv1_w": nrm(ks[3], (CONV1_OUT, 3, KH, KW)),   # resnet conv1, bias=False
        "point_w": nrm(ks[4], (FC_INPUT, CONV1_OUT)),    # stand-in for layer1..4 (1x1 conv)
        "w_rep_cs": nrm(ks[5], (MM_DIM, REP_DIM)),       # Proj_REP_cs   (bias=False)
        "w_slice_cs": nrm(ks[6], (MM_DIM, FC_INPUT)),    # Proj_SLICE_cs (bias=False)
        "proj_img_w": nrm(ks[7], (MM_DIM, FC_INPUT)),    # Classifier.proj_img (bias=False)
        "proj_rep_w": nrm(ks[8], (MM_DIM, REP_DIM)),     # Classifier.proj_rep (bias=False)
        "sa_w": nrm(ks[9], (MM_DIM, 2)),                 # sa_embeddings (bias=True)
        "sa_b": nrm(ks[10], (MM_DIM,)),
        # NOTE: original code declares Linear(2*mm_dim, nc) but the forward fuses a
        # 3*mm_dim vector (and XAI_contribution splits it into 3 chunks); use 3*mm_dim
        # so the 'proj' path is runnable and the XAI split is well-defined.
        "cls_w": nrm(ks[11], (NUM_CLASS, 3 * MM_DIM)),   # FC_mm_proj_binary[0]
        "cls_b": jnp.linspace(-0.1, 0.1, NUM_CLASS).astype(jnp.float32),
    }


def prepare_params(p):
    """Pre-transpose / pre-pad / pre-cast weights once, outside the per-call path."""
    w1t = p["conv1_w"].reshape(CONV1_OUT, -1).T                     # (147, 64)
    w1t = jnp.pad(w1t, ((0, K_PAD - K_RAW), (0, C1_PAD - CONV1_OUT)))       # (256, 128)
    wpt = jnp.pad(p["point_w"].T, ((0, C1_PAD - CONV1_OUT), (0, 0)))        # (128, 512)
    return {
        "emb_table": p["emb_table"],
        "w1t": w1t.astype(jnp.bfloat16),
        "wpt": wpt.astype(jnp.bfloat16),
        "pool_wt": p["pool_w"].T.astype(jnp.bfloat16),                      # (768, 768)
        "pool_b": p["pool_b"].reshape(1, REP_DIM),
        "w_rep_t": p["w_rep_cs"].T.astype(jnp.bfloat16),                    # (768, 128)
        "w_slice_t": p["w_slice_cs"].T.astype(jnp.bfloat16),                # (512, 128)
        "proj_img_t": p["proj_img_w"].T.astype(jnp.bfloat16),               # (512, 128)
        "proj_rep_t": p["proj_rep_w"].T.astype(jnp.bfloat16),               # (768, 128)
        "sa_t": p["sa_w"].T,                                                # (2, 128)
        "sa_b": p["sa_b"].reshape(1, MM_DIM),
        "cls_t": p["cls_w"].T,                                              # (384, 2)
        "cls_b": p["cls_b"].reshape(1, NUM_CLASS),
    }


@jax.jit
def mm_model_forward(prep, xis, token_ids, xage, xsex):
    B, C, D, H, W = xis.shape

    # ---- RepEncoder: only the CLS-token embedding is gathered; the pooler head
    #      (tanh dense) is fused into the RSA/classifier kernel below. ----
    # TODO(synk): pretrained RoBERTa transformer stack cannot be reproduced in-script;
    # the token embedding feeds the pooler head directly.
    emb_cls = prep["emb_table"][token_ids[:, 0]]                      # (B, 768)

    # ---- ImageEncoder (aggregation 'DIAMIT') ----
    x2 = jnp.transpose(xis, (0, 2, 1, 3, 4)).reshape(B * D, C, H, W)  # xis.transpose(1,2).reshape
    patches, _ = _im2col(x2, KH, KW, STRIDE, PAD)                     # (B*D, HW, 147) bf16
    # TODO(synk): im2col (49x patch replication) is still materialized in HBM; a fully
    # in-kernel tap-sum conv (raw image tile resident in VMEM + KH*KW shifted matmuls)
    # would cut conv-stem HBM reads ~49x and matters most on v5e's ~0.8 TB/s HBM.
    # TODO(synk): ResNet18 bn1/maxpool/layer1-4 replaced by a pointwise 1x1-conv stand-in.
    h_flat = conv_stem_gap(patches, prep["w1t"], prep["wpt"])         # (B*D, 512)

    # ---- RSA_cs + Classifier (num_class=2, 'img+rep', 'proj'), fused ----
    zsa_in = jnp.concatenate([xsex[:, None], xage[:, None]], axis=-1).astype(jnp.float32)
    small, _ = text_rsa_classifier(emb_cls, h_flat, zsa_in, prep)
    z = small[:, :NUM_CLASS]
    contris = jnp.stack([small[:, NUM_CLASS:2 * NUM_CLASS],
                         small[:, 2 * NUM_CLASS:3 * NUM_CLASS],
                         small[:, 3 * NUM_CLASS:4 * NUM_CLASS]], axis=-1)  # (B, nc, 3)
    # slice attention: the kernel returns the full block-masked (B, B*D) attention
    # matrix lane-dense; extract the per-sample diagonal blocks on the host.
    att_full = small[:, 4 * NUM_CLASS:4 * NUM_CLASS + B * D].reshape(B, B, D)
    slice_scores = att_full[jnp.arange(B), jnp.arange(B)]                  # (B, D)
    return z, slice_scores, contris


if __name__ == "__main__":
    key = jax.random.PRNGKey(0)
    k_img, k_tok, k_age, k_sex, k_par = jax.random.split(key, 5)

    B, C, D, H, W, S = 2, 3, 9, 16, 16, 8   # small shapes (D=9 slices as in default input_D=9)
    xis = jax.random.normal(k_img, (B, C, D, H, W), jnp.float32)
    token_ids = jax.random.randint(k_tok, (B, S), 0, VOCAB)
    xage = jax.random.uniform(k_age, (B,), jnp.float32)
    xsex = jax.random.bernoulli(k_sex, 0.5, (B,)).astype(jnp.float32)

    params = init_params(k_par)
    prep = prepare_params(params)           # one-time weight transposes / pads / bf16 casts

    z, slice_scores, contris = mm_model_forward(prep, xis, token_ids, xage, xsex)
    jax.block_until_ready((z, slice_scores, contris))

    assert z.shape == (B, NUM_CLASS)
    assert slice_scores.shape == (B, D)
    assert contris.shape == (B, NUM_CLASS, 3)
    # bf16 matmuls + EUP approx reciprocals in the softmaxes -> ~1e-3 relative error.
    assert bool(jnp.allclose(jnp.sum(z, axis=-1), 1.0, atol=1e-2))
    assert bool(jnp.allclose(jnp.sum(slice_scores, axis=-1), 1.0, atol=1e-2))
    assert bool(jnp.allclose(jnp.sum(contris, axis=-1), 1.0, atol=1e-2))
    print("KERNEL_OK")
</pallas_src>

<mosaic_0001>
module attributes {stable_mosaic.version = 11 : i64} {
  func.func @_conv_stem_kernel(%arg0: i32, %arg1: i32, %arg2: memref<1x64x256xbf16, #tpu.memory_space<vmem>>, %arg3: memref<256x128xbf16, #tpu.memory_space<vmem>>, %arg4: memref<128x512xbf16, #tpu.memory_space<vmem>>, %arg5: memref<1x1x512xf32, #tpu.memory_space<vmem>>) attributes {dimension_semantics = [#tpu.dimension_semantics<parallel>, #tpu.dimension_semantics<arbitrary>], iteration_bounds = array<i64: 18, 1>, scalar_prefetch = 0 : i64, scratch_operands = 0 : i64, tpu.core_type = #tpu.core_type<tc>, window_params = [{transform_indices = @transform_0, window_bounds = array<i64: 1, 64, 256>}, {pipeline_mode = #tpu.pipeline_mode<synchronous>, transform_indices = @transform_1, window_bounds = array<i64: 256, 128>}, {pipeline_mode = #tpu.pipeline_mode<synchronous>, transform_indices = @transform_2, window_bounds = array<i64: 128, 512>}, {transform_indices = @transform_3, window_bounds = array<i64: 1, 1, 512>}]} {
    %c0_i32 = arith.constant 0 : i32
    %0 = arith.cmpi eq, %arg1, %c0_i32 : i32
    %1 = arith.extui %0 : i1 to i32
    %c0_i32_0 = arith.constant 0 : i32
    %2 = arith.cmpi ne, %1, %c0_i32_0 : i32
    scf.if %2 {
      %cst_18 = arith.constant 0.000000e+00 : f32
      %24 = vector.broadcast %cst_18 : f32 to vector<1x1x512xf32>
      %c0_19 = arith.constant 0 : index
      %c0_20 = arith.constant 0 : index
      %c0_21 = arith.constant 0 : index
      %25 = vector.load %arg5[%c0_19, %c0_20, %c0_21] : memref<1x1x512xf32, #tpu.memory_space<vmem>>, vector<1x1x512xf32>
      tpu.vector_store %arg5[%c0_19, %c0_20, %c0_21], %24 {strides = array<i32>} : memref<1x1x512xf32, #tpu.memory_space<vmem>>, vector<1x1x512xf32>,
    } else {
    }
    %c0 = arith.constant 0 : index
    %c0_1 = arith.constant 0 : index
    %c0_2 = arith.constant 0 : index
    %3 = vector.load %arg2[%c0, %c0_1, %c0_2] : memref<1x64x256xbf16, #tpu.memory_space<vmem>>, vector<1x64x256xbf16>
    %4 = vector.shape_cast %3 : vector<1x64x256xbf16> to vector<64x256xbf16>
    %c0_3 = arith.constant 0 : index
    %c0_4 = arith.constant 0 : index
    %5 = vector.load %arg3[%c0_3, %c0_4] : memref<256x128xbf16, #tpu.memory_space<vmem>>, vector<256x128xbf16>
    %cst = arith.constant dense<0.000000e+00> : vector<64x128xf32>
    %6 = tpu.matmul %4, %5, %cst {dimension_numbers = #tpu.dot_dimension_numbers<[1], [0], [0], [1], [0, 0, 1, 1], [], []>} : vector<64x256xbf16>, vector<256x128xbf16>, vector<64x128xf32> -> vector<64x128xf32>
    %cst_5 = arith.constant 0.000000e+00 : f32
    %7 = vector.broadcast %cst_5 : f32 to vector<64x128xf32>
    %8 = arith.maximumf %6, %7 : vector<64x128xf32>
    %9 = arith.truncf %8 : vector<64x128xf32> to vector<64x128xbf16>
    %c0_6 = arith.constant 0 : index
    %c0_7 = arith.constant 0 : index
    %10 = vector.load %arg4[%c0_6, %c0_7] : memref<128x512xbf16, #tpu.memory_space<vmem>>, vector<128x512xbf16>
    %cst_8 = arith.constant dense<0.000000e+00> : vector<64x512xf32>
    %11 = tpu.matmul %9, %10, %cst_8 {dimension_numbers = #tpu.dot_dimension_numbers<[1], [0], [0], [1], [0, 0, 1, 1], [], []>} : vector<64x128xbf16>, vector<128x512xbf16>, vector<64x512xf32> -> vector<64x512xf32>
    %cst_9 = arith.constant 0.000000e+00 : f32
    %12 = vector.broadcast %cst_9 : f32 to vector<64x512xf32>
    %13 = arith.maximumf %11, %12 : vector<64x512xf32>
    %c0_10 = arith.constant 0 : index
    %c0_11 = arith.constant 0 : index
    %c0_12 = arith.constant 0 : index
    %14 = vector.load %arg5[%c0_10, %c0_11, %c0_12] : memref<1x1x512xf32, #tpu.memory_space<vmem>>, vector<1x1x512xf32>
    %15 = vector.shape_cast %14 : vector<1x1x512xf32> to vector<1x512xf32>
    %cst_13 = arith.constant dense<0.000000e+00> : vector<512xf32>
    %16 = vector.multi_reduction <add>, %13, %cst_13 [0] : vector<64x512xf32> to vector<512xf32>
    %17 = vector.shape_cast %16 : vector<512xf32> to vector<1x512xf32>
    %cst_14 = arith.constant 1.562500e-02 : f32
    %18 = vector.broadcast %cst_14 : f32 to vector<1x512xf32>
    %19 = arith.mulf %17, %18 : vector<1x512xf32>
    %20 = arith.addf %15, %19 : vector<1x512xf32>
    %c0_15 = arith.constant 0 : index
    %c0_16 = arith.constant 0 : index
    %c0_17 = arith.constant 0 : index
    %21 = vector.load %arg5[%c0_15, %c0_16, %c0_17] : memref<1x1x512xf32, #tpu.memory_space<vmem>>, vector<1x1x512xf32>
    %22 = vector.shape_cast %21 : vector<1x1x512xf32> to vector<1x512xf32>
    %23 = vector.shape_cast %20 : vector<1x512xf32> to vector<1x1x512xf32>
    tpu.vector_store %arg5[%c0_15, %c0_16, %c0_17], %23 {strides = array<i32>} : memref<1x1x512xf32, #tpu.memory_space<vmem>>, vector<1x1x512xf32>,
    return
  }
  func.func @transform_0(%arg0: i32, %arg1: i32) -> (i32, i32, i32) {
    %c0_i32 = arith.constant 0 : i32
    %c0_i32_0 = arith.constant 0 : i32
    return %arg0, %arg1, %c0_i32 : i32, i32, i32
  }
  func.func @transform_1(%arg0: i32, %arg1: i32) -> (i32, i32) {
    %c0_i32 = arith.constant 0 : i32
    %c0_i32_0 = arith.constant 0 : i32
    %c0_i32_1 = arith.constant 0 : i32
    return %c0_i32, %c0_i32_0 : i32, i32
  }
  func.func @transform_2(%arg0: i32, %arg1: i32) -> (i32, i32) {
    %c0_i32 = arith.constant 0 : i32
    %c0_i32_0 = arith.constant 0 : i32
    %c0_i32_1 = arith.constant 0 : i32
    return %c0_i32, %c0_i32_0 : i32, i32
  }
  func.func @transform_3(%arg0: i32, %arg1: i32) -> (i32, i32, i32) {
    %c0_i32 = arith.constant 0 : i32
    %c0_i32_0 = arith.constant 0 : i32
    %c0_i32_1 = arith.constant 0 : i32
    return %arg0, %c0_i32, %c0_i32_0 : i32, i32, i32
  }
}

module attributes {stable_mosaic.version = 11 : i64} {
  func.func @_text_rsa_cls_kernel(%arg0: memref<2x768xf32, #tpu.memory_space<vmem>>, %arg1: memref<18x512xf32, #tpu.memory_space<vmem>>, %arg2: memref<2x2xf32, #tpu.memory_space<vmem>>, %arg3: memref<768x768xbf16, #tpu.memory_space<vmem>>, %arg4: memref<1x768xf32, #tpu.memory_space<vmem>>, %arg5: memref<768x128xbf16, #tpu.memory_space<vmem>>, %arg6: memref<512x128xbf16, #tpu.memory_space<vmem>>, %arg7: memref<512x128xbf16, #tpu.memory_space<vmem>>, %arg8: memref<768x128xbf16, #tpu.memory_space<vmem>>, %arg9: memref<2x128xf32, #tpu.memory_space<vmem>>, %arg10: memref<1x128xf32, #tpu.memory_space<vmem>>, %arg11: memref<384x2xf32, #tpu.memory_space<vmem>>, %arg12: memref<1x2xf32, #tpu.memory_space<vmem>>, %arg13: memref<2x128xf32, #tpu.memory_space<vmem>>) attributes {dimension_semantics = [], scalar_prefetch = 0 : i64, scratch_operands = 0 : i64, tpu.core_type = #tpu.core_type<tc>} {
    %c0 = arith.constant 0 : index
    %c0_0 = arith.constant 0 : index
    %0 = vector.load %arg0[%c0, %c0_0] : memref<2x768xf32, #tpu.memory_space<vmem>>, vector<2x768xf32>
    %1 = arith.truncf %0 : vector<2x768xf32> to vector<2x768xbf16>
    %c0_1 = arith.constant 0 : index
    %c0_2 = arith.constant 0 : index
    %2 = vector.load %arg3[%c0_1, %c0_2] : memref<768x768xbf16, #tpu.memory_space<vmem>>, vector<768x768xbf16>
    %cst = arith.constant dense<0.000000e+00> : vector<2x768xf32>
    %3 = tpu.matmul %1, %2, %cst {dimension_numbers = #tpu.dot_dimension_numbers<[1], [0], [0], [1], [0, 0, 1, 1], [], []>} : vector<2x768xbf16>, vector<768x768xbf16>, vector<2x768xf32> -> vector<2x768xf32>
    %c0_3 = arith.constant 0 : index
    %c0_4 = arith.constant 0 : index
    %4 = vector.load %arg4[%c0_3, %c0_4] : memref<1x768xf32, #tpu.memory_space<vmem>>, vector<1x768xf32>
    %5 = vector.broadcast %4 : vector<1x768xf32> to vector<2x768xf32>
    %6 = arith.addf %3, %5 : vector<2x768xf32>
    %7 = math.tanh %6 : vector<2x768xf32>
    %8 = arith.truncf %7 : vector<2x768xf32> to vector<2x768xbf16>
    %c0_5 = arith.constant 0 : index
    %c0_6 = arith.constant 0 : index
    %9 = vector.load %arg1[%c0_5, %c0_6] : memref<18x512xf32, #tpu.memory_space<vmem>>, vector<18x512xf32>
    %c0_7 = arith.constant 0 : index
    %c0_8 = arith.constant 0 : index
    %10 = vector.load %arg5[%c0_7, %c0_8] : memref<768x128xbf16, #tpu.memory_space<vmem>>, vector<768x128xbf16>
    %cst_9 = arith.constant dense<0.000000e+00> : vector<2x128xf32>
    %11 = tpu.matmul %8, %10, %cst_9 {dimension_numbers = #tpu.dot_dimension_numbers<[1], [0], [0], [1], [0, 0, 1, 1], [], []>} : vector<2x768xbf16>, vector<768x128xbf16>, vector<2x128xf32> -> vector<2x128xf32>
    %12 = arith.truncf %9 : vector<18x512xf32> to vector<18x512xbf16>
    %c0_10 = arith.constant 0 : index
    %c0_11 = arith.constant 0 : index
    %13 = vector.load %arg6[%c0_10, %c0_11] : memref<512x128xbf16, #tpu.memory_space<vmem>>, vector<512x128xbf16>
    %cst_12 = arith.constant dense<0.000000e+00> : vector<18x128xf32>
    %14 = tpu.matmul %12, %13, %cst_12 {dimension_numbers = #tpu.dot_dimension_numbers<[1], [0], [0], [1], [0, 0, 1, 1], [], []>} : vector<18x512xbf16>, vector<512x128xbf16>, vector<18x128xf32> -> vector<18x128xf32>
    %15 = arith.mulf %11, %11 : vector<2x128xf32>
    %cst_13 = arith.constant dense<0.000000e+00> : vector<2xf32>
    %16 = vector.multi_reduction <add>, %15, %cst_13 [1] : vector<2x128xf32> to vector<2xf32>
    %17 = vector.shape_cast %16 : vector<2xf32> to vector<2x1xf32>
    %cst_14 = arith.constant 1.000000e-24 : f32
    %18 = vector.broadcast %cst_14 : f32 to vector<2x1xf32>
    %19 = arith.maximumf %17, %18 : vector<2x1xf32>
    %20 = math.rsqrt %19 : vector<2x1xf32>
    %21 = vector.broadcast %20 : vector<2x1xf32> to vector<2x128xf32>
    %22 = arith.mulf %11, %21 : vector<2x128xf32>
    %23 = arith.mulf %14, %14 : vector<18x128xf32>
    %cst_15 = arith.constant dense<0.000000e+00> : vector<18xf32>
    %24 = vector.multi_reduction <add>, %23, %cst_15 [1] : vector<18x128xf32> to vector<18xf32>
    %25 = vector.shape_cast %24 : vector<18xf32> to vector<18x1xf32>
    %cst_16 = arith.constant 1.000000e-24 : f32
    %26 = vector.broadcast %cst_16 : f32 to vector<18x1xf32>
    %27 = arith.maximumf %25, %26 : vector<18x1xf32>
    %28 = math.rsqrt %27 : vector<18x1xf32>
    %29 = vector.broadcast %28 : vector<18x1xf32> to vector<18x128xf32>
    %30 = arith.mulf %14, %29 : vector<18x128xf32>
    %31 = tpu.transpose %30, [1, 0] : vector<18x128xf32> -> vector<128x18xf32>
    %cst_17 = arith.constant dense<0.000000e+00> : vector<2x18xf32>
    %32 = tpu.matmul %22, %31, %cst_17 {dimension_numbers = #tpu.dot_dimension_numbers<[1], [0], [0], [1], [0, 0, 1, 1], [], []>} : vector<2x128xf32>, vector<128x18xf32>, vector<2x18xf32> -> vector<2x18xf32>
    %33 = tpu.iota {dimensions = array<i32: 0>} : vector<2x18xi32>
    %34 = tpu.iota {dimensions = array<i32: 1>} : vector<2x18xi32>
    %c9_i32 = arith.constant 9 : i32
    %35 = vector.broadcast %c9_i32 : i32 to vector<2x18xi32>
    %36 = arith.muli %33, %35 : vector<2x18xi32>
    %37 = arith.cmpi sge, %34, %36 : vector<2x18xi32>
    %c1_i32 = arith.constant 1 : i32
    %38 = vector.broadcast %c1_i32 : i32 to vector<2x18xi32>
    %39 = arith.addi %33, %38 : vector<2x18xi32>
    %c9_i32_18 = arith.constant 9 : i32
    %40 = vector.broadcast %c9_i32_18 : i32 to vector<2x18xi32>
    %41 = arith.muli %39, %40 : vector<2x18xi32>
    %42 = arith.cmpi slt, %34, %41 : vector<2x18xi32>
    %43 = arith.andi %37, %42 : vector<2x18xi1>
    %cst_19 = arith.constant -1.000000e+30 : f32
    %44 = vector.broadcast %cst_19 : f32 to vector<2x18xf32>
    %45 = arith.select %43, %32, %44 : vector<2x18xi1>, vector<2x18xf32>
    %cst_20 = arith.constant dense<0xFF800000> : vector<2xf32>
    %46 = vector.multi_reduction <maximumf>, %45, %cst_20 [1] : vector<2x18xf32> to vector<2xf32>
    %47 = vector.shape_cast %46 : vector<2xf32> to vector<2x1xf32>
    %48 = vector.broadcast %47 : vector<2x1xf32> to vector<2x18xf32>
    %49 = arith.subf %45, %48 : vector<2x18xf32>
    %50 = math.exp %49 : vector<2x18xf32>
    %cst_21 = arith.constant dense<0.000000e+00> : vector<2xf32>
    %51 = vector.multi_reduction <add>, %50, %cst_21 [1] : vector<2x18xf32> to vector<2xf32>
    %52 = vector.shape_cast %51 : vector<2xf32> to vector<2x1xf32>
    %53 = tpu.reciprocal %52 {approx = true} : vector<2x1xf32> -> vector<2x1xf32>
    %54 = vector.broadcast %53 : vector<2x1xf32> to vector<2x18xf32>
    %55 = arith.mulf %50, %54 : vector<2x18xf32>
    %cst_22 = arith.constant dense<0.000000e+00> : vector<2x512xf32>
    %56 = tpu.matmul %55, %9, %cst_22 {dimension_numbers = #tpu.dot_dimension_numbers<[1], [0], [0], [1], [0, 0, 1, 1], [], []>} : vector<2x18xf32>, vector<18x512xf32>, vector<2x512xf32> -> vector<2x512xf32>
    %57 = arith.truncf %56 : vector<2x512xf32> to vector<2x512xbf16>
    %c0_23 = arith.constant 0 : index
    %c0_24 = arith.constant 0 : index
    %58 = vector.load %arg7[%c0_23, %c0_24] : memref<512x128xbf16, #tpu.memory_space<vmem>>, vector<512x128xbf16>
    %cst_25 = arith.constant dense<0.000000e+00> : vector<2x128xf32>
    %59 = tpu.matmul %57, %58, %cst_25 {dimension_numbers = #tpu.dot_dimension_numbers<[1], [0], [0], [1], [0, 0, 1, 1], [], []>} : vector<2x512xbf16>, vector<512x128xbf16>, vector<2x128xf32> -> vector<2x128xf32>
    %c0_26 = arith.constant 0 : index
    %c0_27 = arith.constant 0 : index
    %60 = vector.load %arg8[%c0_26, %c0_27] : memref<768x128xbf16, #tpu.memory_space<vmem>>, vector<768x128xbf16>
    %cst_28 = arith.constant dense<0.000000e+00> : vector<2x128xf32>
    %61 = tpu.matmul %8, %60, %cst_28 {dimension_numbers = #tpu.dot_dimension_numbers<[1], [0], [0], [1], [0, 0, 1, 1], [], []>} : vector<2x768xbf16>, vector<768x128xbf16>, vector<2x128xf32> -> vector<2x128xf32>
    %c0_29 = arith.constant 0 : index
    %c0_30 = arith.constant 0 : index
    %62 = vector.load %arg2[%c0_29, %c0_30] : memref<2x2xf32, #tpu.memory_space<vmem>>, vector<2x2xf32>
    %c0_31 = arith.constant 0 : index
    %c0_32 = arith.constant 0 : index
    %63 = vector.load %arg9[%c0_31, %c0_32] : memref<2x128xf32, #tpu.memory_space<vmem>>, vector<2x128xf32>
    %cst_33 = arith.constant dense<0.000000e+00> : vector<2x128xf32>
    %64 = tpu.matmul %62, %63, %cst_33 {dimension_numbers = #tpu.dot_dimension_numbers<[1], [0], [0], [1], [0, 0, 1, 1], [], []>} : vector<2x2xf32>, vector<2x128xf32>, vector<2x128xf32> -> vector<2x128xf32>
    %c0_34 = arith.constant 0 : index
    %c0_35 = arith.constant 0 : index
    %65 = vector.load %arg10[%c0_34, %c0_35] : memref<1x128xf32, #tpu.memory_space<vmem>>, vector<1x128xf32>
    %66 = vector.broadcast %65 : vector<1x128xf32> to vector<2x128xf32>
    %67 = arith.addf %64, %66 : vector<2x128xf32>
    %c0_36 = arith.constant 0 : index
    %c0_37 = arith.constant 0 : index
    %68 = vector.load %arg11[%c0_36, %c0_37] : memref<384x2xf32, #tpu.memory_space<vmem>>, vector<384x2xf32>
    %c0_38 = arith.constant 0 : index
    %c0_39 = arith.constant 0 : index
    %69 = vector.load %arg12[%c0_38, %c0_39] : memref<1x2xf32, #tpu.memory_space<vmem>>, vector<1x2xf32>
    %cst_40 = arith.constant 3.000000e+00 : f32
    %70 = vector.broadcast %cst_40 : f32 to vector<1x2xf32>
    %71 = arith.divf %69, %70 : vector<1x2xf32>
    %72 = vector.extract_strided_slice %68 {offsets = [0, 0], sizes = [128, 2], strides = [1, 1]} : vector<384x2xf32> to vector<128x2xf32>
    %cst_41 = arith.constant dense<0.000000e+00> : vector<2x2xf32>
    %73 = tpu.matmul %59, %72, %cst_41 {dimension_numbers = #tpu.dot_dimension_numbers<[1], [0], [0], [1], [0, 0, 1, 1], [], []>} : vector<2x128xf32>, vector<128x2xf32>, vector<2x2xf32> -> vector<2x2xf32>
    %74 = vector.broadcast %71 : vector<1x2xf32> to vector<2x2xf32>
    %75 = arith.addf %73, %74 : vector<2x2xf32>
    %76 = vector.extract_strided_slice %68 {offsets = [128, 0], sizes = [128, 2], strides = [1, 1]} : vector<384x2xf32> to vector<128x2xf32>
    %cst_42 = arith.constant dense<0.000000e+00> : vector<2x2xf32>
    %77 = tpu.matmul %61, %76, %cst_42 {dimension_numbers = #tpu.dot_dimension_numbers<[1], [0], [0], [1], [0, 0, 1, 1], [], []>} : vector<2x128xf32>, vector<128x2xf32>, vector<2x2xf32> -> vector<2x2xf32>
    %78 = vector.broadcast %71 : vector<1x2xf32> to vector<2x2xf32>
    %79 = arith.addf %77, %78 : vector<2x2xf32>
    %80 = vector.extract_strided_slice %68 {offsets = [256, 0], sizes = [128, 2], strides = [1, 1]} : vector<384x2xf32> to vector<128x2xf32>
    %cst_43 = arith.constant dense<0.000000e+00> : vector<2x2xf32>
    %81 = tpu.matmul %67, %80, %cst_43 {dimension_numbers = #tpu.dot_dimension_numbers<[1], [0], [0], [1], [0, 0, 1, 1], [], []>} : vector<2x128xf32>, vector<128x2xf32>, vector<2x2xf32> -> vector<2x2xf32>
    %82 = vector.broadcast %71 : vector<1x2xf32> to vector<2x2xf32>
    %83 = arith.addf %81, %82 : vector<2x2xf32>
    %84 = arith.maximumf %75, %79 : vector<2x2xf32>
    %85 = arith.maximumf %84, %83 : vector<2x2xf32>
    %86 = arith.subf %75, %85 : vector<2x2xf32>
    %87 = math.exp %86 : vector<2x2xf32>
    %88 = arith.subf %79, %85 : vector<2x2xf32>
    %89 = math.exp %88 : vector<2x2xf32>
    %90 = arith.subf %83, %85 : vector<2x2xf32>
    %91 = math.exp %90 : vector<2x2xf32>
    %92 = arith.addf %87, %89 : vector<2x2xf32>
    %93 = arith.addf %92, %91 : vector<2x2xf32>
    %94 = tpu.reciprocal %93 {approx = true} : vector<2x2xf32> -> vector<2x2xf32>
    %95 = arith.addf %75, %79 : vector<2x2xf32>
    %96 = arith.addf %95, %83 : vector<2x2xf32>
    %cst_44 = arith.constant dense<0xFF800000> : vector<2xf32>
    %97 = vector.multi_reduction <maximumf>, %96, %cst_44 [1] : vector<2x2xf32> to vector<2xf32>
    %98 = vector.shape_cast %97 : vector<2xf32> to vector<2x1xf32>
    %99 = vector.broadcast %98 : vector<2x1xf32> to vector<2x2xf32>
    %100 = arith.subf %96, %99 : vector<2x2xf32>
    %101 = math.exp %100 : vector<2x2xf32>
    %cst_45 = arith.constant dense<0.000000e+00> : vector<2xf32>
    %102 = vector.multi_reduction <add>, %101, %cst_45 [1] : vector<2x2xf32> to vector<2xf32>
    %103 = vector.shape_cast %102 : vector<2xf32> to vector<2x1xf32>
    %104 = tpu.reciprocal %103 {approx = true} : vector<2x1xf32> -> vector<2x1xf32>
    %105 = vector.broadcast %104 : vector<2x1xf32> to vector<2x2xf32>
    %106 = arith.mulf %101, %105 : vector<2x2xf32>
    %107 = arith.mulf %87, %94 : vector<2x2xf32>
    %108 = arith.mulf %89, %94 : vector<2x2xf32>
    %109 = arith.mulf %91, %94 : vector<2x2xf32>
    %cst_46 = arith.constant 0.000000e+00 : f32
    %110 = vector.broadcast %cst_46 : f32 to vector<2x102xf32>
    %111 = tpu.concatenate %106, %107, %108, %109, %55, %110 in 1 : vector<2x2xf32>, vector<2x2xf32>, vector<2x2xf32>, vector<2x2xf32>, vector<2x18xf32>, vector<2x102xf32> -> vector<2x128xf32>
    %c0_47 = arith.constant 0 : index
    %c0_48 = arith.constant 0 : index
    %112 = vector.load %arg13[%c0_47, %c0_48] : memref<2x128xf32, #tpu.memory_space<vmem>>, vector<2x128xf32>
    tpu.vector_store %arg13[%c0_47, %c0_48], %111 {strides = array<i32>} : memref<2x128xf32, #tpu.memory_space<vmem>>, vector<2x128xf32>,
    return
  }
}

</mosaic_0001>

<llo_original>
// kernel: mm_model_forward.2
$region0: #{mm_model_forward.2}
  #allocation0 [shape = 'u32[]', space=smem, size = 0x4, offset = 0x4, fixed_abs, tag = 'smem constant byte address 0x4 - core index']
  #allocation1 [shape = 'u32[144,128]{1,0:T(1,128)}', space=vmem, size = 0x12000, scoped, tag = 'internal scratch']
  %s0 = inlined_call_operand.vmem [shape: bf16[18,64,256], index: 0, kind: input, shape index: {}]
  %s1 = inlined_call_operand.vmem [shape: bf16[256,128], index: 1, kind: input, shape index: {}]
  %s2 = inlined_call_operand.vmem [shape: bf16[128,512], index: 2, kind: input, shape index: {}]
  %s3 = inlined_call_operand.vmem [shape: f32[18,1,512], index: 3, kind: output, shape index: {}]
  %s4 = sld [smem:[#allocation0]]
  $region49: #{mm_model_forward.2} parent=0
    _
  %s6 = ssub.s32 1, %s4
  %s7 = scalar_select 0, %s6, %s4
  loop: start=0, step=1, limit=20
  $region2: #{mm_model_forward.2} parent=0 // loop_pre_header
    _
  $region3: #{mm_model_forward.2} parent=0 // loop_header
    %s9 = sphi 0, %s13
    %p10 = scmp.ge.s32.totalorder %s9, 20
    %s16 = sphi 0, %s28
    %s17 = sphi 0, %s24
    %s18 = sphi 0, %s16
    %s19 = sphi 0, %s17
    %s20 = sphi 0, %s18
    %s21 = sphi 0, %s19
    %s33 = sphi 0, %s35
    %s36 = sphi 0, %s33
    %s37 = sphi 0, %s36
    %s53 = sphi 0, %s37
    %s57 = sphi 0, %s57
    %s59 = sphi 0, %s57
    %s60 = sphi 0, %s59
    %s74 = sphi 0, %s60
    %s78 = sphi 0, %s78
    %s80 = sphi 0, %s78
    %s81 = sphi 0, %s80
    %s95 = sphi 0, %s81
    %s101 = sphi 0, %s103
    %s104 = sphi 0, %s101
    %s105 = sphi 0, %s104
    %s121 = sphi 0, %s105
  $region4: #{mm_model_forward.2} parent=0 // loop_header_branch
    %12 = sbr.rel (%p10) target = $region8
  $region5: #{mm_model_forward.2} parent=0 // loop_body
    %s14 = ssub.s32 %s9, 1
    %s15 = ssub.s32 %s9, 2
    %s22 = sadd.s32 1, %s17
    %p23 = scmp.ge.s32.totalorder %s22, 1
    %s24 = scalar_select %p23, 0, %s22
    %s25 = sadd.s32 1, %s16
    %s26 = scalar_select %p23, %s25, %s16
    %p27 = scmp.ge.s32.totalorder %s26, 18
    %s28 = scalar_select %p27, 0, %s26
    %s29 = ssub.s32 %s16, %s28
    %s30 = ssub.s32 %s17, %s24
    %s31 = sor.u32 %s29, %s30
    %p32 = scmp.eq.s32.totalorder %s31, 0
    %s34 = sadd.s32 %s33, 1
    %s35 = scalar_select %p32, %s33, %s34
    %p38 = pneg %p32
    %p39 = scmp.eq.s32.totalorder %s9, 17
    %p40 = por %p38, %p39
    %p41 = scmp.ne.s32.totalorder %s33, %s36
    %p42 = scmp.eq.s32.totalorder %s9, 0
    %p43 = por %p41, %p42
    %p44 = scmp.ne.s32.totalorder %s33, %s36
    %p45 = scmp.eq.s32.totalorder %s14, 17
    %p46 = por %p44, %p45
    %p47 = scmp.ne.s32.totalorder %s36, %s37
    %p48 = scmp.eq.s32.totalorder %s14, 0
    %p49 = por %p47, %p48
    %p50 = scmp.ne.s32.totalorder %s36, %s37
    %p51 = scmp.eq.s32.totalorder %s15, 17
    %p52 = por %p50, %p51
    %p54 = scmp.ne.s32.totalorder %s37, %s53
    %p55 = scmp.eq.s32.totalorder %s15, 0
    %p56 = por %p54, %p55
    %s58 = sadd.s32 %s57, 1
    %p61 = scmp.eq.s32.totalorder %s9, 17
    %p62 = scmp.ne.s32.totalorder %s57, %s59
    %p63 = scmp.eq.s32.totalorder %s9, 0
    %p64 = por %p62, %p63
    %p65 = scmp.ne.s32.totalorder %s57, %s59
    %p66 = scmp.eq.s32.totalorder %s14, 17
    %p67 = por %p65, %p66
    %p68 = scmp.ne.s32.totalorder %s59, %s60
    %p69 = scmp.eq.s32.totalorder %s14, 0
    %p70 = por %p68, %p69
    %p71 = scmp.ne.s32.totalorder %s59, %s60
    %p72 = scmp.eq.s32.totalorder %s15, 17
    %p73 = por %p71, %p72
    %p75 = scmp.ne.s32.totalorder %s60, %s74
    %p76 = scmp.eq.s32.totalorder %s15, 0
    %p77 = por %p75, %p76
    %s79 = sadd.s32 %s78, 1
    %p82 = scmp.eq.s32.totalorder %s9, 17
    %p83 = scmp.ne.s32.totalorder %s78, %s80
    %p84 = scmp.eq.s32.totalorder %s9, 0
    %p85 = por %p83, %p84
    %p86 = scmp.ne.s32.totalorder %s78, %s80
    %p87 = scmp.eq.s32.totalorder %s14, 17
    %p88 = por %p86, %p87
    %p89 = scmp.ne.s32.totalorder %s80, %s81
    %p90 = scmp.eq.s32.totalorder %s14, 0
    %p91 = por %p89, %p90
    %p92 = scmp.ne.s32.totalorder %s80, %s81
    %p93 = scmp.eq.s32.totalorder %s15, 17
    %p94 = por %p92, %p93
    %p96 = scmp.ne.s32.totalorder %s81, %s95
    %p97 = scmp.eq.s32.totalorder %s15, 0
    %p98 = por %p96, %p97
    %s99 = ssub.s32 %s16, %s28
    %p100 = scmp.eq.s32.totalorder %s99, 0
    %s102 = sadd.s32 %s101, 1
    %s103 = scalar_select %p100, %s101, %s102
    %p106 = pneg %p100
    %p107 = scmp.eq.s32.totalorder %s9, 17
    %p108 = por %p106, %p107
    %p109 = scmp.ne.s32.totalorder %s101, %s104
    %p110 = scmp.eq.s32.totalorder %s9, 0
    %p111 = por %p109, %p110
    %p112 = scmp.ne.s32.totalorder %s101, %s104
    %p113 = scmp.eq.s32.totalorder %s14, 17
    %p114 = por %p112, %p113
    %p115 = scmp.ne.s32.totalorder %s104, %s105
    %p116 = scmp.eq.s32.totalorder %s14, 0
    %p117 = por %p115, %p116
    %p118 = scmp.ne.s32.totalorder %s104, %s105
    %p119 = scmp.eq.s32.totalorder %s15, 17
    %p120 = por %p118, %p119
    %p122 = scmp.ne.s32.totalorder %s105, %s121
    %p123 = scmp.eq.s32.totalorder %s15, 0
    %p124 = por %p122, %p123
    %p125 = scmp.le.s32.totalorder 1, %s9
    %p126 = scmp.lt.s32.totalorder %s9, 19
    %p127 = pnand %p125, %p126
    %p128 = pneg %p127
    // Predicated region
    $region9: #{mm_model_forward.2} parent=5 // pred_check
      _
    $region10: #{mm_model_forward.2} parent=5 // pred_check_branch
      %130 = sbr.rel (%p127) target = $region12
    $region11: #{mm_model_forward.2} parent=5 // pred_region
      %s131 = ssub.s32 %s9, 1
      // Predicated region
      $region13: #{mm_model_forward.2} parent=11 // pred_check
        %p132 = pneg %p70
      $region14: #{mm_model_forward.2} parent=11 // pred_check_branch
        %134 = sbr.rel (%p132) target = $region16
      $region15: #{mm_model_forward.2} parent=11 // pred_region
        _
      $region16: #{mm_model_forward.2} parent=11 // pred_fallthru
        _
      // Predicated region
      $region17: #{mm_model_forward.2} parent=11 // pred_check
        %p135 = pneg %p91
      $region18: #{mm_model_forward.2} parent=11 // pred_check_branch
        %137 = sbr.rel (%p135) target = $region20
      $region19: #{mm_model_forward.2} parent=11 // pred_region
        _
      $region20: #{mm_model_forward.2} parent=11 // pred_fallthru
        _
    $region12: #{mm_model_forward.2} parent=5 // pred_fallthru
      _
    %p138 = scmp.lt.s32.totalorder %s9, 18
    // Predicated region
    $region21: #{mm_model_forward.2} parent=5 // pred_check
      %p139 = pneg %p138
    $region22: #{mm_model_forward.2} parent=5 // pred_check_branch
      %141 = sbr.rel (%p139) target = $region24
    $region23: #{mm_model_forward.2} parent=5 // pred_region
      // Predicated region
      $region25: #{mm_model_forward.2} parent=23 // pred_check
        %p142 = pneg %p43
      $region26: #{mm_model_forward.2} parent=23 // pred_check_branch
        %144 = sbr.rel (%p142) target = $region28
      $region27: #{mm_model_forward.2} parent=23 // pred_region
        %s145 = smul.u32 8, %s17
        %p146 = scmp.lt.s32.totalorder %s16, 17
        %s147 = scalar_select %p146, %s16, 17
        %p148 = scmp.lt.s32.totalorder %s145, 7
        %s149 = scalar_select %p148, %s145, 7
        %s150 = smul.addr %s149, 2
        %s151 = smul.addr %s147, 16
        %s152 = sadd.s32 %s150, %s151
        %s153 = smul.addr %s152, 4
        %s154 = scalar_lea.vmem %s0, %s153
        %s155 = smul.u32 8, %s17
      $region28: #{mm_model_forward.2} parent=23 // pred_fallthru
        _
    $region24: #{mm_model_forward.2} parent=5 // pred_fallthru
      _
    %p156 = scmp.le.s32.totalorder 1, %s9
    %p157 = scmp.lt.s32.totalorder %s9, 19
    %p158 = pnand %p156, %p157
    %p159 = pneg %p158
    // Predicated region
    $region29: #{mm_model_forward.2} parent=5 // pred_check
      _
    $region30: #{mm_model_forward.2} parent=5 // pred_check_branch
      %161 = sbr.rel (%p158) target = $region32
    $region31: #{mm_model_forward.2} parent=5 // pred_region
      %s162 = ssub.s32 %s9, 1
      %s163 = smul.u32 8, %s19
      %p164 = scmp.lt.s32.totalorder %s18, 17
      %s165 = scalar_select %p164, %s18, 17
      %p166 = scmp.lt.s32.totalorder %s163, 7
      %s167 = scalar_select %p166, %s163, 7
      %s168 = smul.addr %s167, 2
      %s169 = smul.addr %s165, 16
      %s170 = sadd.s32 %s168, %s169
      %s171 = smul.addr %s170, 4
      %s172 = scalar_lea.vmem %s0, %s171
      %p173 = pneg %p49
      %p174 = pneg %p46
      %p175 = pneg %p70
      %p176 = pneg %p67
      %p177 = pneg %p91
      %p178 = pneg %p88
      %p179 = pneg %p117
      %p180 = pneg %p114
      %p181 = scmp.lt.s32.totalorder %s18, 17
      %s182 = scalar_select %p181, %s18, 17
      %s183 = smul.addr %s182, 4
      %s184 = scalar_lea.vmem %s3, %s183
      %s185 = smul.u32 8, %s19
      %p186 = scmp.lt.s32.totalorder %s18, 17
      %s187 = scalar_select %p186, %s18, 17
      %p188 = scmp.lt.s32.totalorder %s185, 7
      %s189 = scalar_select %p188, %s185, 7
      %s190 = smul.addr %s189, 2
      %s191 = smul.addr %s187, 16
      %s192 = sadd.s32 %s190, %s191
      %s193 = smul.addr %s192, 4
      %s194 = scalar_lea.vmem %s0, %s193
      %s195 = smul.u32 8, %s19
      %p196 = scmp.lt.s32.totalorder %s18, 17
      %s197 = scalar_select %p196, %s18, 17
      %s198 = smul.addr %s197, 4
      %s199 = scalar_lea.vmem %s3, %s198
      %p201 = scmp.eq.s32.totalorder %s19, 0
      // Predicated region
      $region33: #{mm_model_forward.2} parent=31 // pred_check
        %p202 = pneg %p201
      $region34: #{mm_model_forward.2} parent=31 // pred_check_branch
        %204 = sbr.rel (%p202) target = $region36
      $region35: #{mm_model_forward.2} parent=31 // pred_region
        %v205 = vlaneseq
        %vm206 = vcmp.ge.s32.totalorder %v205, 0
        %vm207 = vcmp.lt.s32.totalorder %v205, 512
        %vm208 = vmand %vm206, %vm207
        %209 = vst.msk [vmem:[%s199] sm:$0xf] %vm208, 0.0
      $region36: #{mm_model_forward.2} parent=31 // pred_fallthru
        _
      %v210 = vld [vmem:[%s194] sm:$0xff]
      %v211 = vld [vmem:[%s194 + $0x8] sm:$0xff]
      %v212 = vld [vmem:[%s194 + $0x10] sm:$0xff]
      %v213 = vld [vmem:[%s194 + $0x18] sm:$0xff]
      %v214 = vld [vmem:[%s194 + $0x20] sm:$0xff]
      %v215 = vld [vmem:[%s194 + $0x28] sm:$0xff]
      %v216 = vld [vmem:[%s194 + $0x30] sm:$0xff]
      %v217 = vld [vmem:[%s194 + $0x38] sm:$0xff]
      %v218 = vld [vmem:[%s1] sm:$0xf]
      %v219 = vld [vmem:[%s1 + $0x4] sm:$0xf]
      %v220 = vld [vmem:[%s1 + $0x8] sm:$0xf]
      %v221 = vld [vmem:[%s1 + $0xc] sm:$0xf]
      %v222 = vld [vmem:[%s1 + $0x10] sm:$0xf]
      %v223 = vld [vmem:[%s1 + $0x14] sm:$0xf]
      %v224 = vld [vmem:[%s1 + $0x18] sm:$0xf]
      %v225 = vld [vmem:[%s1 + $0x1c] sm:$0xf]
      %v226 = vld [vmem:[%s1 + $0x20] sm:$0xf]
      %v227 = vld [vmem:[%s1 + $0x24] sm:$0xf]
      %v228 = vld [vmem:[%s1 + $0x28] sm:$0xf]
      %v229 = vld [vmem:[%s1 + $0x2c] sm:$0xf]
      %v230 = vld [vmem:[%s1 + $0x30] sm:$0xf]
      %v231 = vld [vmem:[%s1 + $0x34] sm:$0xf]
      %v232 = vld [vmem:[%s1 + $0x38] sm:$0xf]
      %v233 = vld [vmem:[%s1 + $0x3c] sm:$0xf]
      %v234 = vld [vmem:[%s1 + $0x40] sm:$0xf]
      %v235 = vld [vmem:[%s1 + $0x44] sm:$0xf]
      %v236 = vld [vmem:[%s1 + $0x48] sm:$0xf]
      %v237 = vld [vmem:[%s1 + $0x4c] sm:$0xf]
      %v238 = vld [vmem:[%s1 + $0x50] sm:$0xf]
      %v239 = vld [vmem:[%s1 + $0x54] sm:$0xf]
      %v240 = vld [vmem:[%s1 + $0x58] sm:$0xf]
      %v241 = vld [vmem:[%s1 + $0x5c] sm:$0xf]
      %v242 = vld [vmem:[%s1 + $0x60] sm:$0xf]
      %v243 = vld [vmem:[%s1 + $0x64] sm:$0xf]
      %v244 = vld [vmem:[%s1 + $0x68] sm:$0xf]
      %v245 = vld [vmem:[%s1 + $0x6c] sm:$0xf]
      %v246 = vld [vmem:[%s1 + $0x70] sm:$0xf]
      %v247 = vld [vmem:[%s1 + $0x74] sm:$0xf]
      %v248 = vld [vmem:[%s1 + $0x78] sm:$0xf]
      %v249 = vld [vmem:[%s1 + $0x7c] sm:$0xf]
      %v258 = vunpack.c.l.b16 %v210
      %v259 = vunpack.c.h.b16 %v210
      %v260 = vunpack.c.l.b16 %v211
      %v261 = vunpack.c.h.b16 %v211
      %v262 = vunpack.c.l.b16 %v212
      %v263 = vunpack.c.h.b16 %v212
      %v264 = vunpack.c.l.b16 %v213
      %v265 = vunpack.c.h.b16 %v213
      %v266 = vunpack.c.l.b16 %v214
      %v267 = vunpack.c.h.b16 %v214
      %v268 = vunpack.c.l.b16 %v215
      %v269 = vunpack.c.h.b16 %v215
      %v270 = vunpack.c.l.b16 %v216
      %v271 = vunpack.c.h.b16 %v216
      %v272 = vunpack.c.l.b16 %v217
      %v273 = vunpack.c.h.b16 %v217
      %v274 = vpack.c.b16 %v260, %v258
      %v275 = vpack.c.b16 %v261, %v259
      %v276 = vpack.c.b16 %v264, %v262
      %v277 = vpack.c.b16 %v265, %v263
      %v278 = vpack.c.b16 %v268, %v266
      %v279 = vpack.c.b16 %v269, %v267
      %v280 = vpack.c.b16 %v272, %v270
      %v281 = vpack.c.b16 %v273, %v271
      %v322 = vunpack.c.l.b16 %v218
      %v323 = vunpack.c.l.b16 %v219
      %v324 = vunpack.c.l.b16 %v220
      %v325 = vunpack.c.l.b16 %v221
      %v326 = vunpack.c.l.b16 %v222
      %v327 = vunpack.c.l.b16 %v223
      %v328 = vunpack.c.l.b16 %v224
      %v329 = vunpack.c.l.b16 %v225
      %v330 = vunpack.c.l.b16 %v226
      %v331 = vunpack.c.l.b16 %v227
      %v332 = vunpack.c.l.b16 %v228
      %v333 = vunpack.c.l.b16 %v229
      %v334 = vunpack.c.l.b16 %v230
      %v335 = vunpack.c.l.b16 %v231
      %v336 = vunpack.c.l.b16 %v232
      %v337 = vunpack.c.l.b16 %v233
      %v338 = vunpack.c.l.b16 %v234
      %v339 = vunpack.c.l.b16 %v235
      %v340 = vunpack.c.l.b16 %v236
      %v341 = vunpack.c.l.b16 %v237
      %v342 = vunpack.c.l.b16 %v238
      %v343 = vunpack.c.l.b16 %v239
      %v344 = vunpack.c.l.b16 %v240
      %v345 = vunpack.c.l.b16 %v241
      %v346 = vunpack.c.l.b16 %v242
      %v347 = vunpack.c.l.b16 %v243
      %v348 = vunpack.c.l.b16 %v244
      %v349 = vunpack.c.l.b16 %v245
      %v350 = vunpack.c.l.b16 %v246
      %v351 = vunpack.c.l.b16 %v247
      %v352 = vunpack.c.l.b16 %v248
      %v353 = vunpack.c.l.b16 %v249
      %v354 = vpack.c.b16 %v323, %v322
      %v355 = vpack.c.b16 %v325, %v324
      %v356 = vpack.c.b16 %v327, %v326
      %v357 = vpack.c.b16 %v329, %v328
      %v358 = vpack.c.b16 %v331, %v330
      %v359 = vpack.c.b16 %v333, %v332
      %v360 = vpack.c.b16 %v335, %v334
      %v361 = vpack.c.b16 %v337, %v336
      %v362 = vpack.c.b16 %v339, %v338
      %v363 = vpack.c.b16 %v341, %v340
      %v364 = vpack.c.b16 %v343, %v342
      %v365 = vpack.c.b16 %v345, %v344
      %v366 = vpack.c.b16 %v347, %v346
      %v367 = vpack.c.b16 %v349, %v348
      %v368 = vpack.c.b16 %v351, %v350
      %v369 = vpack.c.b16 %v353, %v352
      %386 = vmatprep.subr.bf16.mxu0 0
      %387 = vmatpush1.bf16.msra.mxu0 %v354
      %388 = vmatprep.subr.bf16.mxu0 0
      %389 = vmatpush1.bf16.msra.mxu0 %v355
      %390 = vmatprep.subr.bf16.mxu0 0
      %391 = vmatpush1.bf16.msra.mxu0 %v356
      %392 = vmatprep.subr.bf16.mxu0 0
      %393 = vmatpush1.bf16.msra.mxu0 %v357
      %394 = vmatprep.subr.bf16.mxu0 0
      %395 = vmatpush1.bf16.msra.mxu0 %v358
      %396 = vmatprep.subr.bf16.mxu0 0
      %397 = vmatpush1.bf16.msra.mxu0 %v359
      %398 = vmatprep.subr.bf16.mxu0 0
      %399 = vmatpush1.bf16.msra.mxu0 %v360
      %400 = vmatprep.subr.bf16.mxu0 0
      %401 = vmatpush1.bf16.msra.mxu0 %v361
      %402 = vmatprep.subr.bf16.mxu0 0
      %403 = vmatpush1.bf16.msra.mxu0 %v362
      %404 = vmatprep.subr.bf16.mxu0 0
      %405 = vmatpush1.bf16.msra.mxu0 %v363
      %406 = vmatprep.subr.bf16.mxu0 0
      %407 = vmatpush1.bf16.msra.mxu0 %v364
      %408 = vmatprep.subr.bf16.mxu0 0
      %409 = vmatpush1.bf16.msra.mxu0 %v365
      %410 = vmatprep.subr.bf16.mxu0 0
      %411 = vmatpush1.bf16.msra.mxu0 %v366
      %412 = vmatprep.subr.bf16.mxu0 0
      %413 = vmatpush1.bf16.msra.mxu0 %v367
      %414 = vmatprep.subr.bf16.mxu0 0
      %415 = vmatpush1.bf16.msra.mxu0 %v368
      %416 = vmatprep.subr.bf16.mxu0 0
      %417 = vmatpush1.bf16.msra.mxu0 %v369
      %418 = vmatprep.mubr.bf16.mxu0 %v275
      %419 = vmatmul.mubr.bf16.gmra.mrb[0].mxu0 %v274
      %v420 = vpop.f32.mrb[0].mxu0
      %v421 = vadd.f32 0.0, %v420
      %v422 = vpop.f32.mrb[0].mxu0
      %v423 = vpop.f32.mrb[0].mxu0
      %v424 = vadd.f32 0.0, %v423
      %v425 = vpop.f32.mrb[0].mxu0
      %426 = vmatprep.mubr.bf16.mxu0 %v277
      %427 = vmatmul.mubr.bf16.gmra.mrb[0].mxu0 %v276
      %v428 = vpop.f32.mrb[0].mxu0
      %v429 = vadd.f32 0.0, %v428
      %v430 = vpop.f32.mrb[0].mxu0
      %v431 = vpop.f32.mrb[0].mxu0
      %v432 = vadd.f32 0.0, %v431
      %v433 = vpop.f32.mrb[0].mxu0
      %434 = vmatprep.mubr.bf16.mxu0 %v279
      %435 = vmatmul.mubr.bf16.gmra.mrb[0].mxu0 %v278
      %v436 = vpop.f32.mrb[0].mxu0
      %v437 = vadd.f32 0.0, %v436
      %v438 = vpop.f32.mrb[0].mxu0
      %v439 = vpop.f32.mrb[0].mxu0
      %v440 = vadd.f32 0.0, %v439
      %v441 = vpop.f32.mrb[0].mxu0
      %442 = vmatprep.mubr.bf16.mxu0 %v281
      %443 = vmatmul.mubr.bf16.gmra.mrb[0].mxu0 %v280
      %v444 = vpop.f32.mrb[0].mxu0
      %v445 = vadd.f32 0.0, %v444
      %v446 = vpop.f32.mrb[0].mxu0
      %v447 = vpop.f32.mrb[0].mxu0
      %v448 = vadd.f32 0.0, %v447
      %v449 = vpop.f32.mrb[0].mxu0
      %450 = vdwg.mxu0
      %v451 = vmax.f32 %v421, 0.0
      %v452 = vmax.f32 %v424, 0.0
      %v453 = vmax.f32 %v429, 0.0
      %v454 = vmax.f32 %v432, 0.0
      %v455 = vmax.f32 %v437, 0.0
      %v456 = vmax.f32 %v440, 0.0
      %v457 = vmax.f32 %v445, 0.0
      %v458 = vmax.f32 %v448, 0.0
      %v459 = vpack.c.bf16 %v452, %v451
      %v460 = vpack.c.bf16 %v454, %v453
      %v461 = vpack.c.bf16 %v456, %v455
      %v462 = vpack.c.bf16 %v458, %v457
      %v463 = vld [vmem:[%s2] sm:$0xff]
      %v464 = vld [vmem:[%s2 + $0x8] sm:$0xff]
      %v465 = vld [vmem:[%s2 + $0x10] sm:$0xff]
      %v466 = vld [vmem:[%s2 + $0x18] sm:$0xff]
      %v467 = vld [vmem:[%s2 + $0x20] sm:$0xff]
      %v468 = vld [vmem:[%s2 + $0x28] sm:$0xff]
      %v469 = vld [vmem:[%s2 + $0x30] sm:$0xff]
      %v470 = vld [vmem:[%s2 + $0x38] sm:$0xff]
      %v471 = vld [vmem:[%s2 + $0x40] sm:$0xff]
      %v472 = vld [vmem:[%s2 + $0x48] sm:$0xff]
      %v473 = vld [vmem:[%s2 + $0x50] sm:$0xff]
      %v474 = vld [vmem:[%s2 + $0x58] sm:$0xff]
      %v475 = vld [vmem:[%s2 + $0x60] sm:$0xff]
      %v476 = vld [vmem:[%s2 + $0x68] sm:$0xff]
      %v477 = vld [vmem:[%s2 + $0x70] sm:$0xff]
      %v478 = vld [vmem:[%s2 + $0x78] sm:$0xff]
      %v479 = vld [vmem:[%s2 + $0x80] sm:$0xff]
      %v480 = vld [vmem:[%s2 + $0x88] sm:$0xff]
      %v481 = vld [vmem:[%s2 + $0x90] sm:$0xff]
      %v482 = vld [vmem:[%s2 + $0x98] sm:$0xff]
      %v483 = vld [vmem:[%s2 + $0xa0] sm:$0xff]
      %v484 = vld [vmem:[%s2 + $0xa8] sm:$0xff]
      %v485 = vld [vmem:[%s2 + $0xb0] sm:$0xff]
      %v486 = vld [vmem:[%s2 + $0xb8] sm:$0xff]
      %v487 = vld [vmem:[%s2 + $0xc0] sm:$0xff]
      %v488 = vld [vmem:[%s2 + $0xc8] sm:$0xff]
      %v489 = vld [vmem:[%s2 + $0xd0] sm:$0xff]
      %v490 = vld [vmem:[%s2 + $0xd8] sm:$0xff]
      %v491 = vld [vmem:[%s2 + $0xe0] sm:$0xff]
      %v492 = vld [vmem:[%s2 + $0xe8] sm:$0xff]
      %v493 = vld [vmem:[%s2 + $0xf0] sm:$0xff]
      %v494 = vld [vmem:[%s2 + $0xf8] sm:$0xff]
      %v527 = vunpack.c.l.b16 %v463
      %v528 = vunpack.c.h.b16 %v463
      %v529 = vunpack.c.l.b16 %v464
      %v530 = vunpack.c.h.b16 %v464
      %v531 = vunpack.c.l.b16 %v465
      %v532 = vunpack.c.h.b16 %v465
      %v533 = vunpack.c.l.b16 %v466
      %v534 = vunpack.c.h.b16 %v466
      %v535 = vunpack.c.l.b16 %v467
      %v536 = vunpack.c.h.b16 %v467
      %v537 = vunpack.c.l.b16 %v468
      %v538 = vunpack.c.h.b16 %v468
      %v539 = vunpack.c.l.b16 %v469
      %v540 = vunpack.c.h.b16 %v469
      %v541 = vunpack.c.l.b16 %v470
      %v542 = vunpack.c.h.b16 %v470
      %v543 = vunpack.c.l.b16 %v471
      %v544 = vunpack.c.h.b16 %v471
      %v545 = vunpack.c.l.b16 %v472
      %v546 = vunpack.c.h.b16 %v472
      %v547 = vunpack.c.l.b16 %v473
      %v548 = vunpack.c.h.b16 %v473
      %v549 = vunpack.c.l.b16 %v474
      %v550 = vunpack.c.h.b16 %v474
      %v551 = vunpack.c.l.b16 %v475
      %v552 = vunpack.c.h.b16 %v475
      %v553 = vunpack.c.l.b16 %v476
      %v554 = vunpack.c.h.b16 %v476
      %v555 = vunpack.c.l.b16 %v477
      %v556 = vunpack.c.h.b16 %v477
      %v557 = vunpack.c.l.b16 %v478
      %v558 = vunpack.c.h.b16 %v478
      %v559 = vunpack.c.l.b16 %v479
      %v560 = vunpack.c.h.b16 %v479
      %v561 = vunpack.c.l.b16 %v480
      %v562 = vunpack.c.h.b16 %v480
      %v563 = vunpack.c.l.b16 %v481
      %v564 = vunpack.c.h.b16 %v481
      %v565 = vunpack.c.l.b16 %v482
      %v566 = vunpack.c.h.b16 %v482
      %v567 = vunpack.c.l.b16 %v483
      %v568 = vunpack.c.h.b16 %v483
      %v569 = vunpack.c.l.b16 %v484
      %v570 = vunpack.c.h.b16 %v484
      %v571 = vunpack.c.l.b16 %v485
      %v572 = vunpack.c.h.b16 %v485
      %v573 = vunpack.c.l.b16 %v486
      %v574 = vunpack.c.h.b16 %v486
      %v575 = vunpack.c.l.b16 %v487
      %v576 = vunpack.c.h.b16 %v487
      %v577 = vunpack.c.l.b16 %v488
      %v578 = vunpack.c.h.b16 %v488
      %v579 = vunpack.c.l.b16 %v489
      %v580 = vunpack.c.h.b16 %v489
      %v581 = vunpack.c.l.b16 %v490
      %v582 = vunpack.c.h.b16 %v490
      %v583 = vunpack.c.l.b16 %v491
      %v584 = vunpack.c.h.b16 %v491
      %v585 = vunpack.c.l.b16 %v492
      %v586 = vunpack.c.h.b16 %v492
      %v587 = vunpack.c.l.b16 %v493
      %v588 = vunpack.c.h.b16 %v493
      %v589 = vunpack.c.l.b16 %v494
      %v590 = vunpack.c.h.b16 %v494
      %v591 = vpack.c.b16 %v531, %v527
      %v592 = vpack.c.b16 %v532, %v528
      %v593 = vpack.c.b16 %v533, %v529
      %v594 = vpack.c.b16 %v534, %v530
      %v595 = vpack.c.b16 %v539, %v535
      %v596 = vpack.c.b16 %v540, %v536
      %v597 = vpack.c.b16 %v541, %v537
      %v598 = vpack.c.b16 %v542, %v538
      %v599 = vpack.c.b16 %v547, %v543
      %v600 = vpack.c.b16 %v548, %v544
      %v601 = vpack.c.b16 %v549, %v545
      %v602 = vpack.c.b16 %v550, %v546
      %v603 = vpack.c.b16 %v555, %v551
      %v604 = vpack.c.b16 %v556, %v552
      %v605 = vpack.c.b16 %v557, %v553
      %v606 = vpack.c.b16 %v558, %v554
      %v607 = vpack.c.b16 %v563, %v559
      %v608 = vpack.c.b16 %v564, %v560
      %v609 = vpack.c.b16 %v565, %v561
      %v610 = vpack.c.b16 %v566, %v562
      %v611 = vpack.c.b16 %v571, %v567
      %v612 = vpack.c.b16 %v572, %v568
      %v613 = vpack.c.b16 %v573, %v569
      %v614 = vpack.c.b16 %v574, %v570
      %v615 = vpack.c.b16 %v579, %v575
      %v616 = vpack.c.b16 %v580, %v576
      %v617 = vpack.c.b16 %v581, %v577
      %v618 = vpack.c.b16 %v582, %v578
      %v619 = vpack.c.b16 %v587, %v583
      %v620 = vpack.c.b16 %v588, %v584
      %v621 = vpack.c.b16 %v589, %v585
      %v622 = vpack.c.b16 %v590, %v586
      %655 = vmatprep.subr.bf16.mxu0 %v592
      %656 = vmatpush1.bf16.msra.mxu0 %v591
      %657 = vmatprep.subr.bf16.mxu0 %v596
      %658 = vmatpush1.bf16.msra.mxu0 %v595
      %659 = vmatprep.subr.bf16.mxu0 %v600
      %660 = vmatpush1.bf16.msra.mxu0 %v599
      %661 = vmatprep.subr.bf16.mxu0 %v604
      %662 = vmatpush1.bf16.msra.mxu0 %v603
      %663 = vmatprep.subr.bf16.mxu0 %v608
      %664 = vmatpush1.bf16.msra.mxu0 %v607
      %665 = vmatprep.subr.bf16.mxu0 %v612
      %666 = vmatpush1.bf16.msra.mxu0 %v611
      %667 = vmatprep.subr.bf16.mxu0 %v616
      %668 = vmatpush1.bf16.msra.mxu0 %v615
      %669 = vmatprep.subr.bf16.mxu0 %v620
      %670 = vmatpush1.bf16.msra.mxu0 %v619
      %671 = vmatprep.subr.bf16.mxu0 0
      %672 = vmatpush1.bf16.msra.mxu0 0
      %673 = vmatprep.subr.bf16.mxu0 0
      %674 = vmatpush1.bf16.msra.mxu0 0
      %675 = vmatprep.subr.bf16.mxu0 0
      %676 = vmatpush1.bf16.msra.mxu0 0
      %677 = vmatprep.subr.bf16.mxu0 0
      %678 = vmatpush1.bf16.msra.mxu0 0
      %679 = vmatprep.subr.bf16.mxu0 0
      %680 = vmatpush1.bf16.msra.mxu0 0
      %681 = vmatprep.subr.bf16.mxu0 0
      %682 = vmatpush1.bf16.msra.mxu0 0
      %683 = vmatprep.subr.bf16.mxu0 0
      %684 = vmatpush1.bf16.msra.mxu0 0
      %685 = vmatprep.subr.bf16.mxu0 0
      %686 = vmatpush1.bf16.msra.mxu0 0
      %687 = vmatprep.mubr.bf16.mxu0 0
      %688 = vmatmul.mubr.bf16.gmra.mrb[0].mxu0 %v459
      %v689 = vpop.f32.mrb[0].mxu0
      %v690 = vadd.f32 0.0, %v689
      %v691 = vpop.f32.mrb[0].mxu0
      %v692 = vadd.f32 0.0, %v691
      %v693 = vpop.f32.mrb[0].mxu0
      %v694 = vadd.f32 0.0, %v693
      %v695 = vpop.f32.mrb[0].mxu0
      %v696 = vadd.f32 0.0, %v695
      %697 = vmatprep.mubr.bf16.mxu0 0
      %698 = vmatmul.mubr.bf16.gmra.mrb[0].mxu0 %v460
      %v699 = vpop.f32.mrb[0].mxu0
      %v700 = vadd.f32 0.0, %v699
      %v701 = vpop.f32.mrb[0].mxu0
      %v702 = vadd.f32 0.0, %v701
      %v703 = vpop.f32.mrb[0].mxu0
      %v704 = vadd.f32 0.0, %v703
      %v705 = vpop.f32.mrb[0].mxu0
      %v706 = vadd.f32 0.0, %v705
      %707 = vmatprep.mubr.bf16.mxu0 0
      %708 = vmatmul.mubr.bf16.gmra.mrb[0].mxu0 %v461
      %v709 = vpop.f32.mrb[0].mxu0
      %v710 = vadd.f32 0.0, %v709
      %v711 = vpop.f32.mrb[0].mxu0
      %v712 = vadd.f32 0.0, %v711
      %v713 = vpop.f32.mrb[0].mxu0
      %v714 = vadd.f32 0.0, %v713
      %v715 = vpop.f32.mrb[0].mxu0
      %v716 = vadd.f32 0.0, %v715
      %717 = vmatprep.mubr.bf16.mxu0 0
      %718 = vmatmul.mubr.bf16.gmra.mrb[0].mxu0 %v462
      %v719 = vpop.f32.mrb[0].mxu0
      %v720 = vadd.f32 0.0, %v719
      %v721 = vpop.f32.mrb[0].mxu0
      %v722 = vadd.f32 0.0, %v721
      %v723 = vpop.f32.mrb[0].mxu0
      %v724 = vadd.f32 0.0, %v723
      %v725 = vpop.f32.mrb[0].mxu0
      %v726 = vadd.f32 0.0, %v725
      %727 = vdwg.mxu0
      %728 = vmatprep.subr.bf16.mxu0 %v594
      %729 = vmatpush1.bf16.msra.mxu0 %v593
      %730 = vmatprep.subr.bf16.mxu0 %v598
      %731 = vmatpush1.bf16.msra.mxu0 %v597
      %732 = vmatprep.subr.bf16.mxu0 %v602
      %733 = vmatpush1.bf16.msra.mxu0 %v601
      %734 = vmatprep.subr.bf16.mxu0 %v606
      %735 = vmatpush1.bf16.msra.mxu0 %v605
      %736 = vmatprep.subr.bf16.mxu0 %v610
      %737 = vmatpush1.bf16.msra.mxu0 %v609
      %738 = vmatprep.subr.bf16.mxu0 %v614
      %739 = vmatpush1.bf16.msra.mxu0 %v613
      %740 = vmatprep.subr.bf16.mxu0 %v618
      %741 = vmatpush1.bf16.msra.mxu0 %v617
      %742 = vmatprep.subr.bf16.mxu0 %v622
      %743 = vmatpush1.bf16.msra.mxu0 %v621
      %744 = vmatprep.subr.bf16.mxu0 0
      %745 = vmatpush1.bf16.msra.mxu0 0
      %746 = vmatprep.subr.bf16.mxu0 0
      %747 = vmatpush1.bf16.msra.mxu0 0
      %748 = vmatprep.subr.bf16.mxu0 0
      %749 = vmatpush1.bf16.msra.mxu0 0
      %750 = vmatprep.subr.bf16.mxu0 0
      %751 = vmatpush1.bf16.msra.mxu0 0
      %752 = vmatprep.subr.bf16.mxu0 0
      %753 = vmatpush1.bf16.msra.mxu0 0
      %754 = vmatprep.subr.bf16.mxu0 0
      %755 = vmatpush1.bf16.msra.mxu0 0
      %756 = vmatprep.subr.bf16.mxu0 0
      %757 = vmatpush1.bf16.msra.mxu0 0
      %758 = vmatprep.subr.bf16.mxu0 0
      %759 = vmatpush1.bf16.msra.mxu0 0
      %760 = vmatprep.mubr.bf16.mxu0 0
      %761 = vmatmul.mubr.bf16.gmra.mrb[0].mxu0 %v459
      %v762 = vpop.f32.mrb[0].mxu0
      %v763 = vadd.f32 0.0, %v762
      %v764 = vpop.f32.mrb[0].mxu0
      %v765 = vadd.f32 0.0, %v764
      %v766 = vpop.f32.mrb[0].mxu0
      %v767 = vadd.f32 0.0, %v766
      %v768 = vpop.f32.mrb[0].mxu0
      %v769 = vadd.f32 0.0, %v768
      %770 = vmatprep.mubr.bf16.mxu0 0
      %771 = vmatmul.mubr.bf16.gmra.mrb[0].mxu0 %v460
      %v772 = vpop.f32.mrb[0].mxu0
      %v773 = vadd.f32 0.0, %v772
      %v774 = vpop.f32.mrb[0].mxu0
      %v775 = vadd.f32 0.0, %v774
      %v776 = vpop.f32.mrb[0].mxu0
      %v777 = vadd.f32 0.0, %v776
      %v778 = vpop.f32.mrb[0].mxu0
      %v779 = vadd.f32 0.0, %v778
      %780 = vmatprep.mubr.bf16.mxu0 0
      %781 = vmatmul.mubr.bf16.gmra.mrb[0].mxu0 %v461
      %v782 = vpop.f32.mrb[0].mxu0
      %v783 = vadd.f32 0.0, %v782
      %v784 = vpop.f32.mrb[0].mxu0
      %v785 = vadd.f32 0.0, %v784
      %v786 = vpop.f32.mrb[0].mxu0
      %v787 = vadd.f32 0.0, %v786
      %v788 = vpop.f32.mrb[0].mxu0
      %v789 = vadd.f32 0.0, %v788
      %790 = vmatprep.mubr.bf16.mxu0 0
      %791 = vmatmul.mubr.bf16.gmra.mrb[0].mxu0 %v462
      %v792 = vpop.f32.mrb[0].mxu0
      %v793 = vadd.f32 0.0, %v792
      %v794 = vpop.f32.mrb[0].mxu0
      %v795 = vadd.f32 0.0, %v794
      %v796 = vpop.f32.mrb[0].mxu0
      %v797 = vadd.f32 0.0, %v796
      %v798 = vpop.f32.mrb[0].mxu0
      %v799 = vadd.f32 0.0, %v798
      %800 = vdwg.mxu0
      %v801 = vmax.f32 %v690, 0.0
      %v802 = vmax.f32 %v692, 0.0
      %v803 = vmax.f32 %v763, 0.0
      %v804 = vmax.f32 %v765, 0.0
      %v805 = vmax.f32 %v694, 0.0
      %v806 = vmax.f32 %v696, 0.0
      %v807 = vmax.f32 %v767, 0.0
      %v808 = vmax.f32 %v769, 0.0
      %v809 = vmax.f32 %v700, 0.0
      %v810 = vmax.f32 %v702, 0.0
      %v811 = vmax.f32 %v773, 0.0
      %v812 = vmax.f32 %v775, 0.0
      %v813 = vmax.f32 %v704, 0.0
      %v814 = vmax.f32 %v706, 0.0
      %v815 = vmax.f32 %v777, 0.0
      %v816 = vmax.f32 %v779, 0.0
      %v817 = vmax.f32 %v710, 0.0
      %v818 = vmax.f32 %v712, 0.0
      %v819 = vmax.f32 %v783, 0.0
      %v820 = vmax.f32 %v785, 0.0
      %v821 = vmax.f32 %v714, 0.0
      %v822 = vmax.f32 %v716, 0.0
      %v823 = vmax.f32 %v787, 0.0
      %v824 = vmax.f32 %v789, 0.0
      %v825 = vmax.f32 %v720, 0.0
      %v826 = vmax.f32 %v722, 0.0
      %v827 = vmax.f32 %v793, 0.0
      %v828 = vmax.f32 %v795, 0.0
      %v829 = vmax.f32 %v724, 0.0
      %v830 = vmax.f32 %v726, 0.0
      %v831 = vmax.f32 %v797, 0.0
      %v832 = vmax.f32 %v799, 0.0
      %v833 = vld [vmem:[%s199] sm:$0xf]
      %v834 = vadd.f32 %v801, %v805
      %v835 = vadd.f32 %v834, %v809
      %v836 = vadd.f32 %v835, %v813
      %v837 = vadd.f32 %v836, %v817
      %v838 = vadd.f32 %v837, %v821
      %v839 = vadd.f32 %v838, %v825
      %v840 = vadd.f32 %v839, %v829
      %v841 = vrot.slane %v840, 4
      %v842 = vadd.f32 %v840, %v841
      %v843 = vrot.slane %v842, 2
      %v844 = vadd.f32 %v842, %v843
      %v845 = vrot.slane %v844, 1
      %v846 = vadd.f32 %v844, %v845
      %v847 = vadd.f32 %v802, %v806
      %v848 = vadd.f32 %v847, %v810
      %v849 = vadd.f32 %v848, %v814
      %v850 = vadd.f32 %v849, %v818
      %v851 = vadd.f32 %v850, %v822
      %v852 = vadd.f32 %v851, %v826
      %v853 = vadd.f32 %v852, %v830
      %v854 = vrot.slane %v853, 4
      %v855 = vadd.f32 %v853, %v854
      %v856 = vrot.slane %v855, 2
      %v857 = vadd.f32 %v855, %v856
      %v858 = vrot.slane %v857, 1
      %v859 = vadd.f32 %v857, %v858
      %v860 = vadd.f32 %v803, %v807
      %v861 = vadd.f32 %v860, %v811
      %v862 = vadd.f32 %v861, %v815
      %v863 = vadd.f32 %v862, %v819
      %v864 = vadd.f32 %v863, %v823
      %v865 = vadd.f32 %v864, %v827
      %v866 = vadd.f32 %v865, %v831
      %v867 = vrot.slane %v866, 4
      %v868 = vadd.f32 %v866, %v867
      %v869 = vrot.slane %v868, 2
      %v870 = vadd.f32 %v868, %v869
      %v871 = vrot.slane %v870, 1
      %v872 = vadd.f32 %v870, %v871
      %v873 = vadd.f32 %v804, %v808
      %v874 = vadd.f32 %v873, %v812
      %v875 = vadd.f32 %v874, %v816
      %v876 = vadd.f32 %v875, %v820
      %v877 = vadd.f32 %v876, %v824
      %v878 = vadd.f32 %v877, %v828
      %v879 = vadd.f32 %v878, %v832
      %v880 = vrot.slane %v879, 4
      %v881 = vadd.f32 %v879, %v880
      %v882 = vrot.slane %v881, 2
      %v883 = vadd.f32 %v881, %v882
      %v884 = vrot.slane %v883, 1
      %v885 = vadd.f32 %v883, %v884
      %v886 = vmul.f32 %v846, 0.015625
      %v887 = vmul.f32 %v859, 0.015625
      %v888 = vmul.f32 %v872, 0.015625
      %v889 = vmul.f32 %v885, 0.015625
      %v894 = vcombine.low %v886, %v887
      %v895 = vcombine.low %v888, %v889
      %v897 = vunpack.c.l.s4 1966171168
      %v898 = vunpack.c.0.s8 %v897
      %v899 = vlaneseq
      %v900 = vshrl.u32 %v899, 7
      %v901 = vsub.s32 %v898, %v900
      %v902 = vrot.slane %v894, %v901
      %v904 = vunpack.c.l.s4 1966171168
      %v905 = vunpack.c.0.s8 %v904
      %v906 = vlaneseq
      %v907 = vshrl.u32 %v906, 7
      %v908 = vsub.s32 %v905, %v907
      %v909 = vrot.slane %v895, %v908
      %v910 = vcombine.low %v902, %v909
      %v912 = vunpack.c.l.s4 1966171168
      %v913 = vunpack.c.0.s8 %v912
      %v914 = vlaneseq
      %v915 = vshrl.u32 %v914, 7
      %v916 = vsub.s32 %v913, %v915
      %v917 = vrot.slane %v910, %v916
      %v919 = vadd.f32 %v833, %v917
      %v920 = vlaneseq
      %vm921 = vcmp.ge.s32.totalorder %v920, 0
      %vm922 = vcmp.lt.s32.totalorder %v920, 512
      %vm923 = vmand %vm921, %vm922
      %924 = vst.msk [vmem:[%s199] sm:$0xf] %vm923, %v919
      %p925 = scmp.lt.s32.totalorder %s18, 17
      %s926 = scalar_select %p925, %s18, 17
      %s927 = smul.addr %s926, 4
      %s928 = scalar_lea.vmem %s3, %s927
      // Predicated region
      $region37: #{mm_model_forward.2} parent=31 // pred_check
        %p929 = pneg %p114
      $region38: #{mm_model_forward.2} parent=31 // pred_check_branch
        %931 = sbr.rel (%p929) target = $region40
      $region39: #{mm_model_forward.2} parent=31 // pred_region
        _
      $region40: #{mm_model_forward.2} parent=31 // pred_fallthru
        _
    $region32: #{mm_model_forward.2} parent=5 // pred_fallthru
      _
    %p932 = scmp.le.s32.totalorder 2, %s9
    // Predicated region
    $region41: #{mm_model_forward.2} parent=5 // pred_check
      %p933 = pneg %p932
    $region42: #{mm_model_forward.2} parent=5 // pred_check_branch
      %935 = sbr.rel (%p933) target = $region44
    $region43: #{mm_model_forward.2} parent=5 // pred_region
      %s936 = ssub.s32 %s9, 2
      // Predicated region
      $region45: #{mm_model_forward.2} parent=43 // pred_check
        %p937 = pneg %p120
      $region46: #{mm_model_forward.2} parent=43 // pred_check_branch
        %939 = sbr.rel (%p937) target = $region48
      $region47: #{mm_model_forward.2} parent=43 // pred_region
        %p940 = scmp.lt.s32.totalorder %s20, 17
        %s941 = scalar_select %p940, %s20, 17
        %s942 = smul.addr %s941, 4
        %s943 = scalar_lea.vmem %s3, %s942
      $region48: #{mm_model_forward.2} parent=43 // pred_fallthru
        _
    $region44: #{mm_model_forward.2} parent=5 // pred_fallthru
      _
  $region6: #{mm_model_forward.2} parent=0 // loop_footer
    %s13 = sadd.s32 1, %s9
  $region7: #{mm_model_forward.2} parent=0 // loop_footer_branch
    %8 = sbr.rel target = $region3
  $region8: #{mm_model_forward.2} parent=0 // loop_exit
    _

// kernel: mm_model_forward.3
$region0: #{mm_model_forward.3}
  #allocation0 [shape = 'u32[]', space=smem, size = 0x4, offset = 0x4, fixed_abs, tag = 'smem constant byte address 0x4 - core index']
  #allocation1 [shape = 'u32[144,128]{1,0:T(1,128)}', space=vmem, size = 0x12000, scoped, tag = 'internal scratch']
  %s0 = inlined_call_operand.vmem [shape: f32[2,768], index: 0, kind: input, shape index: {}]
  %s1 = inlined_call_operand.vmem [shape: f32[18,512], index: 1, kind: input, shape index: {}]
  %s2 = inlined_call_operand.vmem [shape: f32[2,2], index: 2, kind: input, shape index: {}]
  %s3 = inlined_call_operand.vmem [shape: bf16[768,768], index: 3, kind: input, shape index: {}]
  %s4 = inlined_call_operand.vmem [shape: f32[1,768], index: 4, kind: input, shape index: {}]
  %s5 = inlined_call_operand.vmem [shape: bf16[768,128], index: 5, kind: input, shape index: {}]
  %s6 = inlined_call_operand.vmem [shape: bf16[512,128], index: 6, kind: input, shape index: {}]
  %s7 = inlined_call_operand.vmem [shape: bf16[512,128], index: 7, kind: input, shape index: {}]
  %s8 = inlined_call_operand.vmem [shape: bf16[768,128], index: 8, kind: input, shape index: {}]
  %s9 = inlined_call_operand.vmem [shape: f32[2,128], index: 9, kind: input, shape index: {}]
  %s10 = inlined_call_operand.vmem [shape: f32[1,128], index: 10, kind: input, shape index: {}]
  %s11 = inlined_call_operand.vmem [shape: f32[384,2], index: 11, kind: input, shape index: {}]
  %s12 = inlined_call_operand.vmem [shape: f32[1,2], index: 12, kind: input, shape index: {}]
  %s13 = inlined_call_operand.vmem [shape: f32[2,128], index: 13, kind: output, shape index: {}]
  %s14 = sld [smem:[#allocation0]]
  $region62: #{mm_model_forward.3} parent=0
    _
  %s16 = ssub.s32 1, %s14
  %s17 = scalar_select 0, %s16, %s14
  // Predicated region
  $region2: #{mm_model_forward.3} parent=0 // pred_check
    _
  $region3: #{mm_model_forward.3} parent=0 // pred_check_branch
    %19 = sbr.rel (0) target = $region5
  $region4: #{mm_model_forward.3} parent=0 // pred_region
    _
  $region5: #{mm_model_forward.3} parent=0 // pred_fallthru
    _
  // Predicated region
  $region6: #{mm_model_forward.3} parent=0 // pred_check
    _
  $region7: #{mm_model_forward.3} parent=0 // pred_check_branch
    %21 = sbr.rel (0) target = $region9
  $region8: #{mm_model_forward.3} parent=0 // pred_region
    _
  $region9: #{mm_model_forward.3} parent=0 // pred_fallthru
    _
  // Predicated region
  $region10: #{mm_model_forward.3} parent=0 // pred_check
    _
  $region11: #{mm_model_forward.3} parent=0 // pred_check_branch
    %23 = sbr.rel (0) target = $region13
  $region12: #{mm_model_forward.3} parent=0 // pred_region
    _
  $region13: #{mm_model_forward.3} parent=0 // pred_fallthru
    _
  // Predicated region
  $region14: #{mm_model_forward.3} parent=0 // pred_check
    _
  $region15: #{mm_model_forward.3} parent=0 // pred_check_branch
    %25 = sbr.rel (0) target = $region17
  $region16: #{mm_model_forward.3} parent=0 // pred_region
    _
  $region17: #{mm_model_forward.3} parent=0 // pred_fallthru
    _
  // Predicated region
  $region18: #{mm_model_forward.3} parent=0 // pred_check
    _
  $region19: #{mm_model_forward.3} parent=0 // pred_check_branch
    %27 = sbr.rel (0) target = $region21
  $region20: #{mm_model_forward.3} parent=0 // pred_region
    _
  $region21: #{mm_model_forward.3} parent=0 // pred_fallthru
    _
  // Predicated region
  $region22: #{mm_model_forward.3} parent=0 // pred_check
    _
  $region23: #{mm_model_forward.3} parent=0 // pred_check_branch
    %29 = sbr.rel (0) target = $region25
  $region24: #{mm_model_forward.3} parent=0 // pred_region
    _
  $region25: #{mm_model_forward.3} parent=0 // pred_fallthru
    _
  // Predicated region
  $region26: #{mm_model_forward.3} parent=0 // pred_check
    _
  $region27: #{mm_model_forward.3} parent=0 // pred_check_branch
    %31 = sbr.rel (0) target = $region29
  $region28: #{mm_model_forward.3} parent=0 // pred_region
    _
  $region29: #{mm_model_forward.3} parent=0 // pred_fallthru
    _
  // Predicated region
  $region30: #{mm_model_forward.3} parent=0 // pred_check
    _
  $region31: #{mm_model_forward.3} parent=0 // pred_check_branch
    %33 = sbr.rel (0) target = $region33
  $region32: #{mm_model_forward.3} parent=0 // pred_region
    _
  $region33: #{mm_model_forward.3} parent=0 // pred_fallthru
    _
  // Predicated region
  $region34: #{mm_model_forward.3} parent=0 // pred_check
    _
  $region35: #{mm_model_forward.3} parent=0 // pred_check_branch
    %35 = sbr.rel (0) target = $region37
  $region36: #{mm_model_forward.3} parent=0 // pred_region
    _
  $region37: #{mm_model_forward.3} parent=0 // pred_fallthru
    _
  // Predicated region
  $region38: #{mm_model_forward.3} parent=0 // pred_check
    _
  $region39: #{mm_model_forward.3} parent=0 // pred_check_branch
    %37 = sbr.rel (0) target = $region41
  $region40: #{mm_model_forward.3} parent=0 // pred_region
    _
  $region41: #{mm_model_forward.3} parent=0 // pred_fallthru
    _
  // Predicated region
  $region42: #{mm_model_forward.3} parent=0 // pred_check
    _
  $region43: #{mm_model_forward.3} parent=0 // pred_check_branch
    %39 = sbr.rel (0) target = $region45
  $region44: #{mm_model_forward.3} parent=0 // pred_region
    _
  $region45: #{mm_model_forward.3} parent=0 // pred_fallthru
    _
  // Predicated region
  $region46: #{mm_model_forward.3} parent=0 // pred_check
    _
  $region47: #{mm_model_forward.3} parent=0 // pred_check_branch
    %41 = sbr.rel (0) target = $region49
  $region48: #{mm_model_forward.3} parent=0 // pred_region
    _
  $region49: #{mm_model_forward.3} parent=0 // pred_fallthru
    _
  // Predicated region
  $region50: #{mm_model_forward.3} parent=0 // pred_check
    _
  $region51: #{mm_model_forward.3} parent=0 // pred_check_branch
    %43 = sbr.rel (0) target = $region53
  $region52: #{mm_model_forward.3} parent=0 // pred_region
    _
  $region53: #{mm_model_forward.3} parent=0 // pred_fallthru
    _
  %v45 = vld [vmem:[%s0] sm:$0xff]
  %v46 = vld [vmem:[%s0 + $0x8] sm:$0xf]
  %v49 = vcombine.high %v45, %v45
  %v51 = vunpack.c.l.s4 1983009808
  %v52 = vunpack.c.0.s8 %v51
  %v53 = vlaneseq
  %v54 = vshrl.u32 %v53, 7
  %v55 = vsub.s32 %v52, %v54
  %v56 = vrot.slane %v45, %v55
  %v58 = vunpack.c.l.s4 1983009808
  %v59 = vunpack.c.0.s8 %v58
  %v60 = vlaneseq
  %v61 = vshrl.u32 %v60, 7
  %v62 = vsub.s32 %v59, %v61
  %v63 = vrot.slane %v49, %v62
  %v64 = vcombine.high %v56, %v56
  %v65 = vcombine.high %v63, %v63
  %v67 = vunpack.c.l.s4 1983009808
  %v68 = vunpack.c.0.s8 %v67
  %v69 = vlaneseq
  %v70 = vshrl.u32 %v69, 7
  %v71 = vsub.s32 %v68, %v70
  %v72 = vrot.slane %v46, %v71
  %v73 = vcombine.high %v72, %v72
  %v80 = vpack.c.bf16 %v56, %v56
  %v81 = vpack.c.bf16 %v64, %v64
  %v82 = vpack.c.bf16 %v63, %v63
  %v83 = vpack.c.bf16 %v65, %v65
  %v84 = vpack.c.bf16 %v72, %v72
  %v85 = vpack.c.bf16 %v73, %v73
  %v86 = vld [vmem:[%s3] sm:$0xff]
  %v87 = vld [vmem:[%s3 + $0x8] sm:$0xff]
  %v88 = vld [vmem:[%s3 + $0x10] sm:$0xff]
  %v89 = vld [vmem:[%s3 + $0x18] sm:$0xff]
  %v90 = vld [vmem:[%s3 + $0x20] sm:$0xff]
  %v91 = vld [vmem:[%s3 + $0x28] sm:$0xff]
  %v92 = vld [vmem:[%s3 + $0x30] sm:$0xff]
  %v93 = vld [vmem:[%s3 + $0x38] sm:$0xff]
  %v94 = vld [vmem:[%s3 + $0x40] sm:$0xff]
  %v95 = vld [vmem:[%s3 + $0x48] sm:$0xff]
  %v96 = vld [vmem:[%s3 + $0x50] sm:$0xff]
  %v97 = vld [vmem:[%s3 + $0x58] sm:$0xff]
  %v98 = vld [vmem:[%s3 + $0x60] sm:$0xff]
  %v99 = vld [vmem:[%s3 + $0x68] sm:$0xff]
  %v100 = vld [vmem:[%s3 + $0x70] sm:$0xff]
  %v101 = vld [vmem:[%s3 + $0x78] sm:$0xff]
  %v102 = vld [vmem:[%s3 + $0x80] sm:$0xff]
  %v103 = vld [vmem:[%s3 + $0x88] sm:$0xff]
  %v104 = vld [vmem:[%s3 + $0x90] sm:$0xff]
  %v105 = vld [vmem:[%s3 + $0x98] sm:$0xff]
  %v106 = vld [vmem:[%s3 + $0xa0] sm:$0xff]
  %v107 = vld [vmem:[%s3 + $0xa8] sm:$0xff]
  %v108 = vld [vmem:[%s3 + $0xb0] sm:$0xff]
  %v109 = vld [vmem:[%s3 + $0xb8] sm:$0xff]
  %v110 = vld [vmem:[%s3 + $0xc0] sm:$0xff]
  %v111 = vld [vmem:[%s3 + $0xc8] sm:$0xff]
  %v112 = vld [vmem:[%s3 + $0xd0] sm:$0xff]
  %v113 = vld [vmem:[%s3 + $0xd8] sm:$0xff]
  %v114 = vld [vmem:[%s3 + $0xe0] sm:$0xff]
  %v115 = vld [vmem:[%s3 + $0xe8] sm:$0xff]
  %v116 = vld [vmem:[%s3 + $0xf0] sm:$0xff]
  %v117 = vld [vmem:[%s3 + $0xf8] sm:$0xff]
  %v118 = vld [vmem:[%s3 + $0x100] sm:$0xff]
  %v119 = vld [vmem:[%s3 + $0x108] sm:$0xff]
  %v120 = vld [vmem:[%s3 + $0x110] sm:$0xff]
  %v121 = vld [vmem:[%s3 + $0x118] sm:$0xff]
  %v122 = vld [vmem:[%s3 + $0x120] sm:$0xff]
  %v123 = vld [vmem:[%s3 + $0x128] sm:$0xff]
  %v124 = vld [vmem:[%s3 + $0x130] sm:$0xff]
  %v125 = vld [vmem:[%s3 + $0x138] sm:$0xff]
  %v126 = vld [vmem:[%s3 + $0x140] sm:$0xff]
  %v127 = vld [vmem:[%s3 + $0x148] sm:$0xff]
  %v128 = vld [vmem:[%s3 + $0x150] sm:$0xff]
  %v129 = vld [vmem:[%s3 + $0x158] sm:$0xff]
  %v130 = vld [vmem:[%s3 + $0x160] sm:$0xff]
  %v131 = vld [vmem:[%s3 + $0x168] sm:$0xff]
  %v132 = vld [vmem:[%s3 + $0x170] sm:$0xff]
  %v133 = vld [vmem:[%s3 + $0x178] sm:$0xff]
  %v134 = vld [vmem:[%s3 + $0x180] sm:$0xff]
  %v135 = vld [vmem:[%s3 + $0x188] sm:$0xff]
  %v136 = vld [vmem:[%s3 + $0x190] sm:$0xff]
  %v137 = vld [vmem:[%s3 + $0x198] sm:$0xff]
  %v138 = vld [vmem:[%s3 + $0x1a0] sm:$0xff]
  %v139 = vld [vmem:[%s3 + $0x1a8] sm:$0xff]
  %v140 = vld [vmem:[%s3 + $0x1b0] sm:$0xff]
  %v141 = vld [vmem:[%s3 + $0x1b8] sm:$0xff]
  %v142 = vld [vmem:[%s3 + $0x1c0] sm:$0xff]
  %v143 = vld [vmem:[%s3 + $0x1c8] sm:$0xff]
  %v144 = vld [vmem:[%s3 + $0x1d0] sm:$0xff]
  %v145 = vld [vmem:[%s3 + $0x1d8] sm:$0xff]
  %v146 = vld [vmem:[%s3 + $0x1e0] sm:$0xff]
  %v147 = vld [vmem:[%s3 + $0x1e8] sm:$0xff]
  %v148 = vld [vmem:[%s3 + $0x1f0] sm:$0xff]
  %v149 = vld [vmem:[%s3 + $0x1f8] sm:$0xff]
  %v150 = vld [vmem:[%s3 + $0x200] sm:$0xff]
  %v151 = vld [vmem:[%s3 + $0x208] sm:$0xff]
  %v152 = vld [vmem:[%s3 + $0x210] sm:$0xff]
  %v153 = vld [vmem:[%s3 + $0x218] sm:$0xff]
  %v154 = vld [vmem:[%s3 + $0x220] sm:$0xff]
  %v155 = vld [vmem:[%s3 + $0x228] sm:$0xff]
  %v156 = vld [vmem:[%s3 + $0x230] sm:$0xff]
  %v157 = vld [vmem:[%s3 + $0x238] sm:$0xff]
  %v158 = vld [vmem:[%s3 + $0x240] sm:$0xff]
  %v159 = vld [vmem:[%s3 + $0x248] sm:$0xff]
  %v160 = vld [vmem:[%s3 + $0x250] sm:$0xff]
  %v161 = vld [vmem:[%s3 + $0x258] sm:$0xff]
  %v162 = vld [vmem:[%s3 + $0x260] sm:$0xff]
  %v163 = vld [vmem:[%s3 + $0x268] sm:$0xff]
  %v164 = vld [vmem:[%s3 + $0x270] sm:$0xff]
  %v165 = vld [vmem:[%s3 + $0x278] sm:$0xff]
  %v166 = vld [vmem:[%s3 + $0x280] sm:$0xff]
  %v167 = vld [vmem:[%s3 + $0x288] sm:$0xff]
  %v168 = vld [vmem:[%s3 + $0x290] sm:$0xff]
  %v169 = vld [vmem:[%s3 + $0x298] sm:$0xff]
  %v170 = vld [vmem:[%s3 + $0x2a0] sm:$0xff]
  %v171 = vld [vmem:[%s3 + $0x2a8] sm:$0xff]
  %v172 = vld [vmem:[%s3 + $0x2b0] sm:$0xff]
  %v173 = vld [vmem:[%s3 + $0x2b8] sm:$0xff]
  %v174 = vld [vmem:[%s3 + $0x2c0] sm:$0xff]
  %v175 = vld [vmem:[%s3 + $0x2c8] sm:$0xff]
  %v176 = vld [vmem:[%s3 + $0x2d0] sm:$0xff]
  %v177 = vld [vmem:[%s3 + $0x2d8] sm:$0xff]
  %v178 = vld [vmem:[%s3 + $0x2e0] sm:$0xff]
  %v179 = vld [vmem:[%s3 + $0x2e8] sm:$0xff]
  %v180 = vld [vmem:[%s3 + $0x2f0] sm:$0xff]
  %v181 = vld [vmem:[%s3 + $0x2f8] sm:$0xff]
  %v182 = vld [vmem:[%s3 + $0x300] sm:$0xff]
  %v183 = vld [vmem:[%s3 + $0x308] sm:$0xff]
  %v184 = vld [vmem:[%s3 + $0x310] sm:$0xff]
  %v185 = vld [vmem:[%s3 + $0x318] sm:$0xff]
  %v186 = vld [vmem:[%s3 + $0x320] sm:$0xff]
  %v187 = vld [vmem:[%s3 + $0x328] sm:$0xff]
  %v188 = vld [vmem:[%s3 + $0x330] sm:$0xff]
  %v189 = vld [vmem:[%s3 + $0x338] sm:$0xff]
  %v190 = vld [vmem:[%s3 + $0x340] sm:$0xff]
  %v191 = vld [vmem:[%s3 + $0x348] sm:$0xff]
  %v192 = vld [vmem:[%s3 + $0x350] sm:$0xff]
  %v193 = vld [vmem:[%s3 + $0x358] sm:$0xff]
  %v194 = vld [vmem:[%s3 + $0x360] sm:$0xff]
  %v195 = vld [vmem:[%s3 + $0x368] sm:$0xff]
  %v196 = vld [vmem:[%s3 + $0x370] sm:$0xff]
  %v197 = vld [vmem:[%s3 + $0x378] sm:$0xff]
  %v198 = vld [vmem:[%s3 + $0x380] sm:$0xff]
  %v199 = vld [vmem:[%s3 + $0x388] sm:$0xff]
  %v200 = vld [vmem:[%s3 + $0x390] sm:$0xff]
  %v201 = vld [vmem:[%s3 + $0x398] sm:$0xff]
  %v202 = vld [vmem:[%s3 + $0x3a0] sm:$0xff]
  %v203 = vld [vmem:[%s3 + $0x3a8] sm:$0xff]
  %v204 = vld [vmem:[%s3 + $0x3b0] sm:$0xff]
  %v205 = vld [vmem:[%s3 + $0x3b8] sm:$0xff]
  %v206 = vld [vmem:[%s3 + $0x3c0] sm:$0xff]
  %v207 = vld [vmem:[%s3 + $0x3c8] sm:$0xff]
  %v208 = vld [vmem:[%s3 + $0x3d0] sm:$0xff]
  %v209 = vld [vmem:[%s3 + $0x3d8] sm:$0xff]
  %v210 = vld [vmem:[%s3 + $0x3e0] sm:$0xff]
  %v211 = vld [vmem:[%s3 + $0x3e8] sm:$0xff]
  %v212 = vld [vmem:[%s3 + $0x3f0] sm:$0xff]
  %v213 = vld [vmem:[%s3 + $0x3f8] sm:$0xff]
  %v214 = vld [vmem:[%s3 + $0x400] sm:$0xff]
  %v215 = vld [vmem:[%s3 + $0x408] sm:$0xff]
  %v216 = vld [vmem:[%s3 + $0x410] sm:$0xff]
  %v217 = vld [vmem:[%s3 + $0x418] sm:$0xff]
  %v218 = vld [vmem:[%s3 + $0x420] sm:$0xff]
  %v219 = vld [vmem:[%s3 + $0x428] sm:$0xff]
  %v220 = vld [vmem:[%s3 + $0x430] sm:$0xff]
  %v221 = vld [vmem:[%s3 + $0x438] sm:$0xff]
  %v222 = vld [vmem:[%s3 + $0x440] sm:$0xff]
  %v223 = vld [vmem:[%s3 + $0x448] sm:$0xff]
  %v224 = vld [vmem:[%s3 + $0x450] sm:$0xff]
  %v225 = vld [vmem:[%s3 + $0x458] sm:$0xff]
  %v226 = vld [vmem:[%s3 + $0x460] sm:$0xff]
  %v227 = vld [vmem:[%s3 + $0x468] sm:$0xff]
  %v228 = vld [vmem:[%s3 + $0x470] sm:$0xff]
  %v229 = vld [vmem:[%s3 + $0x478] sm:$0xff]
  %v230 = vld [vmem:[%s3 + $0x480] sm:$0xff]
  %v231 = vld [vmem:[%s3 + $0x488] sm:$0xff]
  %v232 = vld [vmem:[%s3 + $0x490] sm:$0xff]
  %v233 = vld [vmem:[%s3 + $0x498] sm:$0xff]
  %v234 = vld [vmem:[%s3 + $0x4a0] sm:$0xff]
  %v235 = vld [vmem:[%s3 + $0x4a8] sm:$0xff]
  %v236 = vld [vmem:[%s3 + $0x4b0] sm:$0xff]
  %v237 = vld [vmem:[%s3 + $0x4b8] sm:$0xff]
  %v238 = vld [vmem:[%s3 + $0x4c0] sm:$0xff]
  %v239 = vld [vmem:[%s3 + $0x4c8] sm:$0xff]
  %v240 = vld [vmem:[%s3 + $0x4d0] sm:$0xff]
  %v241 = vld [vmem:[%s3 + $0x4d8] sm:$0xff]
  %v242 = vld [vmem:[%s3 + $0x4e0] sm:$0xff]
  %v243 = vld [vmem:[%s3 + $0x4e8] sm:$0xff]
  %v244 = vld [vmem:[%s3 + $0x4f0] sm:$0xff]
  %v245 = vld [vmem:[%s3 + $0x4f8] sm:$0xff]
  %v246 = vld [vmem:[%s3 + $0x500] sm:$0xff]
  %v247 = vld [vmem:[%s3 + $0x508] sm:$0xff]
  %v248 = vld [vmem:[%s3 + $0x510] sm:$0xff]
  %v249 = vld [vmem:[%s3 + $0x518] sm:$0xff]
  %v250 = vld [vmem:[%s3 + $0x520] sm:$0xff]
  %v251 = vld [vmem:[%s3 + $0x528] sm:$0xff]
  %v252 = vld [vmem:[%s3 + $0x530] sm:$0xff]
  %v253 = vld [vmem:[%s3 + $0x538] sm:$0xff]
  %v254 = vld [vmem:[%s3 + $0x540] sm:$0xff]
  %v255 = vld [vmem:[%s3 + $0x548] sm:$0xff]
  %v256 = vld [vmem:[%s3 + $0x550] sm:$0xff]
  %v257 = vld [vmem:[%s3 + $0x558] sm:$0xff]
  %v258 = vld [vmem:[%s3 + $0x560] sm:$0xff]
  %v259 = vld [vmem:[%s3 + $0x568] sm:$0xff]
  %v260 = vld [vmem:[%s3 + $0x570] sm:$0xff]
  %v261 = vld [vmem:[%s3 + $0x578] sm:$0xff]
  %v262 = vld [vmem:[%s3 + $0x580] sm:$0xff]
  %v263 = vld [vmem:[%s3 + $0x588] sm:$0xff]
  %v264 = vld [vmem:[%s3 + $0x590] sm:$0xff]
  %v265 = vld [vmem:[%s3 + $0x598] sm:$0xff]
  %v266 = vld [vmem:[%s3 + $0x5a0] sm:$0xff]
  %v267 = vld [vmem:[%s3 + $0x5a8] sm:$0xff]
  %v268 = vld [vmem:[%s3 + $0x5b0] sm:$0xff]
  %v269 = vld [vmem:[%s3 + $0x5b8] sm:$0xff]
  %v270 = vld [vmem:[%s3 + $0x5c0] sm:$0xff]
  %v271 = vld [vmem:[%s3 + $0x5c8] sm:$0xff]
  %v272 = vld [vmem:[%s3 + $0x5d0] sm:$0xff]
  %v273 = vld [vmem:[%s3 + $0x5d8] sm:$0xff]
  %v274 = vld [vmem:[%s3 + $0x5e0] sm:$0xff]
  %v275 = vld [vmem:[%s3 + $0x5e8] sm:$0xff]
  %v276 = vld [vmem:[%s3 + $0x5f0] sm:$0xff]
  %v277 = vld [vmem:[%s3 + $0x5f8] sm:$0xff]
  %v278 = vld [vmem:[%s3 + $0x600] sm:$0xff]
  %v279 = vld [vmem:[%s3 + $0x608] sm:$0xff]
  %v280 = vld [vmem:[%s3 + $0x610] sm:$0xff]
  %v281 = vld [vmem:[%s3 + $0x618] sm:$0xff]
  %v282 = vld [vmem:[%s3 + $0x620] sm:$0xff]
  %v283 = vld [vmem:[%s3 + $0x628] sm:$0xff]
  %v284 = vld [vmem:[%s3 + $0x630] sm:$0xff]
  %v285 = vld [vmem:[%s3 + $0x638] sm:$0xff]
  %v286 = vld [vmem:[%s3 + $0x640] sm:$0xff]
  %v287 = vld [vmem:[%s3 + $0x648] sm:$0xff]
  %v288 = vld [vmem:[%s3 + $0x650] sm:$0xff]
  %v289 = vld [vmem:[%s3 + $0x658] sm:$0xff]
  %v290 = vld [vmem:[%s3 + $0x660] sm:$0xff]
  %v291 = vld [vmem:[%s3 + $0x668] sm:$0xff]
  %v292 = vld [vmem:[%s3 + $0x670] sm:$0xff]
  %v293 = vld [vmem:[%s3 + $0x678] sm:$0xff]
  %v294 = vld [vmem:[%s3 + $0x680] sm:$0xff]
  %v295 = vld [vmem:[%s3 + $0x688] sm:$0xff]
  %v296 = vld [vmem:[%s3 + $0x690] sm:$0xff]
  %v297 = vld [vmem:[%s3 + $0x698] sm:$0xff]
  %v298 = vld [vmem:[%s3 + $0x6a0] sm:$0xff]
  %v299 = vld [vmem:[%s3 + $0x6a8] sm:$0xff]
  %v300 = vld [vmem:[%s3 + $0x6b0] sm:$0xff]
  %v301 = vld [vmem:[%s3 + $0x6b8] sm:$0xff]
  %v302 = vld [vmem:[%s3 + $0x6c0] sm:$0xff]
  %v303 = vld [vmem:[%s3 + $0x6c8] sm:$0xff]
  %v304 = vld [vmem:[%s3 + $0x6d0] sm:$0xff]
  %v305 = vld [vmem:[%s3 + $0x6d8] sm:$0xff]
  %v306 = vld [vmem:[%s3 + $0x6e0] sm:$0xff]
  %v307 = vld [vmem:[%s3 + $0x6e8] sm:$0xff]
  %v308 = vld [vmem:[%s3 + $0x6f0] sm:$0xff]
  %v309 = vld [vmem:[%s3 + $0x6f8] sm:$0xff]
  %v310 = vld [vmem:[%s3 + $0x700] sm:$0xff]
  %v311 = vld [vmem:[%s3 + $0x708] sm:$0xff]
  %v312 = vld [vmem:[%s3 + $0x710] sm:$0xff]
  %v313 = vld [vmem:[%s3 + $0x718] sm:$0xff]
  %v314 = vld [vmem:[%s3 + $0x720] sm:$0xff]
  %v315 = vld [vmem:[%s3 + $0x728] sm:$0xff]
  %v316 = vld [vmem:[%s3 + $0x730] sm:$0xff]
  %v317 = vld [vmem:[%s3 + $0x738] sm:$0xff]
  %v318 = vld [vmem:[%s3 + $0x740] sm:$0xff]
  %v319 = vld [vmem:[%s3 + $0x748] sm:$0xff]
  %v320 = vld [vmem:[%s3 + $0x750] sm:$0xff]
  %v321 = vld [vmem:[%s3 + $0x758] sm:$0xff]
  %v322 = vld [vmem:[%s3 + $0x760] sm:$0xff]
  %v323 = vld [vmem:[%s3 + $0x768] sm:$0xff]
  %v324 = vld [vmem:[%s3 + $0x770] sm:$0xff]
  %v325 = vld [vmem:[%s3 + $0x778] sm:$0xff]
  %v326 = vld [vmem:[%s3 + $0x780] sm:$0xff]
  %v327 = vld [vmem:[%s3 + $0x788] sm:$0xff]
  %v328 = vld [vmem:[%s3 + $0x790] sm:$0xff]
  %v329 = vld [vmem:[%s3 + $0x798] sm:$0xff]
  %v330 = vld [vmem:[%s3 + $0x7a0] sm:$0xff]
  %v331 = vld [vmem:[%s3 + $0x7a8] sm:$0xff]
  %v332 = vld [vmem:[%s3 + $0x7b0] sm:$0xff]
  %v333 = vld [vmem:[%s3 + $0x7b8] sm:$0xff]
  %v334 = vld [vmem:[%s3 + $0x7c0] sm:$0xff]
  %v335 = vld [vmem:[%s3 + $0x7c8] sm:$0xff]
  %v336 = vld [vmem:[%s3 + $0x7d0] sm:$0xff]
  %v337 = vld [vmem:[%s3 + $0x7d8] sm:$0xff]
  %v338 = vld [vmem:[%s3 + $0x7e0] sm:$0xff]
  %v339 = vld [vmem:[%s3 + $0x7e8] sm:$0xff]
  %v340 = vld [vmem:[%s3 + $0x7f0] sm:$0xff]
  %v341 = vld [vmem:[%s3 + $0x7f8] sm:$0xff]
  %v342 = vld [vmem:[%s3 + $0x800] sm:$0xff]
  %v343 = vld [vmem:[%s3 + $0x808] sm:$0xff]
  %v344 = vld [vmem:[%s3 + $0x810] sm:$0xff]
  %v345 = vld [vmem:[%s3 + $0x818] sm:$0xff]
  %v346 = vld [vmem:[%s3 + $0x820] sm:$0xff]
  %v347 = vld [vmem:[%s3 + $0x828] sm:$0xff]
  %v348 = vld [vmem:[%s3 + $0x830] sm:$0xff]
  %v349 = vld [vmem:[%s3 + $0x838] sm:$0xff]
  %v350 = vld [vmem:[%s3 + $0x840] sm:$0xff]
  %v351 = vld [vmem:[%s3 + $0x848] sm:$0xff]
  %v352 = vld [vmem:[%s3 + $0x850] sm:$0xff]
  %v353 = vld [vmem:[%s3 + $0x858] sm:$0xff]
  %v354 = vld [vmem:[%s3 + $0x860] sm:$0xff]
  %v355 = vld [vmem:[%s3 + $0x868] sm:$0xff]
  %v356 = vld [vmem:[%s3 + $0x870] sm:$0xff]
  %v357 = vld [vmem:[%s3 + $0x878] sm:$0xff]
  %v358 = vld [vmem:[%s3 + $0x880] sm:$0xff]
  %v359 = vld [vmem:[%s3 + $0x888] sm:$0xff]
  %v360 = vld [vmem:[%s3 + $0x890] sm:$0xff]
  %v361 = vld [vmem:[%s3 + $0x898] sm:$0xff]
  %v362 = vld [vmem:[%s3 + $0x8a0] sm:$0xff]
  %v363 = vld [vmem:[%s3 + $0x8a8] sm:$0xff]
  %v364 = vld [vmem:[%s3 + $0x8b0] sm:$0xff]
  %v365 = vld [vmem:[%s3 + $0x8b8] sm:$0xff]
  %v366 = vld [vmem:[%s3 + $0x8c0] sm:$0xff]
  %v367 = vld [vmem:[%s3 + $0x8c8] sm:$0xff]
  %v368 = vld [vmem:[%s3 + $0x8d0] sm:$0xff]
  %v369 = vld [vmem:[%s3 + $0x8d8] sm:$0xff]
  %v370 = vld [vmem:[%s3 + $0x8e0] sm:$0xff]
  %v371 = vld [vmem:[%s3 + $0x8e8] sm:$0xff]
  %v372 = vld [vmem:[%s3 + $0x8f0] sm:$0xff]
  %v373 = vld [vmem:[%s3 + $0x8f8] sm:$0xff]
  %v374 = vld [vmem:[%s4] sm:$0x3f]
  %v376 = vlaneseq
  %v377 = vshrl.u32 %v376, 7
  %v378 = vsub.s32 0, %v377
  %v379 = vrot.slane %v374, %v378
  %v380 = vlaneseq
  %v381 = vshrl.u32 %v380, 7
  %v382 = vsub.s32 1, %v381
  %v383 = vrot.slane %v374, %v382
  %v384 = vlaneseq
  %v385 = vshrl.u32 %v384, 7
  %v386 = vsub.s32 2, %v385
  %v387 = vrot.slane %v374, %v386
  %v388 = vlaneseq
  %v389 = vshrl.u32 %v388, 7
  %v390 = vsub.s32 3, %v389
  %v391 = vrot.slane %v374, %v390
  %v392 = vlaneseq
  %v393 = vshrl.u32 %v392, 7
  %v394 = vsub.s32 4, %v393
  %v395 = vrot.slane %v374, %v394
  %v396 = vlaneseq
  %v397 = vshrl.u32 %v396, 7
  %v398 = vsub.s32 5, %v397
  %v399 = vrot.slane %v374, %v398
  %v694 = vunpack.c.l.b16 %v86
  %v695 = vunpack.c.h.b16 %v86
  %v696 = vunpack.c.l.b16 %v87
  %v697 = vunpack.c.h.b16 %v87
  %v698 = vunpack.c.l.b16 %v88
  %v699 = vunpack.c.h.b16 %v88
  %v700 = vunpack.c.l.b16 %v89
  %v701 = vunpack.c.h.b16 %v89
  %v702 = vunpack.c.l.b16 %v90
  %v703 = vunpack.c.h.b16 %v90
  %v704 = vunpack.c.l.b16 %v91
  %v705 = vunpack.c.h.b16 %v91
  %v706 = vunpack.c.l.b16 %v92
  %v707 = vunpack.c.h.b16 %v92
  %v708 = vunpack.c.l.b16 %v93
  %v709 = vunpack.c.h.b16 %v93
  %v710 = vunpack.c.l.b16 %v94
  %v711 = vunpack.c.h.b16 %v94
  %v712 = vunpack.c.l.b16 %v95
  %v713 = vunpack.c.h.b16 %v95
  %v714 = vunpack.c.l.b16 %v96
  %v715 = vunpack.c.h.b16 %v96
  %v716 = vunpack.c.l.b16 %v97
  %v717 = vunpack.c.h.b16 %v97
  %v718 = vunpack.c.l.b16 %v98
  %v719 = vunpack.c.h.b16 %v98
  %v720 = vunpack.c.l.b16 %v99
  %v721 = vunpack.c.h.b16 %v99
  %v722 = vunpack.c.l.b16 %v100
  %v723 = vunpack.c.h.b16 %v100
  %v724 = vunpack.c.l.b16 %v101
  %v725 = vunpack.c.h.b16 %v101
  %v726 = vunpack.c.l.b16 %v102
  %v727 = vunpack.c.h.b16 %v102
  %v728 = vunpack.c.l.b16 %v103
  %v729 = vunpack.c.h.b16 %v103
  %v730 = vunpack.c.l.b16 %v104
  %v731 = vunpack.c.h.b16 %v104
  %v732 = vunpack.c.l.b16 %v105
  %v733 = vunpack.c.h.b16 %v105
  %v734 = vunpack.c.l.b16 %v106
  %v735 = vunpack.c.h.b16 %v106
  %v736 = vunpack.c.l.b16 %v107
  %v737 = vunpack.c.h.b16 %v107
  %v738 = vunpack.c.l.b16 %v108
  %v739 = vunpack.c.h.b16 %v108
  %v740 = vunpack.c.l.b16 %v109
  %v741 = vunpack.c.h.b16 %v109
  %v742 = vunpack.c.l.b16 %v110
  %v743 = vunpack.c.h.b16 %v110
  %v744 = vunpack.c.l.b16 %v111
  %v745 = vunpack.c.h.b16 %v111
  %v746 = vunpack.c.l.b16 %v112
  %v747 = vunpack.c.h.b16 %v112
  %v748 = vunpack.c.l.b16 %v113
  %v749 = vunpack.c.h.b16 %v113
  %v750 = vunpack.c.l.b16 %v114
  %v751 = vunpack.c.h.b16 %v114
  %v752 = vunpack.c.l.b16 %v115
  %v753 = vunpack.c.h.b16 %v115
  %v754 = vunpack.c.l.b16 %v116
  %v755 = vunpack.c.h.b16 %v116
  %v756 = vunpack.c.l.b16 %v117
  %v757 = vunpack.c.h.b16 %v117
  %v758 = vunpack.c.l.b16 %v118
  %v759 = vunpack.c.h.b16 %v118
  %v760 = vunpack.c.l.b16 %v119
  %v761 = vunpack.c.h.b16 %v119
  %v762 = vunpack.c.l.b16 %v120
  %v763 = vunpack.c.h.b16 %v120
  %v764 = vunpack.c.l.b16 %v121
  %v765 = vunpack.c.h.b16 %v121
  %v766 = vunpack.c.l.b16 %v122
  %v767 = vunpack.c.h.b16 %v122
  %v768 = vunpack.c.l.b16 %v123
  %v769 = vunpack.c.h.b16 %v123
  %v770 = vunpack.c.l.b16 %v124
  %v771 = vunpack.c.h.b16 %v124
  %v772 = vunpack.c.l.b16 %v125
  %v773 = vunpack.c.h.b16 %v125
  %v774 = vunpack.c.l.b16 %v126
  %v775 = vunpack.c.h.b16 %v126
  %v776 = vunpack.c.l.b16 %v127
  %v777 = vunpack.c.h.b16 %v127
  %v778 = vunpack.c.l.b16 %v128
  %v779 = vunpack.c.h.b16 %v128
  %v780 = vunpack.c.l.b16 %v129
  %v781 = vunpack.c.h.b16 %v129
  %v782 = vunpack.c.l.b16 %v130
  %v783 = vunpack.c.h.b16 %v130
  %v784 = vunpack.c.l.b16 %v131
  %v785 = vunpack.c.h.b16 %v131
  %v786 = vunpack.c.l.b16 %v132
  %v787 = vunpack.c.h.b16 %v132
  %v788 = vunpack.c.l.b16 %v133
  %v789 = vunpack.c.h.b16 %v133
  %v790 = vunpack.c.l.b16 %v134
  %v791 = vunpack.c.h.b16 %v134
  %v792 = vunpack.c.l.b16 %v135
  %v793 = vunpack.c.h.b16 %v135
  %v794 = vunpack.c.l.b16 %v136
  %v795 = vunpack.c.h.b16 %v136
  %v796 = vunpack.c.l.b16 %v137
  %v797 = vunpack.c.h.b16 %v137
  %v798 = vunpack.c.l.b16 %v138
  %v799 = vunpack.c.h.b16 %v138
  %v800 = vunpack.c.l.b16 %v139
  %v801 = vunpack.c.h.b16 %v139
  %v802 = vunpack.c.l.b16 %v140
  %v803 = vunpack.c.h.b16 %v140
  %v804 = vunpack.c.l.b16 %v141
  %v805 = vunpack.c.h.b16 %v141
  %v806 = vunpack.c.l.b16 %v142
  %v807 = vunpack.c.h.b16 %v142
  %v808 = vunpack.c.l.b16 %v143
  %v809 = vunpack.c.h.b16 %v143
  %v810 = vunpack.c.l.b16 %v144
  %v811 = vunpack.c.h.b16 %v144
  %v812 = vunpack.c.l.b16 %v145
  %v813 = vunpack.c.h.b16 %v145
  %v814 = vunpack.c.l.b16 %v146
  %v815 = vunpack.c.h.b16 %v146
  %v816 = vunpack.c.l.b16 %v147
  %v817 = vunpack.c.h.b16 %v147
  %v818 = vunpack.c.l.b16 %v148
  %v819 = vunpack.c.h.b16 %v148
  %v820 = vunpack.c.l.b16 %v149
  %v821 = vunpack.c.h.b16 %v149
  %v822 = vunpack.c.l.b16 %v150
  %v823 = vunpack.c.h.b16 %v150
  %v824 = vunpack.c.l.b16 %v151
  %v825 = vunpack.c.h.b16 %v151
  %v826 = vunpack.c.l.b16 %v152
  %v827 = vunpack.c.h.b16 %v152
  %v828 = vunpack.c.l.b16 %v153
  %v829 = vunpack.c.h.b16 %v153
  %v830 = vunpack.c.l.b16 %v154
  %v831 = vunpack.c.h.b16 %v154
  %v832 = vunpack.c.l.b16 %v155
  %v833 = vunpack.c.h.b16 %v155
  %v834 = vunpack.c.l.b16 %v156
  %v835 = vunpack.c.h.b16 %v156
  %v836 = vunpack.c.l.b16 %v157
  %v837 = vunpack.c.h.b16 %v157
  %v838 = vunpack.c.l.b16 %v158
  %v839 = vunpack.c.h.b16 %v158
  %v840 = vunpack.c.l.b16 %v159
  %v841 = vunpack.c.h.b16 %v159
  %v842 = vunpack.c.l.b16 %v160
  %v843 = vunpack.c.h.b16 %v160
  %v844 = vunpack.c.l.b16 %v161
  %v845 = vunpack.c.h.b16 %v161
  %v846 = vunpack.c.l.b16 %v162
  %v847 = vunpack.c.h.b16 %v162
  %v848 = vunpack.c.l.b16 %v163
  %v849 = vunpack.c.h.b16 %v163
  %v850 = vunpack.c.l.b16 %v164
  %v851 = vunpack.c.h.b16 %v164
  %v852 = vunpack.c.l.b16 %v165
  %v853 = vunpack.c.h.b16 %v165
  %v854 = vunpack.c.l.b16 %v166
  %v855 = vunpack.c.h.b16 %v166
  %v856 = vunpack.c.l.b16 %v167
  %v857 = vunpack.c.h.b16 %v167
  %v858 = vunpack.c.l.b16 %v168
  %v859 = vunpack.c.h.b16 %v168
  %v860 = vunpack.c.l.b16 %v169
  %v861 = vunpack.c.h.b16 %v169
  %v862 = vunpack.c.l.b16 %v170
  %v863 = vunpack.c.h.b16 %v170
  %v864 = vunpack.c.l.b16 %v171
  %v865 = vunpack.c.h.b16 %v171
  %v866 = vunpack.c.l.b16 %v172
  %v867 = vunpack.c.h.b16 %v172
  %v868 = vunpack.c.l.b16 %v173
  %v869 = vunpack.c.h.b16 %v173
  %v870 = vunpack.c.l.b16 %v174
  %v871 = vunpack.c.h.b16 %v174
  %v872 = vunpack.c.l.b16 %v175
  %v873 = vunpack.c.h.b16 %v175
  %v874 = vunpack.c.l.b16 %v176
  %v875 = vunpack.c.h.b16 %v176
  %v876 = vunpack.c.l.b16 %v177
  %v877 = vunpack.c.h.b16 %v177
  %v878 = vunpack.c.l.b16 %v178
  %v879 = vunpack.c.h.b16 %v178
  %v880 = vunpack.c.l.b16 %v179
  %v881 = vunpack.c.h.b16 %v179
  %v882 = vunpack.c.l.b16 %v180
  %v883 = vunpack.c.h.b16 %v180
  %v884 = vunpack.c.l.b16 %v181
  %v885 = vunpack.c.h.b16 %v181
  %v886 = vunpack.c.l.b16 %v182
  %v887 = vunpack.c.h.b16 %v182
  %v888 = vunpack.c.l.b16 %v183
  %v889 = vunpack.c.h.b16 %v183
  %v890 = vunpack.c.l.b16 %v184
  %v891 = vunpack.c.h.b16 %v184
  %v892 = vunpack.c.l.b16 %v185
  %v893 = vunpack.c.h.b16 %v185
  %v894 = vunpack.c.l.b16 %v186
  %v895 = vunpack.c.h.b16 %v186
  %v896 = vunpack.c.l.b16 %v187
  %v897 = vunpack.c.h.b16 %v187
  %v898 = vunpack.c.l.b16 %v188
  %v899 = vunpack.c.h.b16 %v188
  %v900 = vunpack.c.l.b16 %v189
  %v901 = vunpack.c.h.b16 %v189
  %v902 = vunpack.c.l.b16 %v190
  %v903 = vunpack.c.h.b16 %v190
  %v904 = vunpack.c.l.b16 %v191
  %v905 = vunpack.c.h.b16 %v191
  %v906 = vunpack.c.l.b16 %v192
  %v907 = vunpack.c.h.b16 %v192
  %v908 = vunpack.c.l.b16 %v193
  %v909 = vunpack.c.h.b16 %v193
  %v910 = vunpack.c.l.b16 %v194
  %v911 = vunpack.c.h.b16 %v194
  %v912 = vunpack.c.l.b16 %v195
  %v913 = vunpack.c.h.b16 %v195
  %v914 = vunpack.c.l.b16 %v196
  %v915 = vunpack.c.h.b16 %v196
  %v916 = vunpack.c.l.b16 %v197
  %v917 = vunpack.c.h.b16 %v197
  %v918 = vunpack.c.l.b16 %v198
  %v919 = vunpack.c.h.b16 %v198
  %v920 = vunpack.c.l.b16 %v199
  %v921 = vunpack.c.h.b16 %v199
  %v922 = vunpack.c.l.b16 %v200
  %v923 = vunpack.c.h.b16 %v200
  %v924 = vunpack.c.l.b16 %v201
  %v925 = vunpack.c.h.b16 %v201
  %v926 = vunpack.c.l.b16 %v202
  %v927 = vunpack.c.h.b16 %v202
  %v928 = vunpack.c.l.b16 %v203
  %v929 = vunpack.c.h.b16 %v203
  %v930 = vunpack.c.l.b16 %v204
  %v931 = vunpack.c.h.b16 %v204
  %v932 = vunpack.c.l.b16 %v205
  %v933 = vunpack.c.h.b16 %v205
  %v934 = vunpack.c.l.b16 %v206
  %v935 = vunpack.c.h.b16 %v206
  %v936 = vunpack.c.l.b16 %v207
  %v937 = vunpack.c.h.b16 %v207
  %v938 = vunpack.c.l.b16 %v208
  %v939 = vunpack.c.h.b16 %v208
  %v940 = vunpack.c.l.b16 %v209
  %v941 = vunpack.c.h.b16 %v209
  %v942 = vunpack.c.l.b16 %v210
  %v943 = vunpack.c.h.b16 %v210
  %v944 = vunpack.c.l.b16 %v211
  %v945 = vunpack.c.h.b16 %v211
  %v946 = vunpack.c.l.b16 %v212
  %v947 = vunpack.c.h.b16 %v212
  %v948 = vunpack.c.l.b16 %v213
  %v949 = vunpack.c.h.b16 %v213
  %v950 = vunpack.c.l.b16 %v214
  %v951 = vunpack.c.h.b16 %v214
  %v952 = vunpack.c.l.b16 %v215
  %v953 = vunpack.c.h.b16 %v215
  %v954 = vunpack.c.l.b16 %v216
  %v955 = vunpack.c.h.b16 %v216
  %v956 = vunpack.c.l.b16 %v217
  %v957 = vunpack.c.h.b16 %v217
  %v958 = vunpack.c.l.b16 %v218
  %v959 = vunpack.c.h.b16 %v218
  %v960 = vunpack.c.l.b16 %v219
  %v961 = vunpack.c.h.b16 %v219
  %v962 = vunpack.c.l.b16 %v220
  %v963 = vunpack.c.h.b16 %v220
  %v964 = vunpack.c.l.b16 %v221
  %v965 = vunpack.c.h.b16 %v221
  %v966 = vunpack.c.l.b16 %v222
  %v967 = vunpack.c.h.b16 %v222
  %v968 = vunpack.c.l.b16 %v223
  %v969 = vunpack.c.h.b16 %v223
  %v970 = vunpack.c.l.b16 %v224
  %v971 = vunpack.c.h.b16 %v224
  %v972 = vunpack.c.l.b16 %v225
  %v973 = vunpack.c.h.b16 %v225
  %v974 = vunpack.c.l.b16 %v226
  %v975 = vunpack.c.h.b16 %v226
  %v976 = vunpack.c.l.b16 %v227
  %v977 = vunpack.c.h.b16 %v227
  %v978 = vunpack.c.l.b16 %v228
  %v979 = vunpack.c.h.b16 %v228
  %v980 = vunpack.c.l.b16 %v229
  %v981 = vunpack.c.h.b16 %v229
  %v982 = vunpack.c.l.b16 %v230
  %v983 = vunpack.c.h.b16 %v230
  %v984 = vunpack.c.l.b16 %v231
  %v985 = vunpack.c.h.b16 %v231
  %v986 = vunpack.c.l.b16 %v232
  %v987 = vunpack.c.h.b16 %v232
  %v988 = vunpack.c.l.b16 %v233
  %v989 = vunpack.c.h.b16 %v233
  %v990 = vunpack.c.l.b16 %v234
  %v991 = vunpack.c.h.b16 %v234
  %v992 = vunpack.c.l.b16 %v235
  %v993 = vunpack.c.h.b16 %v235
  %v994 = vunpack.c.l.b16 %v236
  %v995 = vunpack.c.h.b16 %v236
  %v996 = vunpack.c.l.b16 %v237
  %v997 = vunpack.c.h.b16 %v237
  %v998 = vunpack.c.l.b16 %v238
  %v999 = vunpack.c.h.b16 %v238
  %v1000 = vunpack.c.l.b16 %v239
  %v1001 = vunpack.c.h.b16 %v239
  %v1002 = vunpack.c.l.b16 %v240
  %v1003 = vunpack.c.h.b16 %v240
  %v1004 = vunpack.c.l.b16 %v241
  %v1005 = vunpack.c.h.b16 %v241
  %v1006 = vunpack.c.l.b16 %v242
  %v1007 = vunpack.c.h.b16 %v242
  %v1008 = vunpack.c.l.b16 %v243
  %v1009 = vunpack.c.h.b16 %v243
  %v1010 = vunpack.c.l.b16 %v244
  %v1011 = vunpack.c.h.b16 %v244
  %v1012 = vunpack.c.l.b16 %v245
  %v1013 = vunpack.c.h.b16 %v245
  %v1014 = vunpack.c.l.b16 %v246
  %v1015 = vunpack.c.h.b16 %v246
  %v1016 = vunpack.c.l.b16 %v247
  %v1017 = vunpack.c.h.b16 %v247
  %v1018 = vunpack.c.l.b16 %v248
  %v1019 = vunpack.c.h.b16 %v248
  %v1020 = vunpack.c.l.b16 %v249
  %v1021 = vunpack.c.h.b16 %v249
  %v1022 = vunpack.c.l.b16 %v250
  %v1023 = vunpack.c.h.b16 %v250
  %v1024 = vunpack.c.l.b16 %v251
  %v1025 = vunpack.c.h.b16 %v251
  %v1026 = vunpack.c.l.b16 %v252
  %v1027 = vunpack.c.h.b16 %v252
  %v1028 = vunpack.c.l.b16 %v253
  %v1029 = vunpack.c.h.b16 %v253
  %v1030 = vunpack.c.l.b16 %v254
  %v1031 = vunpack.c.h.b16 %v254
  %v1032 = vunpack.c.l.b16 %v255
  %v1033 = vunpack.c.h.b16 %v255
  %v1034 = vunpack.c.l.b16 %v256
  %v1035 = vunpack.c.h.b16 %v256
  %v1036 = vunpack.c.l.b16 %v257
  %v1037 = vunpack.c.h.b16 %v257
  %v1038 = vunpack.c.l.b16 %v258
  %v1039 = vunpack.c.h.b16 %v258
  %v1040 = vunpack.c.l.b16 %v259
  %v1041 = vunpack.c.h.b16 %v259
  %v1042 = vunpack.c.l.b16 %v260
  %v1043 = vunpack.c.h.b16 %v260
  %v1044 = vunpack.c.l.b16 %v261
  %v1045 = vunpack.c.h.b16 %v261
  %v1046 = vunpack.c.l.b16 %v262
  %v1047 = vunpack.c.h.b16 %v262
  %v1048 = vunpack.c.l.b16 %v263
  %v1049 = vunpack.c.h.b16 %v263
  %v1050 = vunpack.c.l.b16 %v264
  %v1051 = vunpack.c.h.b16 %v264
  %v1052 = vunpack.c.l.b16 %v265
  %v1053 = vunpack.c.h.b16 %v265
  %v1054 = vunpack.c.l.b16 %v266
  %v1055 = vunpack.c.h.b16 %v266
  %v1056 = vunpack.c.l.b16 %v267
  %v1057 = vunpack.c.h.b16 %v267
  %v1058 = vunpack.c.l.b16 %v268
  %v1059 = vunpack.c.h.b16 %v268
  %v1060 = vunpack.c.l.b16 %v269
  %v1061 = vunpack.c.h.b16 %v269
  %v1062 = vunpack.c.l.b16 %v270
  %v1063 = vunpack.c.h.b16 %v270
  %v1064 = vunpack.c.l.b16 %v271
  %v1065 = vunpack.c.h.b16 %v271
  %v1066 = vunpack.c.l.b16 %v272
  %v1067 = vunpack.c.h.b16 %v272
  %v1068 = vunpack.c.l.b16 %v273
  %v1069 = vunpack.c.h.b16 %v273
  %v1070 = vunpack.c.l.b16 %v274
  %v1071 = vunpack.c.h.b16 %v274
  %v1072 = vunpack.c.l.b16 %v275
  %v1073 = vunpack.c.h.b16 %v275
  %v1074 = vunpack.c.l.b16 %v276
  %v1075 = vunpack.c.h.b16 %v276
  %v1076 = vunpack.c.l.b16 %v277
  %v1077 = vunpack.c.h.b16 %v277
  %v1078 = vunpack.c.l.b16 %v278
  %v1079 = vunpack.c.h.b16 %v278
  %v1080 = vunpack.c.l.b16 %v279
  %v1081 = vunpack.c.h.b16 %v279
  %v1082 = vunpack.c.l.b16 %v280
  %v1083 = vunpack.c.h.b16 %v280
  %v1084 = vunpack.c.l.b16 %v281
  %v1085 = vunpack.c.h.b16 %v281
  %v1086 = vunpack.c.l.b16 %v282
  %v1087 = vunpack.c.h.b16 %v282
  %v1088 = vunpack.c.l.b16 %v283
  %v1089 = vunpack.c.h.b16 %v283
  %v1090 = vunpack.c.l.b16 %v284
  %v1091 = vunpack.c.h.b16 %v284
  %v1092 = vunpack.c.l.b16 %v285
  %v1093 = vunpack.c.h.b16 %v285
  %v1094 = vunpack.c.l.b16 %v286
  %v1095 = vunpack.c.h.b16 %v286
  %v1096 = vunpack.c.l.b16 %v287
  %v1097 = vunpack.c.h.b16 %v287
  %v1098 = vunpack.c.l.b16 %v288
  %v1099 = vunpack.c.h.b16 %v288
  %v1100 = vunpack.c.l.b16 %v289
  %v1101 = vunpack.c.h.b16 %v289
  %v1102 = vunpack.c.l.b16 %v290
  %v1103 = vunpack.c.h.b16 %v290
  %v1104 = vunpack.c.l.b16 %v291
  %v1105 = vunpack.c.h.b16 %v291
  %v1106 = vunpack.c.l.b16 %v292
  %v1107 = vunpack.c.h.b16 %v292
  %v1108 = vunpack.c.l.b16 %v293
  %v1109 = vunpack.c.h.b16 %v293
  %v1110 = vunpack.c.l.b16 %v294
  %v1111 = vunpack.c.h.b16 %v294
  %v1112 = vunpack.c.l.b16 %v295
  %v1113 = vunpack.c.h.b16 %v295
  %v1114 = vunpack.c.l.b16 %v296
  %v1115 = vunpack.c.h.b16 %v296
  %v1116 = vunpack.c.l.b16 %v297
  %v1117 = vunpack.c.h.b16 %v297
  %v1118 = vunpack.c.l.b16 %v298
  %v1119 = vunpack.c.h.b16 %v298
  %v1120 = vunpack.c.l.b16 %v299
  %v1121 = vunpack.c.h.b16 %v299
  %v1122 = vunpack.c.l.b16 %v300
  %v1123 = vunpack.c.h.b16 %v300
  %v1124 = vunpack.c.l.b16 %v301
  %v1125 = vunpack.c.h.b16 %v301
  %v1126 = vunpack.c.l.b16 %v302
  %v1127 = vunpack.c.h.b16 %v302
  %v1128 = vunpack.c.l.b16 %v303
  %v1129 = vunpack.c.h.b16 %v303
  %v1130 = vunpack.c.l.b16 %v304
  %v1131 = vunpack.c.h.b16 %v304
  %v1132 = vunpack.c.l.b16 %v305
  %v1133 = vunpack.c.h.b16 %v305
  %v1134 = vunpack.c.l.b16 %v306
  %v1135 = vunpack.c.h.b16 %v306
  %v1136 = vunpack.c.l.b16 %v307
  %v1137 = vunpack.c.h.b16 %v307
  %v1138 = vunpack.c.l.b16 %v308
  %v1139 = vunpack.c.h.b16 %v308
  %v1140 = vunpack.c.l.b16 %v309
  %v1141 = vunpack.c.h.b16 %v309
  %v1142 = vunpack.c.l.b16 %v310
  %v1143 = vunpack.c.h.b16 %v310
  %v1144 = vunpack.c.l.b16 %v311
  %v1145 = vunpack.c.h.b16 %v311
  %v1146 = vunpack.c.l.b16 %v312
  %v1147 = vunpack.c.h.b16 %v312
  %v1148 = vunpack.c.l.b16 %v313
  %v1149 = vunpack.c.h.b16 %v313
  %v1150 = vunpack.c.l.b16 %v314
  %v1151 = vunpack.c.h.b16 %v314
  %v1152 = vunpack.c.l.b16 %v315
  %v1153 = vunpack.c.h.b16 %v315
  %v1154 = vunpack.c.l.b16 %v316
  %v1155 = vunpack.c.h.b16 %v316
  %v1156 = vunpack.c.l.b16 %v317
  %v1157 = vunpack.c.h.b16 %v317
  %v1158 = vunpack.c.l.b16 %v318
  %v1159 = vunpack.c.h.b16 %v318
  %v1160 = vunpack.c.l.b16 %v319
  %v1161 = vunpack.c.h.b16 %v319
  %v1162 = vunpack.c.l.b16 %v320
  %v1163 = vunpack.c.h.b16 %v320
  %v1164 = vunpack.c.l.b16 %v321
  %v1165 = vunpack.c.h.b16 %v321
  %v1166 = vunpack.c.l.b16 %v322
  %v1167 = vunpack.c.h.b16 %v322
  %v1168 = vunpack.c.l.b16 %v323
  %v1169 = vunpack.c.h.b16 %v323
  %v1170 = vunpack.c.l.b16 %v324
  %v1171 = vunpack.c.h.b16 %v324
  %v1172 = vunpack.c.l.b16 %v325
  %v1173 = vunpack.c.h.b16 %v325
  %v1174 = vunpack.c.l.b16 %v326
  %v1175 = vunpack.c.h.b16 %v326
  %v1176 = vunpack.c.l.b16 %v327
  %v1177 = vunpack.c.h.b16 %v327
  %v1178 = vunpack.c.l.b16 %v328
  %v1179 = vunpack.c.h.b16 %v328
  %v1180 = vunpack.c.l.b16 %v329
  %v1181 = vunpack.c.h.b16 %v329
  %v1182 = vunpack.c.l.b16 %v330
  %v1183 = vunpack.c.h.b16 %v330
  %v1184 = vunpack.c.l.b16 %v331
  %v1185 = vunpack.c.h.b16 %v331
  %v1186 = vunpack.c.l.b16 %v332
  %v1187 = vunpack.c.h.b16 %v332
  %v1188 = vunpack.c.l.b16 %v333
  %v1189 = vunpack.c.h.b16 %v333
  %v1190 = vunpack.c.l.b16 %v334
  %v1191 = vunpack.c.h.b16 %v334
  %v1192 = vunpack.c.l.b16 %v335
  %v1193 = vunpack.c.h.b16 %v335
  %v1194 = vunpack.c.l.b16 %v336
  %v1195 = vunpack.c.h.b16 %v336
  %v1196 = vunpack.c.l.b16 %v337
  %v1197 = vunpack.c.h.b16 %v337
  %v1198 = vunpack.c.l.b16 %v338
  %v1199 = vunpack.c.h.b16 %v338
  %v1200 = vunpack.c.l.b16 %v339
  %v1201 = vunpack.c.h.b16 %v339
  %v1202 = vunpack.c.l.b16 %v340
  %v1203 = vunpack.c.h.b16 %v340
  %v1204 = vunpack.c.l.b16 %v341
  %v1205 = vunpack.c.h.b16 %v341
  %v1206 = vunpack.c.l.b16 %v342
  %v1207 = vunpack.c.h.b16 %v342
  %v1208 = vunpack.c.l.b16 %v343
  %v1209 = vunpack.c.h.b16 %v343
  %v1210 = vunpack.c.l.b16 %v344
  %v1211 = vunpack.c.h.b16 %v344
  %v1212 = vunpack.c.l.b16 %v345
  %v1213 = vunpack.c.h.b16 %v345
  %v1214 = vunpack.c.l.b16 %v346
  %v1215 = vunpack.c.h.b16 %v346
  %v1216 = vunpack.c.l.b16 %v347
  %v1217 = vunpack.c.h.b16 %v347
  %v1218 = vunpack.c.l.b16 %v348
  %v1219 = vunpack.c.h.b16 %v348
  %v1220 = vunpack.c.l.b16 %v349
  %v1221 = vunpack.c.h.b16 %v349
  %v1222 = vunpack.c.l.b16 %v350
  %v1223 = vunpack.c.h.b16 %v350
  %v1224 = vunpack.c.l.b16 %v351
  %v1225 = vunpack.c.h.b16 %v351
  %v1226 = vunpack.c.l.b16 %v352
  %v1227 = vunpack.c.h.b16 %v352
  %v1228 = vunpack.c.l.b16 %v353
  %v1229 = vunpack.c.h.b16 %v353
  %v1230 = vunpack.c.l.b16 %v354
  %v1231 = vunpack.c.h.b16 %v354
  %v1232 = vunpack.c.l.b16 %v355
  %v1233 = vunpack.c.h.b16 %v355
  %v1234 = vunpack.c.l.b16 %v356
  %v1235 = vunpack.c.h.b16 %v356
  %v1236 = vunpack.c.l.b16 %v357
  %v1237 = vunpack.c.h.b16 %v357
  %v1238 = vunpack.c.l.b16 %v358
  %v1239 = vunpack.c.h.b16 %v358
  %v1240 = vunpack.c.l.b16 %v359
  %v1241 = vunpack.c.h.b16 %v359
  %v1242 = vunpack.c.l.b16 %v360
  %v1243 = vunpack.c.h.b16 %v360
  %v1244 = vunpack.c.l.b16 %v361
  %v1245 = vunpack.c.h.b16 %v361
  %v1246 = vunpack.c.l.b16 %v362
  %v1247 = vunpack.c.h.b16 %v362
  %v1248 = vunpack.c.l.b16 %v363
  %v1249 = vunpack.c.h.b16 %v363
  %v1250 = vunpack.c.l.b16 %v364
  %v1251 = vunpack.c.h.b16 %v364
  %v1252 = vunpack.c.l.b16 %v365
  %v1253 = vunpack.c.h.b16 %v365
  %v1254 = vunpack.c.l.b16 %v366
  %v1255 = vunpack.c.h.b16 %v366
  %v1256 = vunpack.c.l.b16 %v367
  %v1257 = vunpack.c.h.b16 %v367
  %v1258 = vunpack.c.l.b16 %v368
  %v1259 = vunpack.c.h.b16 %v368
  %v1260 = vunpack.c.l.b16 %v369
  %v1261 = vunpack.c.h.b16 %v369
  %v1262 = vunpack.c.l.b16 %v370
  %v1263 = vunpack.c.h.b16 %v370
  %v1264 = vunpack.c.l.b16 %v371
  %v1265 = vunpack.c.h.b16 %v371
  %v1266 = vunpack.c.l.b16 %v372
  %v1267 = vunpack.c.h.b16 %v372
  %v1268 = vunpack.c.l.b16 %v373
  %v1269 = vunpack.c.h.b16 %v373
  %v1270 = vpack.c.b16 %v700, %v694
  %v1271 = vpack.c.b16 %v701, %v695
  %v1272 = vpack.c.b16 %v702, %v696
  %v1273 = vpack.c.b16 %v703, %v697
  %v1274 = vpack.c.b16 %v704, %v698
  %v1275 = vpack.c.b16 %v705, %v699
  %v1276 = vpack.c.b16 %v712, %v706
  %v1277 = vpack.c.b16 %v713, %v707
  %v1278 = vpack.c.b16 %v714, %v708
  %v1279 = vpack.c.b16 %v715, %v709
  %v1280 = vpack.c.b16 %v716, %v710
  %v1281 = vpack.c.b16 %v717, %v711
  %v1282 = vpack.c.b16 %v724, %v718
  %v1283 = vpack.c.b16 %v725, %v719
  %v1284 = vpack.c.b16 %v726, %v720
  %v1285 = vpack.c.b16 %v727, %v721
  %v1286 = vpack.c.b16 %v728, %v722
  %v1287 = vpack.c.b16 %v729, %v723
  %v1288 = vpack.c.b16 %v736, %v730
  %v1289 = vpack.c.b16 %v737, %v731
  %v1290 = vpack.c.b16 %v738, %v732
  %v1291 = vpack.c.b16 %v739, %v733
  %v1292 = vpack.c.b16 %v740, %v734
  %v1293 = vpack.c.b16 %v741, %v735
  %v1294 = vpack.c.b16 %v748, %v742
  %v1295 = vpack.c.b16 %v749, %v743
  %v1296 = vpack.c.b16 %v750, %v744
  %v1297 = vpack.c.b16 %v751, %v745
  %v1298 = vpack.c.b16 %v752, %v746
  %v1299 = vpack.c.b16 %v753, %v747
  %v1300 = vpack.c.b16 %v760, %v754
  %v1301 = vpack.c.b16 %v761, %v755
  %v1302 = vpack.c.b16 %v762, %v756
  %v1303 = vpack.c.b16 %v763, %v757
  %v1304 = vpack.c.b16 %v764, %v758
  %v1305 = vpack.c.b16 %v765, %v759
  %v1306 = vpack.c.b16 %v772, %v766
  %v1307 = vpack.c.b16 %v773, %v767
  %v1308 = vpack.c.b16 %v774, %v768
  %v1309 = vpack.c.b16 %v775, %v769
  %v1310 = vpack.c.b16 %v776, %v770
  %v1311 = vpack.c.b16 %v777, %v771
  %v1312 = vpack.c.b16 %v784, %v778
  %v1313 = vpack.c.b16 %v785, %v779
  %v1314 = vpack.c.b16 %v786, %v780
  %v1315 = vpack.c.b16 %v787, %v781
  %v1316 = vpack.c.b16 %v788, %v782
  %v1317 = vpack.c.b16 %v789, %v783
  %v1318 = vpack.c.b16 %v796, %v790
  %v1319 = vpack.c.b16 %v797, %v791
  %v1320 = vpack.c.b16 %v798, %v792
  %v1321 = vpack.c.b16 %v799, %v793
  %v1322 = vpack.c.b16 %v800, %v794
  %v1323 = vpack.c.b16 %v801, %v795
  %v1324 = vpack.c.b16 %v808, %v802
  %v1325 = vpack.c.b16 %v809, %v803
  %v1326 = vpack.c.b16 %v810, %v804
  %v1327 = vpack.c.b16 %v811, %v805
  %v1328 = vpack.c.b16 %v812, %v806
  %v1329 = vpack.c.b16 %v813, %v807
  %v1330 = vpack.c.b16 %v820, %v814
  %v1331 = vpack.c.b16 %v821, %v815
  %v1332 = vpack.c.b16 %v822, %v816
  %v1333 = vpack.c.b16 %v823, %v817
  %v1334 = vpack.c.b16 %v824, %v818
  %v1335 = vpack.c.b16 %v825, %v819
  %v1336 = vpack.c.b16 %v832, %v826
  %v1337 = vpack.c.b16 %v833, %v827
  %v1338 = vpack.c.b16 %v834, %v828
  %v1339 = vpack.c.b16 %v835, %v829
  %v1340 = vpack.c.b16 %v836, %v830
  %v1341 = vpack.c.b16 %v837, %v831
  %v1342 = vpack.c.b16 %v844, %v838
  %v1343 = vpack.c.b16 %v845, %v839
  %v1344 = vpack.c.b16 %v846, %v840
  %v1345 = vpack.c.b16 %v847, %v841
  %v1346 = vpack.c.b16 %v848, %v842
  %v1347 = vpack.c.b16 %v849, %v843
  %v1348 = vpack.c.b16 %v856, %v850
  %v1349 = vpack.c.b16 %v857, %v851
  %v1350 = vpack.c.b16 %v858, %v852
  %v1351 = vpack.c.b16 %v859, %v853
  %v1352 = vpack.c.b16 %v860, %v854
  %v1353 = vpack.c.b16 %v861, %v855
  %v1354 = vpack.c.b16 %v868, %v862
  %v1355 = vpack.c.b16 %v869, %v863
  %v1356 = vpack.c.b16 %v870, %v864
  %v1357 = vpack.c.b16 %v871, %v865
  %v1358 = vpack.c.b16 %v872, %v866
  %v1359 = vpack.c.b16 %v873, %v867
  %v1360 = vpack.c.b16 %v880, %v874
  %v1361 = vpack.c.b16 %v881, %v875
  %v1362 = vpack.c.b16 %v882, %v876
  %v1363 = vpack.c.b16 %v883, %v877
  %v1364 = vpack.c.b16 %v884, %v878
  %v1365 = vpack.c.b16 %v885, %v879
  %v1366 = vpack.c.b16 %v892, %v886
  %v1367 = vpack.c.b16 %v893, %v887
  %v1368 = vpack.c.b16 %v894, %v888
  %v1369 = vpack.c.b16 %v895, %v889
  %v1370 = vpack.c.b16 %v896, %v890
  %v1371 = vpack.c.b16 %v897, %v891
  %v1372 = vpack.c.b16 %v904, %v898
  %v1373 = vpack.c.b16 %v905, %v899
  %v1374 = vpack.c.b16 %v906, %v900
  %v1375 = vpack.c.b16 %v907, %v901
  %v1376 = vpack.c.b16 %v908, %v902
  %v1377 = vpack.c.b16 %v909, %v903
  %v1378 = vpack.c.b16 %v916, %v910
  %v1379 = vpack.c.b16 %v917, %v911
  %v1380 = vpack.c.b16 %v918, %v912
  %v1381 = vpack.c.b16 %v919, %v913
  %v1382 = vpack.c.b16 %v920, %v914
  %v1383 = vpack.c.b16 %v921, %v915
  %v1384 = vpack.c.b16 %v928, %v922
  %v1385 = vpack.c.b16 %v929, %v923
  %v1386 = vpack.c.b16 %v930, %v924
  %v1387 = vpack.c.b16 %v931, %v925
  %v1388 = vpack.c.b16 %v932, %v926
  %v1389 = vpack.c.b16 %v933, %v927
  %v1390 = vpack.c.b16 %v940, %v934
  %v1391 = vpack.c.b16 %v941, %v935
  %v1392 = vpack.c.b16 %v942, %v936
  %v1393 = vpack.c.b16 %v943, %v937
  %v1394 = vpack.c.b16 %v944, %v938
  %v1395 = vpack.c.b16 %v945, %v939
  %v1396 = vpack.c.b16 %v952, %v946
  %v1397 = vpack.c.b16 %v953, %v947
  %v1398 = vpack.c.b16 %v954, %v948
  %v1399 = vpack.c.b16 %v955, %v949
  %v1400 = vpack.c.b16 %v956, %v950
  %v1401 = vpack.c.b16 %v957, %v951
  %v1402 = vpack.c.b16 %v964, %v958
  %v1403 = vpack.c.b16 %v965, %v959
  %v1404 = vpack.c.b16 %v966, %v960
  %v1405 = vpack.c.b16 %v967, %v961
  %v1406 = vpack.c.b16 %v968, %v962
  %v1407 = vpack.c.b16 %v969, %v963
  %v1408 = vpack.c.b16 %v976, %v970
  %v1409 = vpack.c.b16 %v977, %v971
  %v1410 = vpack.c.b16 %v978, %v972
  %v1411 = vpack.c.b16 %v979, %v973
  %v1412 = vpack.c.b16 %v980, %v974
  %v1413 = vpack.c.b16 %v981, %v975
  %v1414 = vpack.c.b16 %v988, %v982
  %v1415 = vpack.c.b16 %v989, %v983
  %v1416 = vpack.c.b16 %v990, %v984
  %v1417 = vpack.c.b16 %v991, %v985
  %v1418 = vpack.c.b16 %v992, %v986
  %v1419 = vpack.c.b16 %v993, %v987
  %v1420 = vpack.c.b16 %v1000, %v994
  %v1421 = vpack.c.b16 %v1001, %v995
  %v1422 = vpack.c.b16 %v1002, %v996
  %v1423 = vpack.c.b16 %v1003, %v997
  %v1424 = vpack.c.b16 %v1004, %v998
  %v1425 = vpack.c.b16 %v1005, %v999
  %v1426 = vpack.c.b16 %v1012, %v1006
  %v1427 = vpack.c.b16 %v1013, %v1007
  %v1428 = vpack.c.b16 %v1014, %v1008
  %v1429 = vpack.c.b16 %v1015, %v1009
  %v1430 = vpack.c.b16 %v1016, %v1010
  %v1431 = vpack.c.b16 %v1017, %v1011
  %v1432 = vpack.c.b16 %v1024, %v1018
  %v1433 = vpack.c.b16 %v1025, %v1019
  %v1434 = vpack.c.b16 %v1026, %v1020
  %v1435 = vpack.c.b16 %v1027, %v1021
  %v1436 = vpack.c.b16 %v1028, %v1022
  %v1437 = vpack.c.b16 %v1029, %v1023
  %v1438 = vpack.c.b16 %v1036, %v1030
  %v1439 = vpack.c.b16 %v1037, %v1031
  %v1440 = vpack.c.b16 %v1038, %v1032
  %v1441 = vpack.c.b16 %v1039, %v1033
  %v1442 = vpack.c.b16 %v1040, %v1034
  %v1443 = vpack.c.b16 %v1041, %v1035
  %v1444 = vpack.c.b16 %v1048, %v1042
  %v1445 = vpack.c.b16 %v1049, %v1043
  %v1446 = vpack.c.b16 %v1050, %v1044
  %v1447 = vpack.c.b16 %v1051, %v1045
  %v1448 = vpack.c.b16 %v1052, %v1046
  %v1449 = vpack.c.b16 %v1053, %v1047
  %v1450 = vpack.c.b16 %v1060, %v1054
  %v1451 = vpack.c.b16 %v1061, %v1055
  %v1452 = vpack.c.b16 %v1062, %v1056
  %v1453 = vpack.c.b16 %v1063, %v1057
  %v1454 = vpack.c.b16 %v1064, %v1058
  %v1455 = vpack.c.b16 %v1065, %v1059
  %v1456 = vpack.c.b16 %v1072, %v1066
  %v1457 = vpack.c.b16 %v1073, %v1067
  %v1458 = vpack.c.b16 %v1074, %v1068
  %v1459 = vpack.c.b16 %v1075, %v1069
  %v1460 = vpack.c.b16 %v1076, %v1070
  %v1461 = vpack.c.b16 %v1077, %v1071
  %v1462 = vpack.c.b16 %v1084, %v1078
  %v1463 = vpack.c.b16 %v1085, %v1079
  %v1464 = vpack.c.b16 %v1086, %v1080
  %v1465 = vpack.c.b16 %v1087, %v1081
  %v1466 = vpack.c.b16 %v1088, %v1082
  %v1467 = vpack.c.b16 %v1089, %v1083
  %v1468 = vpack.c.b16 %v1096, %v1090
  %v1469 = vpack.c.b16 %v1097, %v1091
  %v1470 = vpack.c.b16 %v1098, %v1092
  %v1471 = vpack.c.b16 %v1099, %v1093
  %v1472 = vpack.c.b16 %v1100, %v1094
  %v1473 = vpack.c.b16 %v1101, %v1095
  %v1474 = vpack.c.b16 %v1108, %v1102
  %v1475 = vpack.c.b16 %v1109, %v1103
  %v1476 = vpack.c.b16 %v1110, %v1104
  %v1477 = vpack.c.b16 %v1111, %v1105
  %v1478 = vpack.c.b16 %v1112, %v1106
  %v1479 = vpack.c.b16 %v1113, %v1107
  %v1480 = vpack.c.b16 %v1120, %v1114
  %v1481 = vpack.c.b16 %v1121, %v1115
  %v1482 = vpack.c.b16 %v1122, %v1116
  %v1483 = vpack.c.b16 %v1123, %v1117
  %v1484 = vpack.c.b16 %v1124, %v1118
  %v1485 = vpack.c.b16 %v1125, %v1119
  %v1486 = vpack.c.b16 %v1132, %v1126
  %v1487 = vpack.c.b16 %v1133, %v1127
  %v1488 = vpack.c.b16 %v1134, %v1128
  %v1489 = vpack.c.b16 %v1135, %v1129
  %v1490 = vpack.c.b16 %v1136, %v1130
  %v1491 = vpack.c.b16 %v1137, %v1131
  %v1492 = vpack.c.b16 %v1144, %v1138
  %v1493 = vpack.c.b16 %v1145, %v1139
  %v1494 = vpack.c.b16 %v1146, %v1140
  %v1495 = vpack.c.b16 %v1147, %v1141
  %v1496 = vpack.c.b16 %v1148, %v1142
  %v1497 = vpack.c.b16 %v1149, %v1143
  %v1498 = vpack.c.b16 %v1156, %v1150
  %v1499 = vpack.c.b16 %v1157, %v1151
  %v1500 = vpack.c.b16 %v1158, %v1152
  %v1501 = vpack.c.b16 %v1159, %v1153
  %v1502 = vpack.c.b16 %v1160, %v1154
  %v1503 = vpack.c.b16 %v1161, %v1155
  %v1504 = vpack.c.b16 %v1168, %v1162
  %v1505 = vpack.c.b16 %v1169, %v1163
  %v1506 = vpack.c.b16 %v1170, %v1164
  %v1507 = vpack.c.b16 %v1171, %v1165
  %v1508 = vpack.c.b16 %v1172, %v1166
  %v1509 = vpack.c.b16 %v1173, %v1167
  %v1510 = vpack.c.b16 %v1180, %v1174
  %v1511 = vpack.c.b16 %v1181, %v1175
  %v1512 = vpack.c.b16 %v1182, %v1176
  %v1513 = vpack.c.b16 %v1183, %v1177
  %v1514 = vpack.c.b16 %v1184, %v1178
  %v1515 = vpack.c.b16 %v1185, %v1179
  %v1516 = vpack.c.b16 %v1192, %v1186
  %v1517 = vpack.c.b16 %v1193, %v1187
  %v1518 = vpack.c.b16 %v1194, %v1188
  %v1519 = vpack.c.b16 %v1195, %v1189
  %v1520 = vpack.c.b16 %v1196, %v1190
  %v1521 = vpack.c.b16 %v1197, %v1191
  %v1522 = vpack.c.b16 %v1204, %v1198
  %v1523 = vpack.c.b16 %v1205, %v1199
  %v1524 = vpack.c.b16 %v1206, %v1200
  %v1525 = vpack.c.b16 %v1207, %v1201
  %v1526 = vpack.c.b16 %v1208, %v1202
  %v1527 = vpack.c.b16 %v1209, %v1203
  %v1528 = vpack.c.b16 %v1216, %v1210
  %v1529 = vpack.c.b16 %v1217, %v1211
  %v1530 = vpack.c.b16 %v1218, %v1212
  %v1531 = vpack.c.b16 %v1219, %v1213
  %v1532 = vpack.c.b16 %v1220, %v1214
  %v1533 = vpack.c.b16 %v1221, %v1215
  %v1534 = vpack.c.b16 %v1228, %v1222
  %v1535 = vpack.c.b16 %v1229, %v1223
  %v1536 = vpack.c.b16 %v1230, %v1224
  %v1537 = vpack.c.b16 %v1231, %v1225
  %v1538 = vpack.c.b16 %v1232, %v1226
  %v1539 = vpack.c.b16 %v1233, %v1227
  %v1540 = vpack.c.b16 %v1240, %v1234
  %v1541 = vpack.c.b16 %v1241, %v1235
  %v1542 = vpack.c.b16 %v1242, %v1236
  %v1543 = vpack.c.b16 %v1243, %v1237
  %v1544 = vpack.c.b16 %v1244, %v1238
  %v1545 = vpack.c.b16 %v1245, %v1239
  %v1546 = vpack.c.b16 %v1252, %v1246
  %v1547 = vpack.c.b16 %v1253, %v1247
  %v1548 = vpack.c.b16 %v1254, %v1248
  %v1549 = vpack.c.b16 %v1255, %v1249
  %v1550 = vpack.c.b16 %v1256, %v1250
  %v1551 = vpack.c.b16 %v1257, %v1251
  %v1552 = vpack.c.b16 %v1264, %v1258
  %v1553 = vpack.c.b16 %v1265, %v1259
  %v1554 = vpack.c.b16 %v1266, %v1260
  %v1555 = vpack.c.b16 %v1267, %v1261
  %v1556 = vpack.c.b16 %v1268, %v1262
  %v1557 = vpack.c.b16 %v1269, %v1263
  %1846 = vmatprep.subr.bf16.mxu0 %v1271
  %1847 = vmatpush1.bf16.msra.mxu0 %v1270
  %1848 = vmatprep.subr.bf16.mxu0 %v1277
  %1849 = vmatpush1.bf16.msra.mxu0 %v1276
  %1850 = vmatprep.subr.bf16.mxu0 %v1283
  %1851 = vmatpush1.bf16.msra.mxu0 %v1282
  %1852 = vmatprep.subr.bf16.mxu0 %v1289
  %1853 = vmatpush1.bf16.msra.mxu0 %v1288
  %1854 = vmatprep.subr.bf16.mxu0 %v1295
  %1855 = vmatpush1.bf16.msra.mxu0 %v1294
  %1856 = vmatprep.subr.bf16.mxu0 %v1301
  %1857 = vmatpush1.bf16.msra.mxu0 %v1300
  %1858 = vmatprep.subr.bf16.mxu0 %v1307
  %1859 = vmatpush1.bf16.msra.mxu0 %v1306
  %1860 = vmatprep.subr.bf16.mxu0 %v1313
  %1861 = vmatpush1.bf16.msra.mxu0 %v1312
  %1862 = vmatprep.subr.bf16.mxu0 %v1319
  %1863 = vmatpush1.bf16.msra.mxu0 %v1318
  %1864 = vmatprep.subr.bf16.mxu0 %v1325
  %1865 = vmatpush1.bf16.msra.mxu0 %v1324
  %1866 = vmatprep.subr.bf16.mxu0 %v1331
  %1867 = vmatpush1.bf16.msra.mxu0 %v1330
  %1868 = vmatprep.subr.bf16.mxu0 %v1337
  %1869 = vmatpush1.bf16.msra.mxu0 %v1336
  %1870 = vmatprep.subr.bf16.mxu0 %v1343
  %1871 = vmatpush1.bf16.msra.mxu0 %v1342
  %1872 = vmatprep.subr.bf16.mxu0 %v1349
  %1873 = vmatpush1.bf16.msra.mxu0 %v1348
  %1874 = vmatprep.subr.bf16.mxu0 %v1355
  %1875 = vmatpush1.bf16.msra.mxu0 %v1354
  %1876 = vmatprep.subr.bf16.mxu0 %v1361
  %1877 = vmatpush1.bf16.msra.mxu0 %v1360
  %1878 = vmatprep.mubr.bf16.mxu0 %v81
  %1879 = vmatmul.mubr.bf16.gmra.mrb[0].mxu0 %v80
  %v1880 = vpop.f32.mrb[0].mxu0
  %v1881 = vadd.f32 %v379, %v1880
  %v1882 = vpop.f32.mrb[0].mxu0
  %v1883 = vadd.f32 %v383, %v1882
  %v1884 = vpop.f32.mrb[0].mxu0
  %v1885 = vpop.f32.mrb[0].mxu0
  %1886 = vdwg.mxu0
  %1887 = vmatprep.subr.bf16.mxu0 %v1367
  %1888 = vmatpush1.bf16.msra.mxu0 %v1366
  %1889 = vmatprep.subr.bf16.mxu0 %v1373
  %1890 = vmatpush1.bf16.msra.mxu0 %v1372
  %1891 = vmatprep.subr.bf16.mxu0 %v1379
  %1892 = vmatpush1.bf16.msra.mxu0 %v1378
  %1893 = vmatprep.subr.bf16.mxu0 %v1385
  %1894 = vmatpush1.bf16.msra.mxu0 %v1384
  %1895 = vmatprep.subr.bf16.mxu0 %v1391
  %1896 = vmatpush1.bf16.msra.mxu0 %v1390
  %1897 = vmatprep.subr.bf16.mxu0 %v1397
  %1898 = vmatpush1.bf16.msra.mxu0 %v1396
  %1899 = vmatprep.subr.bf16.mxu0 %v1403
  %1900 = vmatpush1.bf16.msra.mxu0 %v1402
  %1901 = vmatprep.subr.bf16.mxu0 %v1409
  %1902 = vmatpush1.bf16.msra.mxu0 %v1408
  %1903 = vmatprep.subr.bf16.mxu0 %v1415
  %1904 = vmatpush1.bf16.msra.mxu0 %v1414
  %1905 = vmatprep.subr.bf16.mxu0 %v1421
  %1906 = vmatpush1.bf16.msra.mxu0 %v1420
  %1907 = vmatprep.subr.bf16.mxu0 %v1427
  %1908 = vmatpush1.bf16.msra.mxu0 %v1426
  %1909 = vmatprep.subr.bf16.mxu0 %v1433
  %1910 = vmatpush1.bf16.msra.mxu0 %v1432
  %1911 = vmatprep.subr.bf16.mxu0 %v1439
  %1912 = vmatpush1.bf16.msra.mxu0 %v1438
  %1913 = vmatprep.subr.bf16.mxu0 %v1445
  %1914 = vmatpush1.bf16.msra.mxu0 %v1444
  %1915 = vmatprep.subr.bf16.mxu0 %v1451
  %1916 = vmatpush1.bf16.msra.mxu0 %v1450
  %1917 = vmatprep.subr.bf16.mxu0 %v1457
  %1918 = vmatpush1.bf16.msra.mxu0 %v1456
  %1919 = vmatprep.mubr.bf16.mxu0 %v83
  %1920 = vmatmul.mubr.bf16.gmra.mrb[0].mxu0 %v82
  %v1921 = vpop.f32.mrb[0].mxu0
  %v1922 = vadd.f32 %v1881, %v1921
  %v1923 = vpop.f32.mrb[0].mxu0
  %v1924 = vadd.f32 %v1883, %v1923
  %v1925 = vpop.f32.mrb[0].mxu0
  %v1926 = vpop.f32.mrb[0].mxu0
  %1927 = vdwg.mxu0
  %1928 = vmatprep.subr.bf16.mxu0 %v1463
  %1929 = vmatpush1.bf16.msra.mxu0 %v1462
  %1930 = vmatprep.subr.bf16.mxu0 %v1469
  %1931 = vmatpush1.bf16.msra.mxu0 %v1468
  %1932 = vmatprep.subr.bf16.mxu0 %v1475
  %1933 = vmatpush1.bf16.msra.mxu0 %v1474
  %1934 = vmatprep.subr.bf16.mxu0 %v1481
  %1935 = vmatpush1.bf16.msra.mxu0 %v1480
  %1936 = vmatprep.subr.bf16.mxu0 %v1487
  %1937 = vmatpush1.bf16.msra.mxu0 %v1486
  %1938 = vmatprep.subr.bf16.mxu0 %v1493
  %1939 = vmatpush1.bf16.msra.mxu0 %v1492
  %1940 = vmatprep.subr.bf16.mxu0 %v1499
  %1941 = vmatpush1.bf16.msra.mxu0 %v1498
  %1942 = vmatprep.subr.bf16.mxu0 %v1505
  %1943 = vmatpush1.bf16.msra.mxu0 %v1504
  %1944 = vmatprep.subr.bf16.mxu0 %v1511
  %1945 = vmatpush1.bf16.msra.mxu0 %v1510
  %1946 = vmatprep.subr.bf16.mxu0 %v1517
  %1947 = vmatpush1.bf16.msra.mxu0 %v1516
  %1948 = vmatprep.subr.bf16.mxu0 %v1523
  %1949 = vmatpush1.bf16.msra.mxu0 %v1522
  %1950 = vmatprep.subr.bf16.mxu0 %v1529
  %1951 = vmatpush1.bf16.msra.mxu0 %v1528
  %1952 = vmatprep.subr.bf16.mxu0 %v1535
  %1953 = vmatpush1.bf16.msra.mxu0 %v1534
  %1954 = vmatprep.subr.bf16.mxu0 %v1541
  %1955 = vmatpush1.bf16.msra.mxu0 %v1540
  %1956 = vmatprep.subr.bf16.mxu0 %v1547
  %1957 = vmatpush1.bf16.msra.mxu0 %v1546
  %1958 = vmatprep.subr.bf16.mxu0 %v1553
  %1959 = vmatpush1.bf16.msra.mxu0 %v1552
  %1960 = vmatprep.mubr.bf16.mxu0 %v85
  %1961 = vmatmul.mubr.bf16.gmra.mrb[0].mxu0 %v84
  %v1962 = vpop.f32.mrb[0].mxu0
  %v1963 = vadd.f32 %v1922, %v1962
  %v1964 = vpop.f32.mrb[0].mxu0
  %v1965 = vadd.f32 %v1924, %v1964
  %v1966 = vpop.f32.mrb[0].mxu0
  %v1967 = vpop.f32.mrb[0].mxu0
  %1968 = vdwg.mxu0
  %1969 = vmatprep.subr.bf16.mxu0 %v1273
  %1970 = vmatpush1.bf16.msra.mxu0 %v1272
  %1971 = vmatprep.subr.bf16.mxu0 %v1279
  %1972 = vmatpush1.bf16.msra.mxu0 %v1278
  %1973 = vmatprep.subr.bf16.mxu0 %v1285
  %1974 = vmatpush1.bf16.msra.mxu0 %v1284
  %1975 = vmatprep.subr.bf16.mxu0 %v1291
  %1976 = vmatpush1.bf16.msra.mxu0 %v1290
  %1977 = vmatprep.subr.bf16.mxu0 %v1297
  %1978 = vmatpush1.bf16.msra.mxu0 %v1296
  %1979 = vmatprep.subr.bf16.mxu0 %v1303
  %1980 = vmatpush1.bf16.msra.mxu0 %v1302
  %1981 = vmatprep.subr.bf16.mxu0 %v1309
  %1982 = vmatpush1.bf16.msra.mxu0 %v1308
  %1983 = vmatprep.subr.bf16.mxu0 %v1315
  %1984 = vmatpush1.bf16.msra.mxu0 %v1314
  %1985 = vmatprep.subr.bf16.mxu0 %v1321
  %1986 = vmatpush1.bf16.msra.mxu0 %v1320
  %1987 = vmatprep.subr.bf16.mxu0 %v1327
  %1988 = vmatpush1.bf16.msra.mxu0 %v1326
  %1989 = vmatprep.subr.bf16.mxu0 %v1333
  %1990 = vmatpush1.bf16.msra.mxu0 %v1332
  %1991 = vmatprep.subr.bf16.mxu0 %v1339
  %1992 = vmatpush1.bf16.msra.mxu0 %v1338
  %1993 = vmatprep.subr.bf16.mxu0 %v1345
  %1994 = vmatpush1.bf16.msra.mxu0 %v1344
  %1995 = vmatprep.subr.bf16.mxu0 %v1351
  %1996 = vmatpush1.bf16.msra.mxu0 %v1350
  %1997 = vmatprep.subr.bf16.mxu0 %v1357
  %1998 = vmatpush1.bf16.msra.mxu0 %v1356
  %1999 = vmatprep.subr.bf16.mxu0 %v1363
  %2000 = vmatpush1.bf16.msra.mxu0 %v1362
  %2001 = vmatprep.mubr.bf16.mxu0 %v81
  %2002 = vmatmul.mubr.bf16.gmra.mrb[0].mxu0 %v80
  %v2003 = vpop.f32.mrb[0].mxu0
  %v2004 = vadd.f32 %v387, %v2003
  %v2005 = vpop.f32.mrb[0].mxu0
  %v2006 = vadd.f32 %v391, %v2005
  %v2007 = vpop.f32.mrb[0].mxu0
  %v2008 = vpop.f32.mrb[0].mxu0
  %2009 = vdwg.mxu0
  %2010 = vmatprep.subr.bf16.mxu0 %v1369
  %2011 = vmatpush1.bf16.msra.mxu0 %v1368
  %2012 = vmatprep.subr.bf16.mxu0 %v1375
  %2013 = vmatpush1.bf16.msra.mxu0 %v1374
  %2014 = vmatprep.subr.bf16.mxu0 %v1381
  %2015 = vmatpush1.bf16.msra.mxu0 %v1380
  %2016 = vmatprep.subr.bf16.mxu0 %v1387
  %2017 = vmatpush1.bf16.msra.mxu0 %v1386
  %2018 = vmatprep.subr.bf16.mxu0 %v1393
  %2019 = vmatpush1.bf16.msra.mxu0 %v1392
  %2020 = vmatprep.subr.bf16.mxu0 %v1399
  %2021 = vmatpush1.bf16.msra.mxu0 %v1398
  %2022 = vmatprep.subr.bf16.mxu0 %v1405
  %2023 = vmatpush1.bf16.msra.mxu0 %v1404
  %2024 = vmatprep.subr.bf16.mxu0 %v1411
  %2025 = vmatpush1.bf16.msra.mxu0 %v1410
  %2026 = vmatprep.subr.bf16.mxu0 %v1417
  %2027 = vmatpush1.bf16.msra.mxu0 %v1416
  %2028 = vmatprep.subr.bf16.mxu0 %v1423
  %2029 = vmatpush1.bf16.msra.mxu0 %v1422
  %2030 = vmatprep.subr.bf16.mxu0 %v1429
  %2031 = vmatpush1.bf16.msra.mxu0 %v1428
  %2032 = vmatprep.subr.bf16.mxu0 %v1435
  %2033 = vmatpush1.bf16.msra.mxu0 %v1434
  %2034 = vmatprep.subr.bf16.mxu0 %v1441
  %2035 = vmatpush1.bf16.msra.mxu0 %v1440
  %2036 = vmatprep.subr.bf16.mxu0 %v1447
  %2037 = vmatpush1.bf16.msra.mxu0 %v1446
  %2038 = vmatprep.subr.bf16.mxu0 %v1453
  %2039 = vmatpush1.bf16.msra.mxu0 %v1452
  %2040 = vmatprep.subr.bf16.mxu0 %v1459
  %2041 = vmatpush1.bf16.msra.mxu0 %v1458
  %2042 = vmatprep.mubr.bf16.mxu0 %v83
  %2043 = vmatmul.mubr.bf16.gmra.mrb[0].mxu0 %v82
  %v2044 = vpop.f32.mrb[0].mxu0
  %v2045 = vadd.f32 %v2004, %v2044
  %v2046 = vpop.f32.mrb[0].mxu0
  %v2047 = vadd.f32 %v2006, %v2046
  %v2048 = vpop.f32.mrb[0].mxu0
  %v2049 = vpop.f32.mrb[0].mxu0
  %2050 = vdwg.mxu0
  %2051 = vmatprep.subr.bf16.mxu0 %v1465
  %2052 = vmatpush1.bf16.msra.mxu0 %v1464
  %2053 = vmatprep.subr.bf16.mxu0 %v1471
  %2054 = vmatpush1.bf16.msra.mxu0 %v1470
  %2055 = vmatprep.subr.bf16.mxu0 %v1477
  %2056 = vmatpush1.bf16.msra.mxu0 %v1476
  %2057 = vmatprep.subr.bf16.mxu0 %v1483
  %2058 = vmatpush1.bf16.msra.mxu0 %v1482
  %2059 = vmatprep.subr.bf16.mxu0 %v1489
  %2060 = vmatpush1.bf16.msra.mxu0 %v1488
  %2061 = vmatprep.subr.bf16.mxu0 %v1495
  %2062 = vmatpush1.bf16.msra.mxu0 %v1494
  %2063 = vmatprep.subr.bf16.mxu0 %v1501
  %2064 = vmatpush1.bf16.msra.mxu0 %v1500
  %2065 = vmatprep.subr.bf16.mxu0 %v1507
  %2066 = vmatpush1.bf16.msra.mxu0 %v1506
  %2067 = vmatprep.subr.bf16.mxu0 %v1513
  %2068 = vmatpush1.bf16.msra.mxu0 %v1512
  %2069 = vmatprep.subr.bf16.mxu0 %v1519
  %2070 = vmatpush1.bf16.msra.mxu0 %v1518
  %2071 = vmatprep.subr.bf16.mxu0 %v1525
  %2072 = vmatpush1.bf16.msra.mxu0 %v1524
  %2073 = vmatprep.subr.bf16.mxu0 %v1531
  %2074 = vmatpush1.bf16.msra.mxu0 %v1530
  %2075 = vmatprep.subr.bf16.mxu0 %v1537
  %2076 = vmatpush1.bf16.msra.mxu0 %v1536
  %2077 = vmatprep.subr.bf16.mxu0 %v1543
  %2078 = vmatpush1.bf16.msra.mxu0 %v1542
  %2079 = vmatprep.subr.bf16.mxu0 %v1549
  %2080 = vmatpush1.bf16.msra.mxu0 %v1548
  %2081 = vmatprep.subr.bf16.mxu0 %v1555
  %2082 = vmatpush1.bf16.msra.mxu0 %v1554
  %2083 = vmatprep.mubr.bf16.mxu0 %v85
  %2084 = vmatmul.mubr.bf16.gmra.mrb[0].mxu0 %v84
  %v2085 = vpop.f32.mrb[0].mxu0
  %v2086 = vadd.f32 %v2045, %v2085
  %v2087 = vpop.f32.mrb[0].mxu0
  %v2088 = vadd.f32 %v2047, %v2087
  %v2089 = vpop.f32.mrb[0].mxu0
  %v2090 = vpop.f32.mrb[0].mxu0
  %2091 = vdwg.mxu0
  %2092 = vmatprep.subr.bf16.mxu0 %v1275
  %2093 = vmatpush1.bf16.msra.mxu0 %v1274
  %2094 = vmatprep.subr.bf16.mxu0 %v1281
  %2095 = vmatpush1.bf16.msra.mxu0 %v1280
  %2096 = vmatprep.subr.bf16.mxu0 %v1287
  %2097 = vmatpush1.bf16.msra.mxu0 %v1286
  %2098 = vmatprep.subr.bf16.mxu0 %v1293
  %2099 = vmatpush1.bf16.msra.mxu0 %v1292
  %2100 = vmatprep.subr.bf16.mxu0 %v1299
  %2101 = vmatpush1.bf16.msra.mxu0 %v1298
  %2102 = vmatprep.subr.bf16.mxu0 %v1305
  %2103 = vmatpush1.bf16.msra.mxu0 %v1304
  %2104 = vmatprep.subr.bf16.mxu0 %v1311
  %2105 = vmatpush1.bf16.msra.mxu0 %v1310
  %2106 = vmatprep.subr.bf16.mxu0 %v1317
  %2107 = vmatpush1.bf16.msra.mxu0 %v1316
  %2108 = vmatprep.subr.bf16.mxu0 %v1323
  %2109 = vmatpush1.bf16.msra.mxu0 %v1322
  %2110 = vmatprep.subr.bf16.mxu0 %v1329
  %2111 = vmatpush1.bf16.msra.mxu0 %v1328
  %2112 = vmatprep.subr.bf16.mxu0 %v1335
  %2113 = vmatpush1.bf16.msra.mxu0 %v1334
  %2114 = vmatprep.subr.bf16.mxu0 %v1341
  %2115 = vmatpush1.bf16.msra.mxu0 %v1340
  %2116 = vmatprep.subr.bf16.mxu0 %v1347
  %2117 = vmatpush1.bf16.msra.mxu0 %v1346
  %2118 = vmatprep.subr.bf16.mxu0 %v1353
  %2119 = vmatpush1.bf16.msra.mxu0 %v1352
  %2120 = vmatprep.subr.bf16.mxu0 %v1359
  %2121 = vmatpush1.bf16.msra.mxu0 %v1358
  %2122 = vmatprep.subr.bf16.mxu0 %v1365
  %2123 = vmatpush1.bf16.msra.mxu0 %v1364
  %2124 = vmatprep.mubr.bf16.mxu0 %v81
  %2125 = vmatmul.mubr.bf16.gmra.mrb[0].mxu0 %v80
  %v2126 = vpop.f32.mrb[0].mxu0
  %v2127 = vadd.f32 %v395, %v2126
  %v2128 = vpop.f32.mrb[0].mxu0
  %v2129 = vadd.f32 %v399, %v2128
  %v2130 = vpop.f32.mrb[0].mxu0
  %v2131 = vpop.f32.mrb[0].mxu0
  %2132 = vdwg.mxu0
  %2133 = vmatprep.subr.bf16.mxu0 %v1371
  %2134 = vmatpush1.bf16.msra.mxu0 %v1370
  %2135 = vmatprep.subr.bf16.mxu0 %v1377
  %2136 = vmatpush1.bf16.msra.mxu0 %v1376
  %2137 = vmatprep.subr.bf16.mxu0 %v1383
  %2138 = vmatpush1.bf16.msra.mxu0 %v1382
  %2139 = vmatprep.subr.bf16.mxu0 %v1389
  %2140 = vmatpush1.bf16.msra.mxu0 %v1388
  %2141 = vmatprep.subr.bf16.mxu0 %v1395
  %2142 = vmatpush1.bf16.msra.mxu0 %v1394
  %2143 = vmatprep.subr.bf16.mxu0 %v1401
  %2144 = vmatpush1.bf16.msra.mxu0 %v1400
  %2145 = vmatprep.subr.bf16.mxu0 %v1407
  %2146 = vmatpush1.bf16.msra.mxu0 %v1406
  %2147 = vmatprep.subr.bf16.mxu0 %v1413
  %2148 = vmatpush1.bf16.msra.mxu0 %v1412
  %2149 = vmatprep.subr.bf16.mxu0 %v1419
  %2150 = vmatpush1.bf16.msra.mxu0 %v1418
  %2151 = vmatprep.subr.bf16.mxu0 %v1425
  %2152 = vmatpush1.bf16.msra.mxu0 %v1424
  %2153 = vmatprep.subr.bf16.mxu0 %v1431
  %2154 = vmatpush1.bf16.msra.mxu0 %v1430
  %2155 = vmatprep.subr.bf16.mxu0 %v1437
  %2156 = vmatpush1.bf16.msra.mxu0 %v1436
  %2157 = vmatprep.subr.bf16.mxu0 %v1443
  %2158 = vmatpush1.bf16.msra.mxu0 %v1442
  %2159 = vmatprep.subr.bf16.mxu0 %v1449
  %2160 = vmatpush1.bf16.msra.mxu0 %v1448
  %2161 = vmatprep.subr.bf16.mxu0 %v1455
  %2162 = vmatpush1.bf16.msra.mxu0 %v1454
  %2163 = vmatprep.subr.bf16.mxu0 %v1461
  %2164 = vmatpush1.bf16.msra.mxu0 %v1460
  %2165 = vmatprep.mubr.bf16.mxu0 %v83
  %2166 = vmatmul.mubr.bf16.gmra.mrb[0].mxu0 %v82
  %v2167 = vpop.f32.mrb[0].mxu0
  %v2168 = vadd.f32 %v2127, %v2167
  %v2169 = vpop.f32.mrb[0].mxu0
  %v2170 = vadd.f32 %v2129, %v2169
  %v2171 = vpop.f32.mrb[0].mxu0
  %v2172 = vpop.f32.mrb[0].mxu0
  %2173 = vdwg.mxu0
  %2174 = vmatprep.subr.bf16.mxu0 %v1467
  %2175 = vmatpush1.bf16.msra.mxu0 %v1466
  %2176 = vmatprep.subr.bf16.mxu0 %v1473
  %2177 = vmatpush1.bf16.msra.mxu0 %v1472
  %2178 = vmatprep.subr.bf16.mxu0 %v1479
  %2179 = vmatpush1.bf16.msra.mxu0 %v1478
  %2180 = vmatprep.subr.bf16.mxu0 %v1485
  %2181 = vmatpush1.bf16.msra.mxu0 %v1484
  %2182 = vmatprep.subr.bf16.mxu0 %v1491
  %2183 = vmatpush1.bf16.msra.mxu0 %v1490
  %2184 = vmatprep.subr.bf16.mxu0 %v1497
  %2185 = vmatpush1.bf16.msra.mxu0 %v1496
  %2186 = vmatprep.subr.bf16.mxu0 %v1503
  %2187 = vmatpush1.bf16.msra.mxu0 %v1502
  %2188 = vmatprep.subr.bf16.mxu0 %v1509
  %2189 = vmatpush1.bf16.msra.mxu0 %v1508
  %2190 = vmatprep.subr.bf16.mxu0 %v1515
  %2191 = vmatpush1.bf16.msra.mxu0 %v1514
  %2192 = vmatprep.subr.bf16.mxu0 %v1521
  %2193 = vmatpush1.bf16.msra.mxu0 %v1520
  %2194 = vmatprep.subr.bf16.mxu0 %v1527
  %2195 = vmatpush1.bf16.msra.mxu0 %v1526
  %2196 = vmatprep.subr.bf16.mxu0 %v1533
  %2197 = vmatpush1.bf16.msra.mxu0 %v1532
  %2198 = vmatprep.subr.bf16.mxu0 %v1539
  %2199 = vmatpush1.bf16.msra.mxu0 %v1538
  %2200 = vmatprep.subr.bf16.mxu0 %v1545
  %2201 = vmatpush1.bf16.msra.mxu0 %v1544
  %2202 = vmatprep.subr.bf16.mxu0 %v1551
  %2203 = vmatpush1.bf16.msra.mxu0 %v1550
  %2204 = vmatprep.subr.bf16.mxu0 %v1557
  %2205 = vmatpush1.bf16.msra.mxu0 %v1556
  %2206 = vmatprep.mubr.bf16.mxu0 %v85
  %2207 = vmatmul.mubr.bf16.gmra.mrb[0].mxu0 %v84
  %v2208 = vpop.f32.mrb[0].mxu0
  %v2209 = vadd.f32 %v2168, %v2208
  %v2210 = vpop.f32.mrb[0].mxu0
  %v2211 = vadd.f32 %v2170, %v2210
  %v2212 = vpop.f32.mrb[0].mxu0
  %v2213 = vpop.f32.mrb[0].mxu0
  %2214 = vdwg.mxu0
  %v2215 = vtanh.pop %v1963
  %v2216 = vtanh.pop %v1965
  %v2217 = vtanh.pop %v2086
  %v2218 = vtanh.pop %v2088
  %v2219 = vtanh.pop %v2209
  %v2220 = vtanh.pop %v2211
  %v2221 = vpack.c.bf16 %v2215, %v2215
  %v2222 = vpack.c.bf16 %v2216, %v2216
  %v2223 = vpack.c.bf16 %v2217, %v2217
  %v2224 = vpack.c.bf16 %v2218, %v2218
  %v2225 = vpack.c.bf16 %v2219, %v2219
  %v2226 = vpack.c.bf16 %v2220, %v2220
  %v2227 = vld [vmem:[%s1] sm:$0xff]
  %v2228 = vld [vmem:[%s1 + $0x8] sm:$0xff]
  %v2229 = vld [vmem:[%s1 + $0x10] sm:$0xff]
  %v2230 = vld [vmem:[%s1 + $0x18] sm:$0xff]
  %v2231 = vld [vmem:[%s1 + $0x20] sm:$0xff]
  %v2232 = vld [vmem:[%s1 + $0x28] sm:$0xff]
  %v2233 = vld [vmem:[%s1 + $0x30] sm:$0xff]
  %v2234 = vld [vmem:[%s1 + $0x38] sm:$0xff]
  %v2235 = vld [vmem:[%s1 + $0x40] sm:$0x3]
  %v2236 = vld [vmem:[%s1 + $0x48] sm:$0x3]
  %v2237 = vld [vmem:[%s1 + $0x50] sm:$0x3]
  %v2238 = vld [vmem:[%s1 + $0x58] sm:$0x3]
  %v2239 = vld [vmem:[%s5] sm:$0xf]
  %v2240 = vld [vmem:[%s5 + $0x4] sm:$0xf]
  %v2241 = vld [vmem:[%s5 + $0x8] sm:$0xf]
  %v2242 = vld [vmem:[%s5 + $0xc] sm:$0xf]
  %v2243 = vld [vmem:[%s5 + $0x10] sm:$0xf]
  %v2244 = vld [vmem:[%s5 + $0x14] sm:$0xf]
  %v2245 = vld [vmem:[%s5 + $0x18] sm:$0xf]
  %v2246 = vld [vmem:[%s5 + $0x1c] sm:$0xf]
  %v2247 = vld [vmem:[%s5 + $0x20] sm:$0xf]
  %v2248 = vld [vmem:[%s5 + $0x24] sm:$0xf]
  %v2249 = vld [vmem:[%s5 + $0x28] sm:$0xf]
  %v2250 = vld [vmem:[%s5 + $0x2c] sm:$0xf]
  %v2251 = vld [vmem:[%s5 + $0x30] sm:$0xf]
  %v2252 = vld [vmem:[%s5 + $0x34] sm:$0xf]
  %v2253 = vld [vmem:[%s5 + $0x38] sm:$0xf]
  %v2254 = vld [vmem:[%s5 + $0x3c] sm:$0xf]
  %v2255 = vld [vmem:[%s5 + $0x40] sm:$0xf]
  %v2256 = vld [vmem:[%s5 + $0x44] sm:$0xf]
  %v2257 = vld [vmem:[%s5 + $0x48] sm:$0xf]
  %v2258 = vld [vmem:[%s5 + $0x4c] sm:$0xf]
  %v2259 = vld [vmem:[%s5 + $0x50] sm:$0xf]
  %v2260 = vld [vmem:[%s5 + $0x54] sm:$0xf]
  %v2261 = vld [vmem:[%s5 + $0x58] sm:$0xf]
  %v2262 = vld [vmem:[%s5 + $0x5c] sm:$0xf]
  %v2263 = vld [vmem:[%s5 + $0x60] sm:$0xf]
  %v2264 = vld [vmem:[%s5 + $0x64] sm:$0xf]
  %v2265 = vld [vmem:[%s5 + $0x68] sm:$0xf]
  %v2266 = vld [vmem:[%s5 + $0x6c] sm:$0xf]
  %v2267 = vld [vmem:[%s5 + $0x70] sm:$0xf]
  %v2268 = vld [vmem:[%s5 + $0x74] sm:$0xf]
  %v2269 = vld [vmem:[%s5 + $0x78] sm:$0xf]
  %v2270 = vld [vmem:[%s5 + $0x7c] sm:$0xf]
  %v2271 = vld [vmem:[%s5 + $0x80] sm:$0xf]
  %v2272 = vld [vmem:[%s5 + $0x84] sm:$0xf]
  %v2273 = vld [vmem:[%s5 + $0x88] sm:$0xf]
  %v2274 = vld [vmem:[%s5 + $0x8c] sm:$0xf]
  %v2275 = vld [vmem:[%s5 + $0x90] sm:$0xf]
  %v2276 = vld [vmem:[%s5 + $0x94] sm:$0xf]
  %v2277 = vld [vmem:[%s5 + $0x98] sm:$0xf]
  %v2278 = vld [vmem:[%s5 + $0x9c] sm:$0xf]
  %v2279 = vld [vmem:[%s5 + $0xa0] sm:$0xf]
  %v2280 = vld [vmem:[%s5 + $0xa4] sm:$0xf]
  %v2281 = vld [vmem:[%s5 + $0xa8] sm:$0xf]
  %v2282 = vld [vmem:[%s5 + $0xac] sm:$0xf]
  %v2283 = vld [vmem:[%s5 + $0xb0] sm:$0xf]
  %v2284 = vld [vmem:[%s5 + $0xb4] sm:$0xf]
  %v2285 = vld [vmem:[%s5 + $0xb8] sm:$0xf]
  %v2286 = vld [vmem:[%s5 + $0xbc] sm:$0xf]
  %v2287 = vld [vmem:[%s5 + $0xc0] sm:$0xf]
  %v2288 = vld [vmem:[%s5 + $0xc4] sm:$0xf]
  %v2289 = vld [vmem:[%s5 + $0xc8] sm:$0xf]
  %v2290 = vld [vmem:[%s5 + $0xcc] sm:$0xf]
  %v2291 = vld [vmem:[%s5 + $0xd0] sm:$0xf]
  %v2292 = vld [vmem:[%s5 + $0xd4] sm:$0xf]
  %v2293 = vld [vmem:[%s5 + $0xd8] sm:$0xf]
  %v2294 = vld [vmem:[%s5 + $0xdc] sm:$0xf]
  %v2295 = vld [vmem:[%s5 + $0xe0] sm:$0xf]
  %v2296 = vld [vmem:[%s5 + $0xe4] sm:$0xf]
  %v2297 = vld [vmem:[%s5 + $0xe8] sm:$0xf]
  %v2298 = vld [vmem:[%s5 + $0xec] sm:$0xf]
  %v2299 = vld [vmem:[%s5 + $0xf0] sm:$0xf]
  %v2300 = vld [vmem:[%s5 + $0xf4] sm:$0xf]
  %v2301 = vld [vmem:[%s5 + $0xf8] sm:$0xf]
  %v2302 = vld [vmem:[%s5 + $0xfc] sm:$0xf]
  %v2303 = vld [vmem:[%s5 + $0x100] sm:$0xf]
  %v2304 = vld [vmem:[%s5 + $0x104] sm:$0xf]
  %v2305 = vld [vmem:[%s5 + $0x108] sm:$0xf]
  %v2306 = vld [vmem:[%s5 + $0x10c] sm:$0xf]
  %v2307 = vld [vmem:[%s5 + $0x110] sm:$0xf]
  %v2308 = vld [vmem:[%s5 + $0x114] sm:$0xf]
  %v2309 = vld [vmem:[%s5 + $0x118] sm:$0xf]
  %v2310 = vld [vmem:[%s5 + $0x11c] sm:$0xf]
  %v2311 = vld [vmem:[%s5 + $0x120] sm:$0xf]
  %v2312 = vld [vmem:[%s5 + $0x124] sm:$0xf]
  %v2313 = vld [vmem:[%s5 + $0x128] sm:$0xf]
  %v2314 = vld [vmem:[%s5 + $0x12c] sm:$0xf]
  %v2315 = vld [vmem:[%s5 + $0x130] sm:$0xf]
  %v2316 = vld [vmem:[%s5 + $0x134] sm:$0xf]
  %v2317 = vld [vmem:[%s5 + $0x138] sm:$0xf]
  %v2318 = vld [vmem:[%s5 + $0x13c] sm:$0xf]
  %v2319 = vld [vmem:[%s5 + $0x140] sm:$0xf]
  %v2320 = vld [vmem:[%s5 + $0x144] sm:$0xf]
  %v2321 = vld [vmem:[%s5 + $0x148] sm:$0xf]
  %v2322 = vld [vmem:[%s5 + $0x14c] sm:$0xf]
  %v2323 = vld [vmem:[%s5 + $0x150] sm:$0xf]
  %v2324 = vld [vmem:[%s5 + $0x154] sm:$0xf]
  %v2325 = vld [vmem:[%s5 + $0x158] sm:$0xf]
  %v2326 = vld [vmem:[%s5 + $0x15c] sm:$0xf]
  %v2327 = vld [vmem:[%s5 + $0x160] sm:$0xf]
  %v2328 = vld [vmem:[%s5 + $0x164] sm:$0xf]
  %v2329 = vld [vmem:[%s5 + $0x168] sm:$0xf]
  %v2330 = vld [vmem:[%s5 + $0x16c] sm:$0xf]
  %v2331 = vld [vmem:[%s5 + $0x170] sm:$0xf]
  %v2332 = vld [vmem:[%s5 + $0x174] sm:$0xf]
  %v2333 = vld [vmem:[%s5 + $0x178] sm:$0xf]
  %v2334 = vld [vmem:[%s5 + $0x17c] sm:$0xf]
  %v2431 = vunpack.c.l.b16 %v2239
  %v2432 = vunpack.c.l.b16 %v2240
  %v2433 = vunpack.c.l.b16 %v2241
  %v2434 = vunpack.c.l.b16 %v2242
  %v2435 = vunpack.c.l.b16 %v2243
  %v2436 = vunpack.c.l.b16 %v2244
  %v2437 = vunpack.c.l.b16 %v2245
  %v2438 = vunpack.c.l.b16 %v2246
  %v2439 = vunpack.c.l.b16 %v2247
  %v2440 = vunpack.c.l.b16 %v2248
  %v2441 = vunpack.c.l.b16 %v2249
  %v2442 = vunpack.c.l.b16 %v2250
  %v2443 = vunpack.c.l.b16 %v2251
  %v2444 = vunpack.c.l.b16 %v2252
  %v2445 = vunpack.c.l.b16 %v2253
  %v2446 = vunpack.c.l.b16 %v2254
  %v2447 = vunpack.c.l.b16 %v2255
  %v2448 = vunpack.c.l.b16 %v2256
  %v2449 = vunpack.c.l.b16 %v2257
  %v2450 = vunpack.c.l.b16 %v2258
  %v2451 = vunpack.c.l.b16 %v2259
  %v2452 = vunpack.c.l.b16 %v2260
  %v2453 = vunpack.c.l.b16 %v2261
  %v2454 = vunpack.c.l.b16 %v2262
  %v2455 = vunpack.c.l.b16 %v2263
  %v2456 = vunpack.c.l.b16 %v2264
  %v2457 = vunpack.c.l.b16 %v2265
  %v2458 = vunpack.c.l.b16 %v2266
  %v2459 = vunpack.c.l.b16 %v2267
  %v2460 = vunpack.c.l.b16 %v2268
  %v2461 = vunpack.c.l.b16 %v2269
  %v2462 = vunpack.c.l.b16 %v2270
  %v2463 = vunpack.c.l.b16 %v2271
  %v2464 = vunpack.c.l.b16 %v2272
  %v2465 = vunpack.c.l.b16 %v2273
  %v2466 = vunpack.c.l.b16 %v2274
  %v2467 = vunpack.c.l.b16 %v2275
  %v2468 = vunpack.c.l.b16 %v2276
  %v2469 = vunpack.c.l.b16 %v2277
  %v2470 = vunpack.c.l.b16 %v2278
  %v2471 = vunpack.c.l.b16 %v2279
  %v2472 = vunpack.c.l.b16 %v2280
  %v2473 = vunpack.c.l.b16 %v2281
  %v2474 = vunpack.c.l.b16 %v2282
  %v2475 = vunpack.c.l.b16 %v2283
  %v2476 = vunpack.c.l.b16 %v2284
  %v2477 = vunpack.c.l.b16 %v2285
  %v2478 = vunpack.c.l.b16 %v2286
  %v2479 = vunpack.c.l.b16 %v2287
  %v2480 = vunpack.c.l.b16 %v2288
  %v2481 = vunpack.c.l.b16 %v2289
  %v2482 = vunpack.c.l.b16 %v2290
  %v2483 = vunpack.c.l.b16 %v2291
  %v2484 = vunpack.c.l.b16 %v2292
  %v2485 = vunpack.c.l.b16 %v2293
  %v2486 = vunpack.c.l.b16 %v2294
  %v2487 = vunpack.c.l.b16 %v2295
  %v2488 = vunpack.c.l.b16 %v2296
  %v2489 = vunpack.c.l.b16 %v2297
  %v2490 = vunpack.c.l.b16 %v2298
  %v2491 = vunpack.c.l.b16 %v2299
  %v2492 = vunpack.c.l.b16 %v2300
  %v2493 = vunpack.c.l.b16 %v2301
  %v2494 = vunpack.c.l.b16 %v2302
  %v2495 = vunpack.c.l.b16 %v2303
  %v2496 = vunpack.c.l.b16 %v2304
  %v2497 = vunpack.c.l.b16 %v2305
  %v2498 = vunpack.c.l.b16 %v2306
  %v2499 = vunpack.c.l.b16 %v2307
  %v2500 = vunpack.c.l.b16 %v2308
  %v2501 = vunpack.c.l.b16 %v2309
  %v2502 = vunpack.c.l.b16 %v2310
  %v2503 = vunpack.c.l.b16 %v2311
  %v2504 = vunpack.c.l.b16 %v2312
  %v2505 = vunpack.c.l.b16 %v2313
  %v2506 = vunpack.c.l.b16 %v2314
  %v2507 = vunpack.c.l.b16 %v2315
  %v2508 = vunpack.c.l.b16 %v2316
  %v2509 = vunpack.c.l.b16 %v2317
  %v2510 = vunpack.c.l.b16 %v2318
  %v2511 = vunpack.c.l.b16 %v2319
  %v2512 = vunpack.c.l.b16 %v2320
  %v2513 = vunpack.c.l.b16 %v2321
  %v2514 = vunpack.c.l.b16 %v2322
  %v2515 = vunpack.c.l.b16 %v2323
  %v2516 = vunpack.c.l.b16 %v2324
  %v2517 = vunpack.c.l.b16 %v2325
  %v2518 = vunpack.c.l.b16 %v2326
  %v2519 = vunpack.c.l.b16 %v2327
  %v2520 = vunpack.c.l.b16 %v2328
  %v2521 = vunpack.c.l.b16 %v2329
  %v2522 = vunpack.c.l.b16 %v2330
  %v2523 = vunpack.c.l.b16 %v2331
  %v2524 = vunpack.c.l.b16 %v2332
  %v2525 = vunpack.c.l.b16 %v2333
  %v2526 = vunpack.c.l.b16 %v2334
  %v2527 = vpack.c.b16 %v2432, %v2431
  %v2528 = vpack.c.b16 %v2434, %v2433
  %v2529 = vpack.c.b16 %v2436, %v2435
  %v2530 = vpack.c.b16 %v2438, %v2437
  %v2531 = vpack.c.b16 %v2440, %v2439
  %v2532 = vpack.c.b16 %v2442, %v2441
  %v2533 = vpack.c.b16 %v2444, %v2443
  %v2534 = vpack.c.b16 %v2446, %v2445
  %v2535 = vpack.c.b16 %v2448, %v2447
  %v2536 = vpack.c.b16 %v2450, %v2449
  %v2537 = vpack.c.b16 %v2452, %v2451
  %v2538 = vpack.c.b16 %v2454, %v2453
  %v2539 = vpack.c.b16 %v2456, %v2455
  %v2540 = vpack.c.b16 %v2458, %v2457
  %v2541 = vpack.c.b16 %v2460, %v2459
  %v2542 = vpack.c.b16 %v2462, %v2461
  %v2543 = vpack.c.b16 %v2464, %v2463
  %v2544 = vpack.c.b16 %v2466, %v2465
  %v2545 = vpack.c.b16 %v2468, %v2467
  %v2546 = vpack.c.b16 %v2470, %v2469
  %v2547 = vpack.c.b16 %v2472, %v2471
  %v2548 = vpack.c.b16 %v2474, %v2473
  %v2549 = vpack.c.b16 %v2476, %v2475
  %v2550 = vpack.c.b16 %v2478, %v2477
  %v2551 = vpack.c.b16 %v2480, %v2479
  %v2552 = vpack.c.b16 %v2482, %v2481
  %v2553 = vpack.c.b16 %v2484, %v2483
  %v2554 = vpack.c.b16 %v2486, %v2485
  %v2555 = vpack.c.b16 %v2488, %v2487
  %v2556 = vpack.c.b16 %v2490, %v2489
  %v2557 = vpack.c.b16 %v2492, %v2491
  %v2558 = vpack.c.b16 %v2494, %v2493
  %v2559 = vpack.c.b16 %v2496, %v2495
  %v2560 = vpack.c.b16 %v2498, %v2497
  %v2561 = vpack.c.b16 %v2500, %v2499
  %v2562 = vpack.c.b16 %v2502, %v2501
  %v2563 = vpack.c.b16 %v2504, %v2503
  %v2564 = vpack.c.b16 %v2506, %v2505
  %v2565 = vpack.c.b16 %v2508, %v2507
  %v2566 = vpack.c.b16 %v2510, %v2509
  %v2567 = vpack.c.b16 %v2512, %v2511
  %v2568 = vpack.c.b16 %v2514, %v2513
  %v2569 = vpack.c.b16 %v2516, %v2515
  %v2570 = vpack.c.b16 %v2518, %v2517
  %v2571 = vpack.c.b16 %v2520, %v2519
  %v2572 = vpack.c.b16 %v2522, %v2521
  %v2573 = vpack.c.b16 %v2524, %v2523
  %v2574 = vpack.c.b16 %v2526, %v2525
  %2623 = vmatprep.subr.bf16.mxu0 0
  %2624 = vmatpush1.bf16.msra.mxu0 %v2527
  %2625 = vmatprep.subr.bf16.mxu0 0
  %2626 = vmatpush1.bf16.msra.mxu0 %v2528
  %2627 = vmatprep.subr.bf16.mxu0 0
  %2628 = vmatpush1.bf16.msra.mxu0 %v2529
  %2629 = vmatprep.subr.bf16.mxu0 0
  %2630 = vmatpush1.bf16.msra.mxu0 %v2530
  %2631 = vmatprep.subr.bf16.mxu0 0
  %2632 = vmatpush1.bf16.msra.mxu0 %v2531
  %2633 = vmatprep.subr.bf16.mxu0 0
  %2634 = vmatpush1.bf16.msra.mxu0 %v2532
  %2635 = vmatprep.subr.bf16.mxu0 0
  %2636 = vmatpush1.bf16.msra.mxu0 %v2533
  %2637 = vmatprep.subr.bf16.mxu0 0
  %2638 = vmatpush1.bf16.msra.mxu0 %v2534
  %2639 = vmatprep.subr.bf16.mxu0 0
  %2640 = vmatpush1.bf16.msra.mxu0 %v2535
  %2641 = vmatprep.subr.bf16.mxu0 0
  %2642 = vmatpush1.bf16.msra.mxu0 %v2536
  %2643 = vmatprep.subr.bf16.mxu0 0
  %2644 = vmatpush1.bf16.msra.mxu0 %v2537
  %2645 = vmatprep.subr.bf16.mxu0 0
  %2646 = vmatpush1.bf16.msra.mxu0 %v2538
  %2647 = vmatprep.subr.bf16.mxu0 0
  %2648 = vmatpush1.bf16.msra.mxu0 %v2539
  %2649 = vmatprep.subr.bf16.mxu0 0
  %2650 = vmatpush1.bf16.msra.mxu0 %v2540
  %2651 = vmatprep.subr.bf16.mxu0 0
  %2652 = vmatpush1.bf16.msra.mxu0 %v2541
  %2653 = vmatprep.subr.bf16.mxu0 0
  %2654 = vmatpush1.bf16.msra.mxu0 %v2542
  %2655 = vmatprep.mubr.bf16.mxu0 %v2222
  %2656 = vmatmul.mubr.bf16.gmra.mrb[0].mxu0 %v2221
  %v2657 = vpop.f32.mrb[0].mxu0
  %v2658 = vadd.f32 0.0, %v2657
  %v2659 = vpop.f32.mrb[0].mxu0
  %v2660 = vpop.f32.mrb[0].mxu0
  %v2661 = vpop.f32.mrb[0].mxu0
  %2662 = vdwg.mxu0
  %2663 = vmatprep.subr.bf16.mxu0 0
  %2664 = vmatpush1.bf16.msra.mxu0 %v2543
  %2665 = vmatprep.subr.bf16.mxu0 0
  %2666 = vmatpush1.bf16.msra.mxu0 %v2544
  %2667 = vmatprep.subr.bf16.mxu0 0
  %2668 = vmatpush1.bf16.msra.mxu0 %v2545
  %2669 = vmatprep.subr.bf16.mxu0 0
  %2670 = vmatpush1.bf16.msra.mxu0 %v2546
  %2671 = vmatprep.subr.bf16.mxu0 0
  %2672 = vmatpush1.bf16.msra.mxu0 %v2547
  %2673 = vmatprep.subr.bf16.mxu0 0
  %2674 = vmatpush1.bf16.msra.mxu0 %v2548
  %2675 = vmatprep.subr.bf16.mxu0 0
  %2676 = vmatpush1.bf16.msra.mxu0 %v2549
  %2677 = vmatprep.subr.bf16.mxu0 0
  %2678 = vmatpush1.bf16.msra.mxu0 %v2550
  %2679 = vmatprep.subr.bf16.mxu0 0
  %2680 = vmatpush1.bf16.msra.mxu0 %v2551
  %2681 = vmatprep.subr.bf16.mxu0 0
  %2682 = vmatpush1.bf16.msra.mxu0 %v2552
  %2683 = vmatprep.subr.bf16.mxu0 0
  %2684 = vmatpush1.bf16.msra.mxu0 %v2553
  %2685 = vmatprep.subr.bf16.mxu0 0
  %2686 = vmatpush1.bf16.msra.mxu0 %v2554
  %2687 = vmatprep.subr.bf16.mxu0 0
  %2688 = vmatpush1.bf16.msra.mxu0 %v2555
  %2689 = vmatprep.subr.bf16.mxu0 0
  %2690 = vmatpush1.bf16.msra.mxu0 %v2556
  %2691 = vmatprep.subr.bf16.mxu0 0
  %2692 = vmatpush1.bf16.msra.mxu0 %v2557
  %2693 = vmatprep.subr.bf16.mxu0 0
  %2694 = vmatpush1.bf16.msra.mxu0 %v2558
  %2695 = vmatprep.mubr.bf16.mxu0 %v2224
  %2696 = vmatmul.mubr.bf16.gmra.mrb[0].mxu0 %v2223
  %v2697 = vpop.f32.mrb[0].mxu0
  %v2698 = vadd.f32 %v2658, %v2697
  %v2699 = vpop.f32.mrb[0].mxu0
  %v2700 = vpop.f32.mrb[0].mxu0
  %v2701 = vpop.f32.mrb[0].mxu0
  %2702 = vdwg.mxu0
  %2703 = vmatprep.subr.bf16.mxu0 0
  %2704 = vmatpush1.bf16.msra.mxu0 %v2559
  %2705 = vmatprep.subr.bf16.mxu0 0
  %2706 = vmatpush1.bf16.msra.mxu0 %v2560
  %2707 = vmatprep.subr.bf16.mxu0 0
  %2708 = vmatpush1.bf16.msra.mxu0 %v2561
  %2709 = vmatprep.subr.bf16.mxu0 0
  %2710 = vmatpush1.bf16.msra.mxu0 %v2562
  %2711 = vmatprep.subr.bf16.mxu0 0
  %2712 = vmatpush1.bf16.msra.mxu0 %v2563
  %2713 = vmatprep.subr.bf16.mxu0 0
  %2714 = vmatpush1.bf16.msra.mxu0 %v2564
  %2715 = vmatprep.subr.bf16.mxu0 0
  %2716 = vmatpush1.bf16.msra.mxu0 %v2565
  %2717 = vmatprep.subr.bf16.mxu0 0
  %2718 = vmatpush1.bf16.msra.mxu0 %v2566
  %2719 = vmatprep.subr.bf16.mxu0 0
  %2720 = vmatpush1.bf16.msra.mxu0 %v2567
  %2721 = vmatprep.subr.bf16.mxu0 0
  %2722 = vmatpush1.bf16.msra.mxu0 %v2568
  %2723 = vmatprep.subr.bf16.mxu0 0
  %2724 = vmatpush1.bf16.msra.mxu0 %v2569
  %2725 = vmatprep.subr.bf16.mxu0 0
  %2726 = vmatpush1.bf16.msra.mxu0 %v2570
  %2727 = vmatprep.subr.bf16.mxu0 0
  %2728 = vmatpush1.bf16.msra.mxu0 %v2571
  %2729 = vmatprep.subr.bf16.mxu0 0
  %2730 = vmatpush1.bf16.msra.mxu0 %v2572
  %2731 = vmatprep.subr.bf16.mxu0 0
  %2732 = vmatpush1.bf16.msra.mxu0 %v2573
  %2733 = vmatprep.subr.bf16.mxu0 0
  %2734 = vmatpush1.bf16.msra.mxu0 %v2574
  %2735 = vmatprep.mubr.bf16.mxu0 %v2226
  %2736 = vmatmul.mubr.bf16.gmra.mrb[0].mxu0 %v2225
  %v2737 = vpop.f32.mrb[0].mxu0
  %v2738 = vadd.f32 %v2698, %v2737
  %v2739 = vpop.f32.mrb[0].mxu0
  %v2740 = vpop.f32.mrb[0].mxu0
  %v2741 = vpop.f32.mrb[0].mxu0
  %2742 = vdwg.mxu0
  %v2743 = vpack.c.bf16 %v2231, %v2227
  %v2744 = vpack.c.bf16 %v2232, %v2228
  %v2745 = vpack.c.bf16 %v2233, %v2229
  %v2746 = vpack.c.bf16 %v2234, %v2230
  %v2747 = vpack.c.bf16 %v2235, %v2235
  %v2748 = vpack.c.bf16 %v2236, %v2236
  %v2749 = vpack.c.bf16 %v2237, %v2237
  %v2750 = vpack.c.bf16 %v2238, %v2238
  %v2751 = vld [vmem:[%s6] sm:$0xf]
  %v2752 = vld [vmem:[%s6 + $0x4] sm:$0xf]
  %v2753 = vld [vmem:[%s6 + $0x8] sm:$0xf]
  %v2754 = vld [vmem:[%s6 + $0xc] sm:$0xf]
  %v2755 = vld [vmem:[%s6 + $0x10] sm:$0xf]
  %v2756 = vld [vmem:[%s6 + $0x14] sm:$0xf]
  %v2757 = vld [vmem:[%s6 + $0x18] sm:$0xf]
  %v2758 = vld [vmem:[%s6 + $0x1c] sm:$0xf]
  %v2759 = vld [vmem:[%s6 + $0x20] sm:$0xf]
  %v2760 = vld [vmem:[%s6 + $0x24] sm:$0xf]
  %v2761 = vld [vmem:[%s6 + $0x28] sm:$0xf]
  %v2762 = vld [vmem:[%s6 + $0x2c] sm:$0xf]
  %v2763 = vld [vmem:[%s6 + $0x30] sm:$0xf]
  %v2764 = vld [vmem:[%s6 + $0x34] sm:$0xf]
  %v2765 = vld [vmem:[%s6 + $0x38] sm:$0xf]
  %v2766 = vld [vmem:[%s6 + $0x3c] sm:$0xf]
  %v2767 = vld [vmem:[%s6 + $0x40] sm:$0xf]
  %v2768 = vld [vmem:[%s6 + $0x44] sm:$0xf]
  %v2769 = vld [vmem:[%s6 + $0x48] sm:$0xf]
  %v2770 = vld [vmem:[%s6 + $0x4c] sm:$0xf]
  %v2771 = vld [vmem:[%s6 + $0x50] sm:$0xf]
  %v2772 = vld [vmem:[%s6 + $0x54] sm:$0xf]
  %v2773 = vld [vmem:[%s6 + $0x58] sm:$0xf]
  %v2774 = vld [vmem:[%s6 + $0x5c] sm:$0xf]
  %v2775 = vld [vmem:[%s6 + $0x60] sm:$0xf]
  %v2776 = vld [vmem:[%s6 + $0x64] sm:$0xf]
  %v2777 = vld [vmem:[%s6 + $0x68] sm:$0xf]
  %v2778 = vld [vmem:[%s6 + $0x6c] sm:$0xf]
  %v2779 = vld [vmem:[%s6 + $0x70] sm:$0xf]
  %v2780 = vld [vmem:[%s6 + $0x74] sm:$0xf]
  %v2781 = vld [vmem:[%s6 + $0x78] sm:$0xf]
  %v2782 = vld [vmem:[%s6 + $0x7c] sm:$0xf]
  %v2783 = vld [vmem:[%s6 + $0x80] sm:$0xf]
  %v2784 = vld [vmem:[%s6 + $0x84] sm:$0xf]
  %v2785 = vld [vmem:[%s6 + $0x88] sm:$0xf]
  %v2786 = vld [vmem:[%s6 + $0x8c] sm:$0xf]
  %v2787 = vld [vmem:[%s6 + $0x90] sm:$0xf]
  %v2788 = vld [vmem:[%s6 + $0x94] sm:$0xf]
  %v2789 = vld [vmem:[%s6 + $0x98] sm:$0xf]
  %v2790 = vld [vmem:[%s6 + $0x9c] sm:$0xf]
  %v2791 = vld [vmem:[%s6 + $0xa0] sm:$0xf]
  %v2792 = vld [vmem:[%s6 + $0xa4] sm:$0xf]
  %v2793 = vld [vmem:[%s6 + $0xa8] sm:$0xf]
  %v2794 = vld [vmem:[%s6 + $0xac] sm:$0xf]
  %v2795 = vld [vmem:[%s6 + $0xb0] sm:$0xf]
  %v2796 = vld [vmem:[%s6 + $0xb4] sm:$0xf]
  %v2797 = vld [vmem:[%s6 + $0xb8] sm:$0xf]
  %v2798 = vld [vmem:[%s6 + $0xbc] sm:$0xf]
  %v2799 = vld [vmem:[%s6 + $0xc0] sm:$0xf]
  %v2800 = vld [vmem:[%s6 + $0xc4] sm:$0xf]
  %v2801 = vld [vmem:[%s6 + $0xc8] sm:$0xf]
  %v2802 = vld [vmem:[%s6 + $0xcc] sm:$0xf]
  %v2803 = vld [vmem:[%s6 + $0xd0] sm:$0xf]
  %v2804 = vld [vmem:[%s6 + $0xd4] sm:$0xf]
  %v2805 = vld [vmem:[%s6 + $0xd8] sm:$0xf]
  %v2806 = vld [vmem:[%s6 + $0xdc] sm:$0xf]
  %v2807 = vld [vmem:[%s6 + $0xe0] sm:$0xf]
  %v2808 = vld [vmem:[%s6 + $0xe4] sm:$0xf]
  %v2809 = vld [vmem:[%s6 + $0xe8] sm:$0xf]
  %v2810 = vld [vmem:[%s6 + $0xec] sm:$0xf]
  %v2811 = vld [vmem:[%s6 + $0xf0] sm:$0xf]
  %v2812 = vld [vmem:[%s6 + $0xf4] sm:$0xf]
  %v2813 = vld [vmem:[%s6 + $0xf8] sm:$0xf]
  %v2814 = vld [vmem:[%s6 + $0xfc] sm:$0xf]
  %v2879 = vunpack.c.l.b16 %v2751
  %v2880 = vunpack.c.l.b16 %v2752
  %v2881 = vunpack.c.l.b16 %v2753
  %v2882 = vunpack.c.l.b16 %v2754
  %v2883 = vunpack.c.l.b16 %v2755
  %v2884 = vunpack.c.l.b16 %v2756
  %v2885 = vunpack.c.l.b16 %v2757
  %v2886 = vunpack.c.l.b16 %v2758
  %v2887 = vunpack.c.l.b16 %v2759
  %v2888 = vunpack.c.l.b16 %v2760
  %v2889 = vunpack.c.l.b16 %v2761
  %v2890 = vunpack.c.l.b16 %v2762
  %v2891 = vunpack.c.l.b16 %v2763
  %v2892 = vunpack.c.l.b16 %v2764
  %v2893 = vunpack.c.l.b16 %v2765
  %v2894 = vunpack.c.l.b16 %v2766
  %v2895 = vunpack.c.l.b16 %v2767
  %v2896 = vunpack.c.l.b16 %v2768
  %v2897 = vunpack.c.l.b16 %v2769
  %v2898 = vunpack.c.l.b16 %v2770
  %v2899 = vunpack.c.l.b16 %v2771
  %v2900 = vunpack.c.l.b16 %v2772
  %v2901 = vunpack.c.l.b16 %v2773
  %v2902 = vunpack.c.l.b16 %v2774
  %v2903 = vunpack.c.l.b16 %v2775
  %v2904 = vunpack.c.l.b16 %v2776
  %v2905 = vunpack.c.l.b16 %v2777
  %v2906 = vunpack.c.l.b16 %v2778
  %v2907 = vunpack.c.l.b16 %v2779
  %v2908 = vunpack.c.l.b16 %v2780
  %v2909 = vunpack.c.l.b16 %v2781
  %v2910 = vunpack.c.l.b16 %v2782
  %v2911 = vunpack.c.l.b16 %v2783
  %v2912 = vunpack.c.l.b16 %v2784
  %v2913 = vunpack.c.l.b16 %v2785
  %v2914 = vunpack.c.l.b16 %v2786
  %v2915 = vunpack.c.l.b16 %v2787
  %v2916 = vunpack.c.l.b16 %v2788
  %v2917 = vunpack.c.l.b16 %v2789
  %v2918 = vunpack.c.l.b16 %v2790
  %v2919 = vunpack.c.l.b16 %v2791
  %v2920 = vunpack.c.l.b16 %v2792
  %v2921 = vunpack.c.l.b16 %v2793
  %v2922 = vunpack.c.l.b16 %v2794
  %v2923 = vunpack.c.l.b16 %v2795
  %v2924 = vunpack.c.l.b16 %v2796
  %v2925 = vunpack.c.l.b16 %v2797
  %v2926 = vunpack.c.l.b16 %v2798
  %v2927 = vunpack.c.l.b16 %v2799
  %v2928 = vunpack.c.l.b16 %v2800
  %v2929 = vunpack.c.l.b16 %v2801
  %v2930 = vunpack.c.l.b16 %v2802
  %v2931 = vunpack.c.l.b16 %v2803
  %v2932 = vunpack.c.l.b16 %v2804
  %v2933 = vunpack.c.l.b16 %v2805
  %v2934 = vunpack.c.l.b16 %v2806
  %v2935 = vunpack.c.l.b16 %v2807
  %v2936 = vunpack.c.l.b16 %v2808
  %v2937 = vunpack.c.l.b16 %v2809
  %v2938 = vunpack.c.l.b16 %v2810
  %v2939 = vunpack.c.l.b16 %v2811
  %v2940 = vunpack.c.l.b16 %v2812
  %v2941 = vunpack.c.l.b16 %v2813
  %v2942 = vunpack.c.l.b16 %v2814
  %v2943 = vpack.c.b16 %v2880, %v2879
  %v2944 = vpack.c.b16 %v2882, %v2881
  %v2945 = vpack.c.b16 %v2884, %v2883
  %v2946 = vpack.c.b16 %v2886, %v2885
  %v2947 = vpack.c.b16 %v2888, %v2887
  %v2948 = vpack.c.b16 %v2890, %v2889
  %v2949 = vpack.c.b16 %v2892, %v2891
  %v2950 = vpack.c.b16 %v2894, %v2893
  %v2951 = vpack.c.b16 %v2896, %v2895
  %v2952 = vpack.c.b16 %v2898, %v2897
  %v2953 = vpack.c.b16 %v2900, %v2899
  %v2954 = vpack.c.b16 %v2902, %v2901
  %v2955 = vpack.c.b16 %v2904, %v2903
  %v2956 = vpack.c.b16 %v2906, %v2905
  %v2957 = vpack.c.b16 %v2908, %v2907
  %v2958 = vpack.c.b16 %v2910, %v2909
  %v2959 = vpack.c.b16 %v2912, %v2911
  %v2960 = vpack.c.b16 %v2914, %v2913
  %v2961 = vpack.c.b16 %v2916, %v2915
  %v2962 = vpack.c.b16 %v2918, %v2917
  %v2963 = vpack.c.b16 %v2920, %v2919
  %v2964 = vpack.c.b16 %v2922, %v2921
  %v2965 = vpack.c.b16 %v2924, %v2923
  %v2966 = vpack.c.b16 %v2926, %v2925
  %v2967 = vpack.c.b16 %v2928, %v2927
  %v2968 = vpack.c.b16 %v2930, %v2929
  %v2969 = vpack.c.b16 %v2932, %v2931
  %v2970 = vpack.c.b16 %v2934, %v2933
  %v2971 = vpack.c.b16 %v2936, %v2935
  %v2972 = vpack.c.b16 %v2938, %v2937
  %v2973 = vpack.c.b16 %v2940, %v2939
  %v2974 = vpack.c.b16 %v2942, %v2941
  %3007 = vmatprep.subr.bf16.mxu0 0
  %3008 = vmatpush1.bf16.msra.mxu0 %v2943
  %3009 = vmatprep.subr.bf16.mxu0 0
  %3010 = vmatpush1.bf16.msra.mxu0 %v2944
  %3011 = vmatprep.subr.bf16.mxu0 0
  %3012 = vmatpush1.bf16.msra.mxu0 %v2945
  %3013 = vmatprep.subr.bf16.mxu0 0
  %3014 = vmatpush1.bf16.msra.mxu0 %v2946
  %3015 = vmatprep.subr.bf16.mxu0 0
  %3016 = vmatpush1.bf16.msra.mxu0 %v2947
  %3017 = vmatprep.subr.bf16.mxu0 0
  %3018 = vmatpush1.bf16.msra.mxu0 %v2948
  %3019 = vmatprep.subr.bf16.mxu0 0
  %3020 = vmatpush1.bf16.msra.mxu0 %v2949
  %3021 = vmatprep.subr.bf16.mxu0 0
  %3022 = vmatpush1.bf16.msra.mxu0 %v2950
  %3023 = vmatprep.subr.bf16.mxu0 0
  %3024 = vmatpush1.bf16.msra.mxu0 %v2951
  %3025 = vmatprep.subr.bf16.mxu0 0
  %3026 = vmatpush1.bf16.msra.mxu0 %v2952
  %3027 = vmatprep.subr.bf16.mxu0 0
  %3028 = vmatpush1.bf16.msra.mxu0 %v2953
  %3029 = vmatprep.subr.bf16.mxu0 0
  %3030 = vmatpush1.bf16.msra.mxu0 %v2954
  %3031 = vmatprep.subr.bf16.mxu0 0
  %3032 = vmatpush1.bf16.msra.mxu0 %v2955
  %3033 = vmatprep.subr.bf16.mxu0 0
  %3034 = vmatpush1.bf16.msra.mxu0 %v2956
  %3035 = vmatprep.subr.bf16.mxu0 0
  %3036 = vmatpush1.bf16.msra.mxu0 %v2957
  %3037 = vmatprep.subr.bf16.mxu0 0
  %3038 = vmatpush1.bf16.msra.mxu0 %v2958
  %3039 = vmatprep.mubr.bf16.mxu0 %v2744
  %3040 = vmatmul.mubr.bf16.gmra.mrb[0].mxu0 %v2743
  %v3041 = vpop.f32.mrb[0].mxu0
  %v3042 = vadd.f32 0.0, %v3041
  %v3043 = vpop.f32.mrb[0].mxu0
  %v3044 = vpop.f32.mrb[0].mxu0
  %v3045 = vadd.f32 0.0, %v3044
  %v3046 = vpop.f32.mrb[0].mxu0
  %3047 = vmatprep.mubr.bf16.mxu0 %v2748
  %3048 = vmatmul.mubr.bf16.gmra.mrb[0].mxu0 %v2747
  %v3049 = vpop.f32.mrb[0].mxu0
  %v3050 = vadd.f32 0.0, %v3049
  %v3051 = vpop.f32.mrb[0].mxu0
  %v3052 = vpop.f32.mrb[0].mxu0
  %v3053 = vpop.f32.mrb[0].mxu0
  %3054 = vdwg.mxu0
  %3055 = vmatprep.subr.bf16.mxu0 0
  %3056 = vmatpush1.bf16.msra.mxu0 %v2959
  %3057 = vmatprep.subr.bf16.mxu0 0
  %3058 = vmatpush1.bf16.msra.mxu0 %v2960
  %3059 = vmatprep.subr.bf16.mxu0 0
  %3060 = vmatpush1.bf16.msra.mxu0 %v2961
  %3061 = vmatprep.subr.bf16.mxu0 0
  %3062 = vmatpush1.bf16.msra.mxu0 %v2962
  %3063 = vmatprep.subr.bf16.mxu0 0
  %3064 = vmatpush1.bf16.msra.mxu0 %v2963
  %3065 = vmatprep.subr.bf16.mxu0 0
  %3066 = vmatpush1.bf16.msra.mxu0 %v2964
  %3067 = vmatprep.subr.bf16.mxu0 0
  %3068 = vmatpush1.bf16.msra.mxu0 %v2965
  %3069 = vmatprep.subr.bf16.mxu0 0
  %3070 = vmatpush1.bf16.msra.mxu0 %v2966
  %3071 = vmatprep.subr.bf16.mxu0 0
  %3072 = vmatpush1.bf16.msra.mxu0 %v2967
  %3073 = vmatprep.subr.bf16.mxu0 0
  %3074 = vmatpush1.bf16.msra.mxu0 %v2968
  %3075 = vmatprep.subr.bf16.mxu0 0
  %3076 = vmatpush1.bf16.msra.mxu0 %v2969
  %3077 = vmatprep.subr.bf16.mxu0 0
  %3078 = vmatpush1.bf16.msra.mxu0 %v2970
  %3079 = vmatprep.subr.bf16.mxu0 0
  %3080 = vmatpush1.bf16.msra.mxu0 %v2971
  %3081 = vmatprep.subr.bf16.mxu0 0
  %3082 = vmatpush1.bf16.msra.mxu0 %v2972
  %3083 = vmatprep.subr.bf16.mxu0 0
  %3084 = vmatpush1.bf16.msra.mxu0 %v2973
  %3085 = vmatprep.subr.bf16.mxu0 0
  %3086 = vmatpush1.bf16.msra.mxu0 %v2974
  %3087 = vmatprep.mubr.bf16.mxu0 %v2746
  %3088 = vmatmul.mubr.bf16.gmra.mrb[0].mxu0 %v2745
  %v3089 = vpop.f32.mrb[0].mxu0
  %v3090 = vadd.f32 %v3042, %v3089
  %v3091 = vpop.f32.mrb[0].mxu0
  %v3092 = vpop.f32.mrb[0].mxu0
  %v3093 = vadd.f32 %v3045, %v3092
  %v3094 = vpop.f32.mrb[0].mxu0
  %3095 = vmatprep.mubr.bf16.mxu0 %v2750
  %3096 = vmatmul.mubr.bf16.gmra.mrb[0].mxu0 %v2749
  %v3097 = vpop.f32.mrb[0].mxu0
  %v3098 = vadd.f32 %v3050, %v3097
  %v3099 = vpop.f32.mrb[0].mxu0
  %v3100 = vpop.f32.mrb[0].mxu0
  %v3101 = vpop.f32.mrb[0].mxu0
  %3102 = vdwg.mxu0
  %v3103 = vmul.f32 %v2738, %v2738
  %vm3104 = vcmask 1041408
  %v3105 = vsel %vm3104, %v3103, 0.0
  %3106 = vadd.xlane.f32.xlu0 %v3105
  %v3107 = vpop.xlane.xlu0 %3106
  %v3108 = vmax.f32 %v3107, 1e-24
  %v3109 = vrsqrt.pop %v3108
  %v3110 = vmul.f32 %v2738, %v3109
  %v3111 = vmul.f32 %v3090, %v3090
  %v3112 = vmul.f32 %v3093, %v3093
  %v3113 = vmul.f32 %v3098, %v3098
  %3114 = vadd.xlane.f32.xlu0 %v3111
  %v3115 = vpop.xlane.xlu0 %3114
  %3116 = vadd.xlane.f32.xlu0 %v3112
  %v3117 = vpop.xlane.xlu0 %3116
  %v3118 = vsel %vm3104, %v3113, 0.0
  %3119 = vadd.xlane.f32.xlu0 %v3118
  %v3120 = vpop.xlane.xlu0 %3119
  %v3121 = vmax.f32 %v3115, 1e-24
  %v3122 = vmax.f32 %v3117, 1e-24
  %v3123 = vmax.f32 %v3120, 1e-24
  %v3124 = vrsqrt.pop %v3121
  %v3125 = vrsqrt.pop %v3122
  %v3126 = vrsqrt.pop %v3123
  %v3127 = vmul.f32 %v3090, %v3124
  %v3128 = vmul.f32 %v3093, %v3125
  %v3129 = vmul.f32 %v3098, %v3126
  %3130 = vmatprep.subr.mxu0 0.0
  %3131 = vmatpush1.xpose.msra.mxu0 %v3127
  %3132 = vmatprep.subr.mxu0 0.0
  %3133 = vmatpush1.xpose.msra.mxu0 %v3128
  %3134 = vmatprep.subr.mxu0 0.0
  %3135 = vmatpush1.xpose.msra.mxu0 %v3129
  %3136 = vmatprep.subr.mxu0 0.0
  %3137 = vmatpush1.xpose.msra.mxu0 0.0
  %3138 = vmatprep.subr.mxu0 0.0
  %3139 = vmatpush1.xpose.msra.mxu0 0.0
  %3140 = vmatprep.subr.mxu0 0.0
  %3141 = vmatpush1.xpose.msra.mxu0 0.0
  %3142 = vmatprep.subr.mxu0 0.0
  %3143 = vmatpush1.xpose.msra.mxu0 0.0
  %3144 = vmatprep.subr.mxu0 0.0
  %3145 = vmatpush1.xpose.msra.mxu0 0.0
  %3146 = vmatprep.subr.mxu0 0.0
  %3147 = vmatpush1.xpose.msra.mxu0 0.0
  %3148 = vmatprep.subr.mxu0 0.0
  %3149 = vmatpush1.xpose.msra.mxu0 0.0
  %3150 = vmatprep.subr.mxu0 0.0
  %3151 = vmatpush1.xpose.msra.mxu0 0.0
  %3152 = vmatprep.subr.mxu0 0.0
  %3153 = vmatpush1.xpose.msra.mxu0 0.0
  %3154 = vmatprep.subr.mxu0 0.0
  %3155 = vmatpush1.xpose.msra.mxu0 0.0
  %3156 = vmatprep.subr.mxu0 0.0
  %3157 = vmatpush1.xpose.msra.mxu0 0.0
  %3158 = vmatprep.subr.mxu0 0.0
  %3159 = vmatpush1.xpose.msra.mxu0 0.0
  %3160 = vmatprep.subr.mxu0 0.0
  %3161 = vmatpush1.xpose.msra.mxu0 0.0
  %3162 = vmatprep.subr.mxu0 0.0
  %3163 = vmatpush1.xpose.msra.mxu0 0.0
  %3164 = vmatprep.subr.mxu0 0.0
  %3165 = vmatpush1.xpose.msra.mxu0 0.0
  %3166 = vmatprep.subr.mxu0 0.0
  %3167 = vmatpush1.xpose.msra.mxu0 0.0
  %3168 = vmatprep.subr.mxu0 0.0
  %3169 = vmatpush1.xpose.msra.mxu0 0.0
  %3170 = vmatprep.subr.mxu0 0.0
  %3171 = vmatpush1.xpose.msra.mxu0 0.0
  %3172 = vmatprep.subr.mxu0 0.0
  %3173 = vmatpush1.xpose.msra.mxu0 0.0
  %3174 = vmatprep.subr.mxu0 0.0
  %3175 = vmatpush1.xpose.msra.mxu0 0.0
  %3176 = vmatprep.subr.mxu0 0.0
  %3177 = vmatpush1.xpose.msra.mxu0 0.0
  %3178 = vmatprep.subr.mxu0 0.0
  %3179 = vmatpush1.xpose.msra.mxu0 0.0
  %3180 = vmatprep.subr.mxu0 0.0
  %3181 = vmatpush1.xpose.msra.mxu0 0.0
  %3182 = vmatprep.subr.mxu0 0.0
  %3183 = vmatpush1.xpose.msra.mxu0 0.0
  %3184 = vmatprep.subr.mxu0 0.0
  %3185 = vmatpush1.xpose.msra.mxu0 0.0
  %3186 = vmatprep.subr.mxu0 0.0
  %3187 = vmatpush1.xpose.msra.mxu0 0.0
  %3188 = vmatprep.subr.mxu0 0.0
  %3189 = vmatpush1.xpose.msra.mxu0 0.0
  %3190 = vmatprep.subr.mxu0 0.0
  %3191 = vmatpush1.xpose.msra.mxu0 0.0
  %3192 = vmatprep.subr.mxu0 0.0
  %3193 = vmatpush1.xpose.msra.mxu0 0.0
  %3194 = vmatprep.mubr.f32.mxu0 0.0
  %3195 = vmatmul.mubr.f32.gmra.mrb[0].mxu0 %v3110
  %v3196 = vpop.f32.mrb[0].mxu0
  %v3197 = vadd.f32 0.0, %v3196
  %v3198 = vpop.f32.mrb[0].mxu0
  %3199 = vdwg.mxu0
  %v3200 = vlaneseq
  %v3201 = vshrl.u32 %v3200, 7
  %v3202 = vlaneseq
  %v3203 = vand.u32 %v3202, 127
  %v3204 = vmul.u32 %v3201, 9
  %vm3205 = vcmp.ge.s32.totalorder %v3203, %v3204
  %v3206 = vadd.s32 %v3201, 1
  %v3207 = vmul.u32 %v3206, 9
  %vm3208 = vcmp.lt.s32.totalorder %v3203, %v3207
  %vm3209 = vmand %vm3205, %vm3208
  %v3210 = vsel %vm3209, %v3197, -1e+30
  %vm3211 = vcmask 140288
  %v3212 = vsel %vm3211, %v3210, -inf
  %3213 = vmax.xlane.f32.xlu0 %v3212
  %v3214 = vpop.xlane.xlu0 %3213
  %v3215 = vsub.f32 %v3210, %v3214
  %v3216 = vmul.f32 %v3215, 1.442695
  %v3217 = vpow.pop %v3216
  %v3218 = vsel %vm3211, %v3217, 0.0
  %3219 = vadd.xlane.f32.xlu0 %v3218
  %v3220 = vpop.xlane.xlu0 %3219
  %v3221 = vrcp.pop %v3220
  %v3222 = vmul.f32 %v3217, %v3221
  %vm3223 = vcmask 146432
  %v3225 = vsel %vm3223, %v3222, 0
  %v3228 = vsel %vm3104, %v2235, 0
  %v3231 = vsel %vm3104, %v2236, 0
  %v3234 = vsel %vm3104, %v2237, 0
  %v3237 = vsel %vm3104, %v2238, 0
  %3239 = vmatprep.subr.mxu0 %v2228
  %3240 = vmatpush1.msra.mxu0 %v2227
  %3241 = vmatprep.subr.mxu0 %v2232
  %3242 = vmatpush1.msra.mxu0 %v2231
  %3243 = vmatprep.subr.mxu0 %v3231
  %3244 = vmatpush1.msra.mxu0 %v3228
  %3245 = vmatprep.subr.mxu0 0.0
  %3246 = vmatpush1.msra.mxu0 0.0
  %3247 = vmatprep.subr.mxu0 0.0
  %3248 = vmatpush1.msra.mxu0 0.0
  %3249 = vmatprep.subr.mxu0 0.0
  %3250 = vmatpush1.msra.mxu0 0.0
  %3251 = vmatprep.subr.mxu0 0.0
  %3252 = vmatpush1.msra.mxu0 0.0
  %3253 = vmatprep.subr.mxu0 0.0
  %3254 = vmatpush1.msra.mxu0 0.0
  %3255 = vmatprep.subr.mxu0 0.0
  %3256 = vmatpush1.msra.mxu0 0.0
  %3257 = vmatprep.subr.mxu0 0.0
  %3258 = vmatpush1.msra.mxu0 0.0
  %3259 = vmatprep.subr.mxu0 0.0
  %3260 = vmatpush1.msra.mxu0 0.0
  %3261 = vmatprep.subr.mxu0 0.0
  %3262 = vmatpush1.msra.mxu0 0.0
  %3263 = vmatprep.subr.mxu0 0.0
  %3264 = vmatpush1.msra.mxu0 0.0
  %3265 = vmatprep.subr.mxu0 0.0
  %3266 = vmatpush1.msra.mxu0 0.0
  %3267 = vmatprep.subr.mxu0 0.0
  %3268 = vmatpush1.msra.mxu0 0.0
  %3269 = vmatprep.subr.mxu0 0.0
  %3270 = vmatpush1.msra.mxu0 0.0
  %3271 = vmatprep.subr.mxu0 0.0
  %3272 = vmatpush1.msra.mxu0 0.0
  %3273 = vmatprep.subr.mxu0 0.0
  %3274 = vmatpush1.msra.mxu0 0.0
  %3275 = vmatprep.subr.mxu0 0.0
  %3276 = vmatpush1.msra.mxu0 0.0
  %3277 = vmatprep.subr.mxu0 0.0
  %3278 = vmatpush1.msra.mxu0 0.0
  %3279 = vmatprep.subr.mxu0 0.0
  %3280 = vmatpush1.msra.mxu0 0.0
  %3281 = vmatprep.subr.mxu0 0.0
  %3282 = vmatpush1.msra.mxu0 0.0
  %3283 = vmatprep.subr.mxu0 0.0
  %3284 = vmatpush1.msra.mxu0 0.0
  %3285 = vmatprep.subr.mxu0 0.0
  %3286 = vmatpush1.msra.mxu0 0.0
  %3287 = vmatprep.subr.mxu0 0.0
  %3288 = vmatpush1.msra.mxu0 0.0
  %3289 = vmatprep.subr.mxu0 0.0
  %3290 = vmatpush1.msra.mxu0 0.0
  %3291 = vmatprep.subr.mxu0 0.0
  %3292 = vmatpush1.msra.mxu0 0.0
  %3293 = vmatprep.subr.mxu0 0.0
  %3294 = vmatpush1.msra.mxu0 0.0
  %3295 = vmatprep.subr.mxu0 0.0
  %3296 = vmatpush1.msra.mxu0 0.0
  %3297 = vmatprep.subr.mxu0 0.0
  %3298 = vmatpush1.msra.mxu0 0.0
  %3299 = vmatprep.subr.mxu0 0.0
  %3300 = vmatpush1.msra.mxu0 0.0
  %3301 = vmatprep.subr.mxu0 0.0
  %3302 = vmatpush1.msra.mxu0 0.0
  %3303 = vmatprep.mubr.f32.mxu0 0.0
  %3304 = vmatmul.mubr.f32.gmra.mrb[0].mxu0 %v3225
  %v3305 = vpop.f32.mrb[0].mxu0
  %v3306 = vadd.f32 0.0, %v3305
  %v3307 = vpop.f32.mrb[0].mxu0
  %v3308 = vadd.f32 0.0, %v3307
  %3309 = vdwg.mxu0
  %3310 = vmatprep.subr.mxu0 %v2230
  %3311 = vmatpush1.msra.mxu0 %v2229
  %3312 = vmatprep.subr.mxu0 %v2234
  %3313 = vmatpush1.msra.mxu0 %v2233
  %3314 = vmatprep.subr.mxu0 %v3237
  %3315 = vmatpush1.msra.mxu0 %v3234
  %3316 = vmatprep.subr.mxu0 0.0
  %3317 = vmatpush1.msra.mxu0 0.0
  %3318 = vmatprep.subr.mxu0 0.0
  %3319 = vmatpush1.msra.mxu0 0.0
  %3320 = vmatprep.subr.mxu0 0.0
  %3321 = vmatpush1.msra.mxu0 0.0
  %3322 = vmatprep.subr.mxu0 0.0
  %3323 = vmatpush1.msra.mxu0 0.0
  %3324 = vmatprep.subr.mxu0 0.0
  %3325 = vmatpush1.msra.mxu0 0.0
  %3326 = vmatprep.subr.mxu0 0.0
  %3327 = vmatpush1.msra.mxu0 0.0
  %3328 = vmatprep.subr.mxu0 0.0
  %3329 = vmatpush1.msra.mxu0 0.0
  %3330 = vmatprep.subr.mxu0 0.0
  %3331 = vmatpush1.msra.mxu0 0.0
  %3332 = vmatprep.subr.mxu0 0.0
  %3333 = vmatpush1.msra.mxu0 0.0
  %3334 = vmatprep.subr.mxu0 0.0
  %3335 = vmatpush1.msra.mxu0 0.0
  %3336 = vmatprep.subr.mxu0 0.0
  %3337 = vmatpush1.msra.mxu0 0.0
  %3338 = vmatprep.subr.mxu0 0.0
  %3339 = vmatpush1.msra.mxu0 0.0
  %3340 = vmatprep.subr.mxu0 0.0
  %3341 = vmatpush1.msra.mxu0 0.0
  %3342 = vmatprep.subr.mxu0 0.0
  %3343 = vmatpush1.msra.mxu0 0.0
  %3344 = vmatprep.subr.mxu0 0.0
  %3345 = vmatpush1.msra.mxu0 0.0
  %3346 = vmatprep.subr.mxu0 0.0
  %3347 = vmatpush1.msra.mxu0 0.0
  %3348 = vmatprep.subr.mxu0 0.0
  %3349 = vmatpush1.msra.mxu0 0.0
  %3350 = vmatprep.subr.mxu0 0.0
  %3351 = vmatpush1.msra.mxu0 0.0
  %3352 = vmatprep.subr.mxu0 0.0
  %3353 = vmatpush1.msra.mxu0 0.0
  %3354 = vmatprep.subr.mxu0 0.0
  %3355 = vmatpush1.msra.mxu0 0.0
  %3356 = vmatprep.subr.mxu0 0.0
  %3357 = vmatpush1.msra.mxu0 0.0
  %3358 = vmatprep.subr.mxu0 0.0
  %3359 = vmatpush1.msra.mxu0 0.0
  %3360 = vmatprep.subr.mxu0 0.0
  %3361 = vmatpush1.msra.mxu0 0.0
  %3362 = vmatprep.subr.mxu0 0.0
  %3363 = vmatpush1.msra.mxu0 0.0
  %3364 = vmatprep.subr.mxu0 0.0
  %3365 = vmatpush1.msra.mxu0 0.0
  %3366 = vmatprep.subr.mxu0 0.0
  %3367 = vmatpush1.msra.mxu0 0.0
  %3368 = vmatprep.subr.mxu0 0.0
  %3369 = vmatpush1.msra.mxu0 0.0
  %3370 = vmatprep.subr.mxu0 0.0
  %3371 = vmatpush1.msra.mxu0 0.0
  %3372 = vmatprep.subr.mxu0 0.0
  %3373 = vmatpush1.msra.mxu0 0.0
  %3374 = vmatprep.mubr.f32.mxu0 0.0
  %3375 = vmatmul.mubr.f32.gmra.mrb[0].mxu0 %v3225
  %v3376 = vpop.f32.mrb[0].mxu0
  %v3377 = vadd.f32 0.0, %v3376
  %v3378 = vpop.f32.mrb[0].mxu0
  %v3379 = vadd.f32 0.0, %v3378
  %3380 = vdwg.mxu0
  %v3381 = vpack.c.bf16 %v3306, %v3306
  %v3382 = vpack.c.bf16 %v3308, %v3308
  %v3383 = vpack.c.bf16 %v3377, %v3377
  %v3384 = vpack.c.bf16 %v3379, %v3379
  %v3385 = vld [vmem:[%s7] sm:$0xf]
  %v3386 = vld [vmem:[%s7 + $0x4] sm:$0xf]
  %v3387 = vld [vmem:[%s7 + $0x8] sm:$0xf]
  %v3388 = vld [vmem:[%s7 + $0xc] sm:$0xf]
  %v3389 = vld [vmem:[%s7 + $0x10] sm:$0xf]
  %v3390 = vld [vmem:[%s7 + $0x14] sm:$0xf]
  %v3391 = vld [vmem:[%s7 + $0x18] sm:$0xf]
  %v3392 = vld [vmem:[%s7 + $0x1c] sm:$0xf]
  %v3393 = vld [vmem:[%s7 + $0x20] sm:$0xf]
  %v3394 = vld [vmem:[%s7 + $0x24] sm:$0xf]
  %v3395 = vld [vmem:[%s7 + $0x28] sm:$0xf]
  %v3396 = vld [vmem:[%s7 + $0x2c] sm:$0xf]
  %v3397 = vld [vmem:[%s7 + $0x30] sm:$0xf]
  %v3398 = vld [vmem:[%s7 + $0x34] sm:$0xf]
  %v3399 = vld [vmem:[%s7 + $0x38] sm:$0xf]
  %v3400 = vld [vmem:[%s7 + $0x3c] sm:$0xf]
  %v3401 = vld [vmem:[%s7 + $0x40] sm:$0xf]
  %v3402 = vld [vmem:[%s7 + $0x44] sm:$0xf]
  %v3403 = vld [vmem:[%s7 + $0x48] sm:$0xf]
  %v3404 = vld [vmem:[%s7 + $0x4c] sm:$0xf]
  %v3405 = vld [vmem:[%s7 + $0x50] sm:$0xf]
  %v3406 = vld [vmem:[%s7 + $0x54] sm:$0xf]
  %v3407 = vld [vmem:[%s7 + $0x58] sm:$0xf]
  %v3408 = vld [vmem:[%s7 + $0x5c] sm:$0xf]
  %v3409 = vld [vmem:[%s7 + $0x60] sm:$0xf]
  %v3410 = vld [vmem:[%s7 + $0x64] sm:$0xf]
  %v3411 = vld [vmem:[%s7 + $0x68] sm:$0xf]
  %v3412 = vld [vmem:[%s7 + $0x6c] sm:$0xf]
  %v3413 = vld [vmem:[%s7 + $0x70] sm:$0xf]
  %v3414 = vld [vmem:[%s7 + $0x74] sm:$0xf]
  %v3415 = vld [vmem:[%s7 + $0x78] sm:$0xf]
  %v3416 = vld [vmem:[%s7 + $0x7c] sm:$0xf]
  %v3417 = vld [vmem:[%s7 + $0x80] sm:$0xf]
  %v3418 = vld [vmem:[%s7 + $0x84] sm:$0xf]
  %v3419 = vld [vmem:[%s7 + $0x88] sm:$0xf]
  %v3420 = vld [vmem:[%s7 + $0x8c] sm:$0xf]
  %v3421 = vld [vmem:[%s7 + $0x90] sm:$0xf]
  %v3422 = vld [vmem:[%s7 + $0x94] sm:$0xf]
  %v3423 = vld [vmem:[%s7 + $0x98] sm:$0xf]
  %v3424 = vld [vmem:[%s7 + $0x9c] sm:$0xf]
  %v3425 = vld [vmem:[%s7 + $0xa0] sm:$0xf]
  %v3426 = vld [vmem:[%s7 + $0xa4] sm:$0xf]
  %v3427 = vld [vmem:[%s7 + $0xa8] sm:$0xf]
  %v3428 = vld [vmem:[%s7 + $0xac] sm:$0xf]
  %v3429 = vld [vmem:[%s7 + $0xb0] sm:$0xf]
  %v3430 = vld [vmem:[%s7 + $0xb4] sm:$0xf]
  %v3431 = vld [vmem:[%s7 + $0xb8] sm:$0xf]
  %v3432 = vld [vmem:[%s7 + $0xbc] sm:$0xf]
  %v3433 = vld [vmem:[%s7 + $0xc0] sm:$0xf]
  %v3434 = vld [vmem:[%s7 + $0xc4] sm:$0xf]
  %v3435 = vld [vmem:[%s7 + $0xc8] sm:$0xf]
  %v3436 = vld [vmem:[%s7 + $0xcc] sm:$0xf]
  %v3437 = vld [vmem:[%s7 + $0xd0] sm:$0xf]
  %v3438 = vld [vmem:[%s7 + $0xd4] sm:$0xf]
  %v3439 = vld [vmem:[%s7 + $0xd8] sm:$0xf]
  %v3440 = vld [vmem:[%s7 + $0xdc] sm:$0xf]
  %v3441 = vld [vmem:[%s7 + $0xe0] sm:$0xf]
  %v3442 = vld [vmem:[%s7 + $0xe4] sm:$0xf]
  %v3443 = vld [vmem:[%s7 + $0xe8] sm:$0xf]
  %v3444 = vld [vmem:[%s7 + $0xec] sm:$0xf]
  %v3445 = vld [vmem:[%s7 + $0xf0] sm:$0xf]
  %v3446 = vld [vmem:[%s7 + $0xf4] sm:$0xf]
  %v3447 = vld [vmem:[%s7 + $0xf8] sm:$0xf]
  %v3448 = vld [vmem:[%s7 + $0xfc] sm:$0xf]
  %v3513 = vunpack.c.l.b16 %v3385
  %v3514 = vunpack.c.l.b16 %v3386
  %v3515 = vunpack.c.l.b16 %v3387
  %v3516 = vunpack.c.l.b16 %v3388
  %v3517 = vunpack.c.l.b16 %v3389
  %v3518 = vunpack.c.l.b16 %v3390
  %v3519 = vunpack.c.l.b16 %v3391
  %v3520 = vunpack.c.l.b16 %v3392
  %v3521 = vunpack.c.l.b16 %v3393
  %v3522 = vunpack.c.l.b16 %v3394
  %v3523 = vunpack.c.l.b16 %v3395
  %v3524 = vunpack.c.l.b16 %v3396
  %v3525 = vunpack.c.l.b16 %v3397
  %v3526 = vunpack.c.l.b16 %v3398
  %v3527 = vunpack.c.l.b16 %v3399
  %v3528 = vunpack.c.l.b16 %v3400
  %v3529 = vunpack.c.l.b16 %v3401
  %v3530 = vunpack.c.l.b16 %v3402
  %v3531 = vunpack.c.l.b16 %v3403
  %v3532 = vunpack.c.l.b16 %v3404
  %v3533 = vunpack.c.l.b16 %v3405
  %v3534 = vunpack.c.l.b16 %v3406
  %v3535 = vunpack.c.l.b16 %v3407
  %v3536 = vunpack.c.l.b16 %v3408
  %v3537 = vunpack.c.l.b16 %v3409
  %v3538 = vunpack.c.l.b16 %v3410
  %v3539 = vunpack.c.l.b16 %v3411
  %v3540 = vunpack.c.l.b16 %v3412
  %v3541 = vunpack.c.l.b16 %v3413
  %v3542 = vunpack.c.l.b16 %v3414
  %v3543 = vunpack.c.l.b16 %v3415
  %v3544 = vunpack.c.l.b16 %v3416
  %v3545 = vunpack.c.l.b16 %v3417
  %v3546 = vunpack.c.l.b16 %v3418
  %v3547 = vunpack.c.l.b16 %v3419
  %v3548 = vunpack.c.l.b16 %v3420
  %v3549 = vunpack.c.l.b16 %v3421
  %v3550 = vunpack.c.l.b16 %v3422
  %v3551 = vunpack.c.l.b16 %v3423
  %v3552 = vunpack.c.l.b16 %v3424
  %v3553 = vunpack.c.l.b16 %v3425
  %v3554 = vunpack.c.l.b16 %v3426
  %v3555 = vunpack.c.l.b16 %v3427
  %v3556 = vunpack.c.l.b16 %v3428
  %v3557 = vunpack.c.l.b16 %v3429
  %v3558 = vunpack.c.l.b16 %v3430
  %v3559 = vunpack.c.l.b16 %v3431
  %v3560 = vunpack.c.l.b16 %v3432
  %v3561 = vunpack.c.l.b16 %v3433
  %v3562 = vunpack.c.l.b16 %v3434
  %v3563 = vunpack.c.l.b16 %v3435
  %v3564 = vunpack.c.l.b16 %v3436
  %v3565 = vunpack.c.l.b16 %v3437
  %v3566 = vunpack.c.l.b16 %v3438
  %v3567 = vunpack.c.l.b16 %v3439
  %v3568 = vunpack.c.l.b16 %v3440
  %v3569 = vunpack.c.l.b16 %v3441
  %v3570 = vunpack.c.l.b16 %v3442
  %v3571 = vunpack.c.l.b16 %v3443
  %v3572 = vunpack.c.l.b16 %v3444
  %v3573 = vunpack.c.l.b16 %v3445
  %v3574 = vunpack.c.l.b16 %v3446
  %v3575 = vunpack.c.l.b16 %v3447
  %v3576 = vunpack.c.l.b16 %v3448
  %v3577 = vpack.c.b16 %v3514, %v3513
  %v3578 = vpack.c.b16 %v3516, %v3515
  %v3579 = vpack.c.b16 %v3518, %v3517
  %v3580 = vpack.c.b16 %v3520, %v3519
  %v3581 = vpack.c.b16 %v3522, %v3521
  %v3582 = vpack.c.b16 %v3524, %v3523
  %v3583 = vpack.c.b16 %v3526, %v3525
  %v3584 = vpack.c.b16 %v3528, %v3527
  %v3585 = vpack.c.b16 %v3530, %v3529
  %v3586 = vpack.c.b16 %v3532, %v3531
  %v3587 = vpack.c.b16 %v3534, %v3533
  %v3588 = vpack.c.b16 %v3536, %v3535
  %v3589 = vpack.c.b16 %v3538, %v3537
  %v3590 = vpack.c.b16 %v3540, %v3539
  %v3591 = vpack.c.b16 %v3542, %v3541
  %v3592 = vpack.c.b16 %v3544, %v3543
  %v3593 = vpack.c.b16 %v3546, %v3545
  %v3594 = vpack.c.b16 %v3548, %v3547
  %v3595 = vpack.c.b16 %v3550, %v3549
  %v3596 = vpack.c.b16 %v3552, %v3551
  %v3597 = vpack.c.b16 %v3554, %v3553
  %v3598 = vpack.c.b16 %v3556, %v3555
  %v3599 = vpack.c.b16 %v3558, %v3557
  %v3600 = vpack.c.b16 %v3560, %v3559
  %v3601 = vpack.c.b16 %v3562, %v3561
  %v3602 = vpack.c.b16 %v3564, %v3563
  %v3603 = vpack.c.b16 %v3566, %v3565
  %v3604 = vpack.c.b16 %v3568, %v3567
  %v3605 = vpack.c.b16 %v3570, %v3569
  %v3606 = vpack.c.b16 %v3572, %v3571
  %v3607 = vpack.c.b16 %v3574, %v3573
  %v3608 = vpack.c.b16 %v3576, %v3575
  %3641 = vmatprep.subr.bf16.mxu0 0
  %3642 = vmatpush1.bf16.msra.mxu0 %v3577
  %3643 = vmatprep.subr.bf16.mxu0 0
  %3644 = vmatpush1.bf16.msra.mxu0 %v3578
  %3645 = vmatprep.subr.bf16.mxu0 0
  %3646 = vmatpush1.bf16.msra.mxu0 %v3579
  %3647 = vmatprep.subr.bf16.mxu0 0
  %3648 = vmatpush1.bf16.msra.mxu0 %v3580
  %3649 = vmatprep.subr.bf16.mxu0 0
  %3650 = vmatpush1.bf16.msra.mxu0 %v3581
  %3651 = vmatprep.subr.bf16.mxu0 0
  %3652 = vmatpush1.bf16.msra.mxu0 %v3582
  %3653 = vmatprep.subr.bf16.mxu0 0
  %3654 = vmatpush1.bf16.msra.mxu0 %v3583
  %3655 = vmatprep.subr.bf16.mxu0 0
  %3656 = vmatpush1.bf16.msra.mxu0 %v3584
  %3657 = vmatprep.subr.bf16.mxu0 0
  %3658 = vmatpush1.bf16.msra.mxu0 %v3585
  %3659 = vmatprep.subr.bf16.mxu0 0
  %3660 = vmatpush1.bf16.msra.mxu0 %v3586
  %3661 = vmatprep.subr.bf16.mxu0 0
  %3662 = vmatpush1.bf16.msra.mxu0 %v3587
  %3663 = vmatprep.subr.bf16.mxu0 0
  %3664 = vmatpush1.bf16.msra.mxu0 %v3588
  %3665 = vmatprep.subr.bf16.mxu0 0
  %3666 = vmatpush1.bf16.msra.mxu0 %v3589
  %3667 = vmatprep.subr.bf16.mxu0 0
  %3668 = vmatpush1.bf16.msra.mxu0 %v3590
  %3669 = vmatprep.subr.bf16.mxu0 0
  %3670 = vmatpush1.bf16.msra.mxu0 %v3591
  %3671 = vmatprep.subr.bf16.mxu0 0
  %3672 = vmatpush1.bf16.msra.mxu0 %v3592
  %3673 = vmatprep.mubr.bf16.mxu0 %v3382
  %3674 = vmatmul.mubr.bf16.gmra.mrb[0].mxu0 %v3381
  %v3675 = vpop.f32.mrb[0].mxu0
  %v3676 = vadd.f32 0.0, %v3675
  %v3677 = vpop.f32.mrb[0].mxu0
  %v3678 = vpop.f32.mrb[0].mxu0
  %v3679 = vpop.f32.mrb[0].mxu0
  %3680 = vdwg.mxu0
  %3681 = vmatprep.subr.bf16.mxu0 0
  %3682 = vmatpush1.bf16.msra.mxu0 %v3593
  %3683 = vmatprep.subr.bf16.mxu0 0
  %3684 = vmatpush1.bf16.msra.mxu0 %v3594
  %3685 = vmatprep.subr.bf16.mxu0 0
  %3686 = vmatpush1.bf16.msra.mxu0 %v3595
  %3687 = vmatprep.subr.bf16.mxu0 0
  %3688 = vmatpush1.bf16.msra.mxu0 %v3596
  %3689 = vmatprep.subr.bf16.mxu0 0
  %3690 = vmatpush1.bf16.msra.mxu0 %v3597
  %3691 = vmatprep.subr.bf16.mxu0 0
  %3692 = vmatpush1.bf16.msra.mxu0 %v3598
  %3693 = vmatprep.subr.bf16.mxu0 0
  %3694 = vmatpush1.bf16.msra.mxu0 %v3599
  %3695 = vmatprep.subr.bf16.mxu0 0
  %3696 = vmatpush1.bf16.msra.mxu0 %v3600
  %3697 = vmatprep.subr.bf16.mxu0 0
  %3698 = vmatpush1.bf16.msra.mxu0 %v3601
  %3699 = vmatprep.subr.bf16.mxu0 0
  %3700 = vmatpush1.bf16.msra.mxu0 %v3602
  %3701 = vmatprep.subr.bf16.mxu0 0
  %3702 = vmatpush1.bf16.msra.mxu0 %v3603
  %3703 = vmatprep.subr.bf16.mxu0 0
  %3704 = vmatpush1.bf16.msra.mxu0 %v3604
  %3705 = vmatprep.subr.bf16.mxu0 0
  %3706 = vmatpush1.bf16.msra.mxu0 %v3605
  %3707 = vmatprep.subr.bf16.mxu0 0
  %3708 = vmatpush1.bf16.msra.mxu0 %v3606
  %3709 = vmatprep.subr.bf16.mxu0 0
  %3710 = vmatpush1.bf16.msra.mxu0 %v3607
  %3711 = vmatprep.subr.bf16.mxu0 0
  %3712 = vmatpush1.bf16.msra.mxu0 %v3608
  %3713 = vmatprep.mubr.bf16.mxu0 %v3384
  %3714 = vmatmul.mubr.bf16.gmra.mrb[0].mxu0 %v3383
  %v3715 = vpop.f32.mrb[0].mxu0
  %v3716 = vadd.f32 %v3676, %v3715
  %v3717 = vpop.f32.mrb[0].mxu0
  %v3718 = vpop.f32.mrb[0].mxu0
  %v3719 = vpop.f32.mrb[0].mxu0
  %3720 = vdwg.mxu0
  %v3721 = vld [vmem:[%s8] sm:$0xf]
  %v3722 = vld [vmem:[%s8 + $0x4] sm:$0xf]
  %v3723 = vld [vmem:[%s8 + $0x8] sm:$0xf]
  %v3724 = vld [vmem:[%s8 + $0xc] sm:$0xf]
  %v3725 = vld [vmem:[%s8 + $0x10] sm:$0xf]
  %v3726 = vld [vmem:[%s8 + $0x14] sm:$0xf]
  %v3727 = vld [vmem:[%s8 + $0x18] sm:$0xf]
  %v3728 = vld [vmem:[%s8 + $0x1c] sm:$0xf]
  %v3729 = vld [vmem:[%s8 + $0x20] sm:$0xf]
  %v3730 = vld [vmem:[%s8 + $0x24] sm:$0xf]
  %v3731 = vld [vmem:[%s8 + $0x28] sm:$0xf]
  %v3732 = vld [vmem:[%s8 + $0x2c] sm:$0xf]
  %v3733 = vld [vmem:[%s8 + $0x30] sm:$0xf]
  %v3734 = vld [vmem:[%s8 + $0x34] sm:$0xf]
  %v3735 = vld [vmem:[%s8 + $0x38] sm:$0xf]
  %v3736 = vld [vmem:[%s8 + $0x3c] sm:$0xf]
  %v3737 = vld [vmem:[%s8 + $0x40] sm:$0xf]
  %v3738 = vld [vmem:[%s8 + $0x44] sm:$0xf]
  %v3739 = vld [vmem:[%s8 + $0x48] sm:$0xf]
  %v3740 = vld [vmem:[%s8 + $0x4c] sm:$0xf]
  %v3741 = vld [vmem:[%s8 + $0x50] sm:$0xf]
  %v3742 = vld [vmem:[%s8 + $0x54] sm:$0xf]
  %v3743 = vld [vmem:[%s8 + $0x58] sm:$0xf]
  %v3744 = vld [vmem:[%s8 + $0x5c] sm:$0xf]
  %v3745 = vld [vmem:[%s8 + $0x60] sm:$0xf]
  %v3746 = vld [vmem:[%s8 + $0x64] sm:$0xf]
  %v3747 = vld [vmem:[%s8 + $0x68] sm:$0xf]
  %v3748 = vld [vmem:[%s8 + $0x6c] sm:$0xf]
  %v3749 = vld [vmem:[%s8 + $0x70] sm:$0xf]
  %v3750 = vld [vmem:[%s8 + $0x74] sm:$0xf]
  %v3751 = vld [vmem:[%s8 + $0x78] sm:$0xf]
  %v3752 = vld [vmem:[%s8 + $0x7c] sm:$0xf]
  %v3753 = vld [vmem:[%s8 + $0x80] sm:$0xf]
  %v3754 = vld [vmem:[%s8 + $0x84] sm:$0xf]
  %v3755 = vld [vmem:[%s8 + $0x88] sm:$0xf]
  %v3756 = vld [vmem:[%s8 + $0x8c] sm:$0xf]
  %v3757 = vld [vmem:[%s8 + $0x90] sm:$0xf]
  %v3758 = vld [vmem:[%s8 + $0x94] sm:$0xf]
  %v3759 = vld [vmem:[%s8 + $0x98] sm:$0xf]
  %v3760 = vld [vmem:[%s8 + $0x9c] sm:$0xf]
  %v3761 = vld [vmem:[%s8 + $0xa0] sm:$0xf]
  %v3762 = vld [vmem:[%s8 + $0xa4] sm:$0xf]
  %v3763 = vld [vmem:[%s8 + $0xa8] sm:$0xf]
  %v3764 = vld [vmem:[%s8 + $0xac] sm:$0xf]
  %v3765 = vld [vmem:[%s8 + $0xb0] sm:$0xf]
  %v3766 = vld [vmem:[%s8 + $0xb4] sm:$0xf]
  %v3767 = vld [vmem:[%s8 + $0xb8] sm:$0xf]
  %v3768 = vld [vmem:[%s8 + $0xbc] sm:$0xf]
  %v3769 = vld [vmem:[%s8 + $0xc0] sm:$0xf]
  %v3770 = vld [vmem:[%s8 + $0xc4] sm:$0xf]
  %v3771 = vld [vmem:[%s8 + $0xc8] sm:$0xf]
  %v3772 = vld [vmem:[%s8 + $0xcc] sm:$0xf]
  %v3773 = vld [vmem:[%s8 + $0xd0] sm:$0xf]
  %v3774 = vld [vmem:[%s8 + $0xd4] sm:$0xf]
  %v3775 = vld [vmem:[%s8 + $0xd8] sm:$0xf]
  %v3776 = vld [vmem:[%s8 + $0xdc] sm:$0xf]
  %v3777 = vld [vmem:[%s8 + $0xe0] sm:$0xf]
  %v3778 = vld [vmem:[%s8 + $0xe4] sm:$0xf]
  %v3779 = vld [vmem:[%s8 + $0xe8] sm:$0xf]
  %v3780 = vld [vmem:[%s8 + $0xec] sm:$0xf]
  %v3781 = vld [vmem:[%s8 + $0xf0] sm:$0xf]
  %v3782 = vld [vmem:[%s8 + $0xf4] sm:$0xf]
  %v3783 = vld [vmem:[%s8 + $0xf8] sm:$0xf]
  %v3784 = vld [vmem:[%s8 + $0xfc] sm:$0xf]
  %v3785 = vld [vmem:[%s8 + $0x100] sm:$0xf]
  %v3786 = vld [vmem:[%s8 + $0x104] sm:$0xf]
  %v3787 = vld [vmem:[%s8 + $0x108] sm:$0xf]
  %v3788 = vld [vmem:[%s8 + $0x10c] sm:$0xf]
  %v3789 = vld [vmem:[%s8 + $0x110] sm:$0xf]
  %v3790 = vld [vmem:[%s8 + $0x114] sm:$0xf]
  %v3791 = vld [vmem:[%s8 + $0x118] sm:$0xf]
  %v3792 = vld [vmem:[%s8 + $0x11c] sm:$0xf]
  %v3793 = vld [vmem:[%s8 + $0x120] sm:$0xf]
  %v3794 = vld [vmem:[%s8 + $0x124] sm:$0xf]
  %v3795 = vld [vmem:[%s8 + $0x128] sm:$0xf]
  %v3796 = vld [vmem:[%s8 + $0x12c] sm:$0xf]
  %v3797 = vld [vmem:[%s8 + $0x130] sm:$0xf]
  %v3798 = vld [vmem:[%s8 + $0x134] sm:$0xf]
  %v3799 = vld [vmem:[%s8 + $0x138] sm:$0xf]
  %v3800 = vld [vmem:[%s8 + $0x13c] sm:$0xf]
  %v3801 = vld [vmem:[%s8 + $0x140] sm:$0xf]
  %v3802 = vld [vmem:[%s8 + $0x144] sm:$0xf]
  %v3803 = vld [vmem:[%s8 + $0x148] sm:$0xf]
  %v3804 = vld [vmem:[%s8 + $0x14c] sm:$0xf]
  %v3805 = vld [vmem:[%s8 + $0x150] sm:$0xf]
  %v3806 = vld [vmem:[%s8 + $0x154] sm:$0xf]
  %v3807 = vld [vmem:[%s8 + $0x158] sm:$0xf]
  %v3808 = vld [vmem:[%s8 + $0x15c] sm:$0xf]
  %v3809 = vld [vmem:[%s8 + $0x160] sm:$0xf]
  %v3810 = vld [vmem:[%s8 + $0x164] sm:$0xf]
  %v3811 = vld [vmem:[%s8 + $0x168] sm:$0xf]
  %v3812 = vld [vmem:[%s8 + $0x16c] sm:$0xf]
  %v3813 = vld [vmem:[%s8 + $0x170] sm:$0xf]
  %v3814 = vld [vmem:[%s8 + $0x174] sm:$0xf]
  %v3815 = vld [vmem:[%s8 + $0x178] sm:$0xf]
  %v3816 = vld [vmem:[%s8 + $0x17c] sm:$0xf]
  %v3913 = vunpack.c.l.b16 %v3721
  %v3914 = vunpack.c.l.b16 %v3722
  %v3915 = vunpack.c.l.b16 %v3723
  %v3916 = vunpack.c.l.b16 %v3724
  %v3917 = vunpack.c.l.b16 %v3725
  %v3918 = vunpack.c.l.b16 %v3726
  %v3919 = vunpack.c.l.b16 %v3727
  %v3920 = vunpack.c.l.b16 %v3728
  %v3921 = vunpack.c.l.b16 %v3729
  %v3922 = vunpack.c.l.b16 %v3730
  %v3923 = vunpack.c.l.b16 %v3731
  %v3924 = vunpack.c.l.b16 %v3732
  %v3925 = vunpack.c.l.b16 %v3733
  %v3926 = vunpack.c.l.b16 %v3734
  %v3927 = vunpack.c.l.b16 %v3735
  %v3928 = vunpack.c.l.b16 %v3736
  %v3929 = vunpack.c.l.b16 %v3737
  %v3930 = vunpack.c.l.b16 %v3738
  %v3931 = vunpack.c.l.b16 %v3739
  %v3932 = vunpack.c.l.b16 %v3740
  %v3933 = vunpack.c.l.b16 %v3741
  %v3934 = vunpack.c.l.b16 %v3742
  %v3935 = vunpack.c.l.b16 %v3743
  %v3936 = vunpack.c.l.b16 %v3744
  %v3937 = vunpack.c.l.b16 %v3745
  %v3938 = vunpack.c.l.b16 %v3746
  %v3939 = vunpack.c.l.b16 %v3747
  %v3940 = vunpack.c.l.b16 %v3748
  %v3941 = vunpack.c.l.b16 %v3749
  %v3942 = vunpack.c.l.b16 %v3750
  %v3943 = vunpack.c.l.b16 %v3751
  %v3944 = vunpack.c.l.b16 %v3752
  %v3945 = vunpack.c.l.b16 %v3753
  %v3946 = vunpack.c.l.b16 %v3754
  %v3947 = vunpack.c.l.b16 %v3755
  %v3948 = vunpack.c.l.b16 %v3756
  %v3949 = vunpack.c.l.b16 %v3757
  %v3950 = vunpack.c.l.b16 %v3758
  %v3951 = vunpack.c.l.b16 %v3759
  %v3952 = vunpack.c.l.b16 %v3760
  %v3953 = vunpack.c.l.b16 %v3761
  %v3954 = vunpack.c.l.b16 %v3762
  %v3955 = vunpack.c.l.b16 %v3763
  %v3956 = vunpack.c.l.b16 %v3764
  %v3957 = vunpack.c.l.b16 %v3765
  %v3958 = vunpack.c.l.b16 %v3766
  %v3959 = vunpack.c.l.b16 %v3767
  %v3960 = vunpack.c.l.b16 %v3768
  %v3961 = vunpack.c.l.b16 %v3769
  %v3962 = vunpack.c.l.b16 %v3770
  %v3963 = vunpack.c.l.b16 %v3771
  %v3964 = vunpack.c.l.b16 %v3772
  %v3965 = vunpack.c.l.b16 %v3773
  %v3966 = vunpack.c.l.b16 %v3774
  %v3967 = vunpack.c.l.b16 %v3775
  %v3968 = vunpack.c.l.b16 %v3776
  %v3969 = vunpack.c.l.b16 %v3777
  %v3970 = vunpack.c.l.b16 %v3778
  %v3971 = vunpack.c.l.b16 %v3779
  %v3972 = vunpack.c.l.b16 %v3780
  %v3973 = vunpack.c.l.b16 %v3781
  %v3974 = vunpack.c.l.b16 %v3782
  %v3975 = vunpack.c.l.b16 %v3783
  %v3976 = vunpack.c.l.b16 %v3784
  %v3977 = vunpack.c.l.b16 %v3785
  %v3978 = vunpack.c.l.b16 %v3786
  %v3979 = vunpack.c.l.b16 %v3787
  %v3980 = vunpack.c.l.b16 %v3788
  %v3981 = vunpack.c.l.b16 %v3789
  %v3982 = vunpack.c.l.b16 %v3790
  %v3983 = vunpack.c.l.b16 %v3791
  %v3984 = vunpack.c.l.b16 %v3792
  %v3985 = vunpack.c.l.b16 %v3793
  %v3986 = vunpack.c.l.b16 %v3794
  %v3987 = vunpack.c.l.b16 %v3795
  %v3988 = vunpack.c.l.b16 %v3796
  %v3989 = vunpack.c.l.b16 %v3797
  %v3990 = vunpack.c.l.b16 %v3798
  %v3991 = vunpack.c.l.b16 %v3799
  %v3992 = vunpack.c.l.b16 %v3800
  %v3993 = vunpack.c.l.b16 %v3801
  %v3994 = vunpack.c.l.b16 %v3802
  %v3995 = vunpack.c.l.b16 %v3803
  %v3996 = vunpack.c.l.b16 %v3804
  %v3997 = vunpack.c.l.b16 %v3805
  %v3998 = vunpack.c.l.b16 %v3806
  %v3999 = vunpack.c.l.b16 %v3807
  %v4000 = vunpack.c.l.b16 %v3808
  %v4001 = vunpack.c.l.b16 %v3809
  %v4002 = vunpack.c.l.b16 %v3810
  %v4003 = vunpack.c.l.b16 %v3811
  %v4004 = vunpack.c.l.b16 %v3812
  %v4005 = vunpack.c.l.b16 %v3813
  %v4006 = vunpack.c.l.b16 %v3814
  %v4007 = vunpack.c.l.b16 %v3815
  %v4008 = vunpack.c.l.b16 %v3816
  %v4009 = vpack.c.b16 %v3914, %v3913
  %v4010 = vpack.c.b16 %v3916, %v3915
  %v4011 = vpack.c.b16 %v3918, %v3917
  %v4012 = vpack.c.b16 %v3920, %v3919
  %v4013 = vpack.c.b16 %v3922, %v3921
  %v4014 = vpack.c.b16 %v3924, %v3923
  %v4015 = vpack.c.b16 %v3926, %v3925
  %v4016 = vpack.c.b16 %v3928, %v3927
  %v4017 = vpack.c.b16 %v3930, %v3929
  %v4018 = vpack.c.b16 %v3932, %v3931
  %v4019 = vpack.c.b16 %v3934, %v3933
  %v4020 = vpack.c.b16 %v3936, %v3935
  %v4021 = vpack.c.b16 %v3938, %v3937
  %v4022 = vpack.c.b16 %v3940, %v3939
  %v4023 = vpack.c.b16 %v3942, %v3941
  %v4024 = vpack.c.b16 %v3944, %v3943
  %v4025 = vpack.c.b16 %v3946, %v3945
  %v4026 = vpack.c.b16 %v3948, %v3947
  %v4027 = vpack.c.b16 %v3950, %v3949
  %v4028 = vpack.c.b16 %v3952, %v3951
  %v4029 = vpack.c.b16 %v3954, %v3953
  %v4030 = vpack.c.b16 %v3956, %v3955
  %v4031 = vpack.c.b16 %v3958, %v3957
  %v4032 = vpack.c.b16 %v3960, %v3959
  %v4033 = vpack.c.b16 %v3962, %v3961
  %v4034 = vpack.c.b16 %v3964, %v3963
  %v4035 = vpack.c.b16 %v3966, %v3965
  %v4036 = vpack.c.b16 %v3968, %v3967
  %v4037 = vpack.c.b16 %v3970, %v3969
  %v4038 = vpack.c.b16 %v3972, %v3971
  %v4039 = vpack.c.b16 %v3974, %v3973
  %v4040 = vpack.c.b16 %v3976, %v3975
  %v4041 = vpack.c.b16 %v3978, %v3977
  %v4042 = vpack.c.b16 %v3980, %v3979
  %v4043 = vpack.c.b16 %v3982, %v3981
  %v4044 = vpack.c.b16 %v3984, %v3983
  %v4045 = vpack.c.b16 %v3986, %v3985
  %v4046 = vpack.c.b16 %v3988, %v3987
  %v4047 = vpack.c.b16 %v3990, %v3989
  %v4048 = vpack.c.b16 %v3992, %v3991
  %v4049 = vpack.c.b16 %v3994, %v3993
  %v4050 = vpack.c.b16 %v3996, %v3995
  %v4051 = vpack.c.b16 %v3998, %v3997
  %v4052 = vpack.c.b16 %v4000, %v3999
  %v4053 = vpack.c.b16 %v4002, %v4001
  %v4054 = vpack.c.b16 %v4004, %v4003
  %v4055 = vpack.c.b16 %v4006, %v4005
  %v4056 = vpack.c.b16 %v4008, %v4007
  %4105 = vmatprep.subr.bf16.mxu0 0
  %4106 = vmatpush1.bf16.msra.mxu0 %v4009
  %4107 = vmatprep.subr.bf16.mxu0 0
  %4108 = vmatpush1.bf16.msra.mxu0 %v4010
  %4109 = vmatprep.subr.bf16.mxu0 0
  %4110 = vmatpush1.bf16.msra.mxu0 %v4011
  %4111 = vmatprep.subr.bf16.mxu0 0
  %4112 = vmatpush1.bf16.msra.mxu0 %v4012
  %4113 = vmatprep.subr.bf16.mxu0 0
  %4114 = vmatpush1.bf16.msra.mxu0 %v4013
  %4115 = vmatprep.subr.bf16.mxu0 0
  %4116 = vmatpush1.bf16.msra.mxu0 %v4014
  %4117 = vmatprep.subr.bf16.mxu0 0
  %4118 = vmatpush1.bf16.msra.mxu0 %v4015
  %4119 = vmatprep.subr.bf16.mxu0 0
  %4120 = vmatpush1.bf16.msra.mxu0 %v4016
  %4121 = vmatprep.subr.bf16.mxu0 0
  %4122 = vmatpush1.bf16.msra.mxu0 %v4017
  %4123 = vmatprep.subr.bf16.mxu0 0
  %4124 = vmatpush1.bf16.msra.mxu0 %v4018
  %4125 = vmatprep.subr.bf16.mxu0 0
  %4126 = vmatpush1.bf16.msra.mxu0 %v4019
  %4127 = vmatprep.subr.bf16.mxu0 0
  %4128 = vmatpush1.bf16.msra.mxu0 %v4020
  %4129 = vmatprep.subr.bf16.mxu0 0
  %4130 = vmatpush1.bf16.msra.mxu0 %v4021
  %4131 = vmatprep.subr.bf16.mxu0 0
  %4132 = vmatpush1.bf16.msra.mxu0 %v4022
  %4133 = vmatprep.subr.bf16.mxu0 0
  %4134 = vmatpush1.bf16.msra.mxu0 %v4023
  %4135 = vmatprep.subr.bf16.mxu0 0
  %4136 = vmatpush1.bf16.msra.mxu0 %v4024
  %4137 = vmatprep.mubr.bf16.mxu0 %v2222
  %4138 = vmatmul.mubr.bf16.gmra.mrb[0].mxu0 %v2221
  %v4139 = vpop.f32.mrb[0].mxu0
  %v4140 = vadd.f32 0.0, %v4139
  %v4141 = vpop.f32.mrb[0].mxu0
  %v4142 = vpop.f32.mrb[0].mxu0
  %v4143 = vpop.f32.mrb[0].mxu0
  %4144 = vdwg.mxu0
  %4145 = vmatprep.subr.bf16.mxu0 0
  %4146 = vmatpush1.bf16.msra.mxu0 %v4025
  %4147 = vmatprep.subr.bf16.mxu0 0
  %4148 = vmatpush1.bf16.msra.mxu0 %v4026
  %4149 = vmatprep.subr.bf16.mxu0 0
  %4150 = vmatpush1.bf16.msra.mxu0 %v4027
  %4151 = vmatprep.subr.bf16.mxu0 0
  %4152 = vmatpush1.bf16.msra.mxu0 %v4028
  %4153 = vmatprep.subr.bf16.mxu0 0
  %4154 = vmatpush1.bf16.msra.mxu0 %v4029
  %4155 = vmatprep.subr.bf16.mxu0 0
  %4156 = vmatpush1.bf16.msra.mxu0 %v4030
  %4157 = vmatprep.subr.bf16.mxu0 0
  %4158 = vmatpush1.bf16.msra.mxu0 %v4031
  %4159 = vmatprep.subr.bf16.mxu0 0
  %4160 = vmatpush1.bf16.msra.mxu0 %v4032
  %4161 = vmatprep.subr.bf16.mxu0 0
  %4162 = vmatpush1.bf16.msra.mxu0 %v4033
  %4163 = vmatprep.subr.bf16.mxu0 0
  %4164 = vmatpush1.bf16.msra.mxu0 %v4034
  %4165 = vmatprep.subr.bf16.mxu0 0
  %4166 = vmatpush1.bf16.msra.mxu0 %v4035
  %4167 = vmatprep.subr.bf16.mxu0 0
  %4168 = vmatpush1.bf16.msra.mxu0 %v4036
  %4169 = vmatprep.subr.bf16.mxu0 0
  %4170 = vmatpush1.bf16.msra.mxu0 %v4037
  %4171 = vmatprep.subr.bf16.mxu0 0
  %4172 = vmatpush1.bf16.msra.mxu0 %v4038
  %4173 = vmatprep.subr.bf16.mxu0 0
  %4174 = vmatpush1.bf16.msra.mxu0 %v4039
  %4175 = vmatprep.subr.bf16.mxu0 0
  %4176 = vmatpush1.bf16.msra.mxu0 %v4040
  %4177 = vmatprep.mubr.bf16.mxu0 %v2224
  %4178 = vmatmul.mubr.bf16.gmra.mrb[0].mxu0 %v2223
  %v4179 = vpop.f32.mrb[0].mxu0
  %v4180 = vadd.f32 %v4140, %v4179
  %v4181 = vpop.f32.mrb[0].mxu0
  %v4182 = vpop.f32.mrb[0].mxu0
  %v4183 = vpop.f32.mrb[0].mxu0
  %4184 = vdwg.mxu0
  %4185 = vmatprep.subr.bf16.mxu0 0
  %4186 = vmatpush1.bf16.msra.mxu0 %v4041
  %4187 = vmatprep.subr.bf16.mxu0 0
  %4188 = vmatpush1.bf16.msra.mxu0 %v4042
  %4189 = vmatprep.subr.bf16.mxu0 0
  %4190 = vmatpush1.bf16.msra.mxu0 %v4043
  %4191 = vmatprep.subr.bf16.mxu0 0
  %4192 = vmatpush1.bf16.msra.mxu0 %v4044
  %4193 = vmatprep.subr.bf16.mxu0 0
  %4194 = vmatpush1.bf16.msra.mxu0 %v4045
  %4195 = vmatprep.subr.bf16.mxu0 0
  %4196 = vmatpush1.bf16.msra.mxu0 %v4046
  %4197 = vmatprep.subr.bf16.mxu0 0
  %4198 = vmatpush1.bf16.msra.mxu0 %v4047
  %4199 = vmatprep.subr.bf16.mxu0 0
  %4200 = vmatpush1.bf16.msra.mxu0 %v4048
  %4201 = vmatprep.subr.bf16.mxu0 0
  %4202 = vmatpush1.bf16.msra.mxu0 %v4049
  %4203 = vmatprep.subr.bf16.mxu0 0
  %4204 = vmatpush1.bf16.msra.mxu0 %v4050
  %4205 = vmatprep.subr.bf16.mxu0 0
  %4206 = vmatpush1.bf16.msra.mxu0 %v4051
  %4207 = vmatprep.subr.bf16.mxu0 0
  %4208 = vmatpush1.bf16.msra.mxu0 %v4052
  %4209 = vmatprep.subr.bf16.mxu0 0
  %4210 = vmatpush1.bf16.msra.mxu0 %v4053
  %4211 = vmatprep.subr.bf16.mxu0 0
  %4212 = vmatpush1.bf16.msra.mxu0 %v4054
  %4213 = vmatprep.subr.bf16.mxu0 0
  %4214 = vmatpush1.bf16.msra.mxu0 %v4055
  %4215 = vmatprep.subr.bf16.mxu0 0
  %4216 = vmatpush1.bf16.msra.mxu0 %v4056
  %4217 = vmatprep.mubr.bf16.mxu0 %v2226
  %4218 = vmatmul.mubr.bf16.gmra.mrb[0].mxu0 %v2225
  %v4219 = vpop.f32.mrb[0].mxu0
  %v4220 = vadd.f32 %v4180, %v4219
  %v4221 = vpop.f32.mrb[0].mxu0
  %v4222 = vpop.f32.mrb[0].mxu0
  %v4223 = vpop.f32.mrb[0].mxu0
  %4224 = vdwg.mxu0
  %v4225 = vld [vmem:[%s2] sm:$0x3]
  %v4226 = vld [vmem:[%s9] sm:$0x3]
  %v4227 = vld [vmem:[%s10] sm:$0x1]
  %v4229 = vlaneseq
  %v4230 = vshrl.u32 %v4229, 7
  %v4231 = vsub.s32 0, %v4230
  %v4232 = vrot.slane %v4227, %v4231
  %vm4234 = vcmask 15360
  %v4236 = vsel %vm4234, %v4225, 0
  %v4239 = vsel %vm3104, %v4226, 0
  %4241 = vmatprep.subr.mxu0 0.0
  %4242 = vmatpush1.msra.mxu0 %v4239
  %4243 = vmatprep.subr.mxu0 0.0
  %4244 = vmatpush1.msra.mxu0 0.0
  %4245 = vmatprep.subr.mxu0 0.0
  %4246 = vmatpush1.msra.mxu0 0.0
  %4247 = vmatprep.subr.mxu0 0.0
  %4248 = vmatpush1.msra.mxu0 0.0
  %4249 = vmatprep.subr.mxu0 0.0
  %4250 = vmatpush1.msra.mxu0 0.0
  %4251 = vmatprep.subr.mxu0 0.0
  %4252 = vmatpush1.msra.mxu0 0.0
  %4253 = vmatprep.subr.mxu0 0.0
  %4254 = vmatpush1.msra.mxu0 0.0
  %4255 = vmatprep.subr.mxu0 0.0
  %4256 = vmatpush1.msra.mxu0 0.0
  %4257 = vmatprep.subr.mxu0 0.0
  %4258 = vmatpush1.msra.mxu0 0.0
  %4259 = vmatprep.subr.mxu0 0.0
  %4260 = vmatpush1.msra.mxu0 0.0
  %4261 = vmatprep.subr.mxu0 0.0
  %4262 = vmatpush1.msra.mxu0 0.0
  %4263 = vmatprep.subr.mxu0 0.0
  %4264 = vmatpush1.msra.mxu0 0.0
  %4265 = vmatprep.subr.mxu0 0.0
  %4266 = vmatpush1.msra.mxu0 0.0
  %4267 = vmatprep.subr.mxu0 0.0
  %4268 = vmatpush1.msra.mxu0 0.0
  %4269 = vmatprep.subr.mxu0 0.0
  %4270 = vmatpush1.msra.mxu0 0.0
  %4271 = vmatprep.subr.mxu0 0.0
  %4272 = vmatpush1.msra.mxu0 0.0
  %4273 = vmatprep.subr.mxu0 0.0
  %4274 = vmatpush1.msra.mxu0 0.0
  %4275 = vmatprep.subr.mxu0 0.0
  %4276 = vmatpush1.msra.mxu0 0.0
  %4277 = vmatprep.subr.mxu0 0.0
  %4278 = vmatpush1.msra.mxu0 0.0
  %4279 = vmatprep.subr.mxu0 0.0
  %4280 = vmatpush1.msra.mxu0 0.0
  %4281 = vmatprep.subr.mxu0 0.0
  %4282 = vmatpush1.msra.mxu0 0.0
  %4283 = vmatprep.subr.mxu0 0.0
  %4284 = vmatpush1.msra.mxu0 0.0
  %4285 = vmatprep.subr.mxu0 0.0
  %4286 = vmatpush1.msra.mxu0 0.0
  %4287 = vmatprep.subr.mxu0 0.0
  %4288 = vmatpush1.msra.mxu0 0.0
  %4289 = vmatprep.subr.mxu0 0.0
  %4290 = vmatpush1.msra.mxu0 0.0
  %4291 = vmatprep.subr.mxu0 0.0
  %4292 = vmatpush1.msra.mxu0 0.0
  %4293 = vmatprep.subr.mxu0 0.0
  %4294 = vmatpush1.msra.mxu0 0.0
  %4295 = vmatprep.subr.mxu0 0.0
  %4296 = vmatpush1.msra.mxu0 0.0
  %4297 = vmatprep.subr.mxu0 0.0
  %4298 = vmatpush1.msra.mxu0 0.0
  %4299 = vmatprep.subr.mxu0 0.0
  %4300 = vmatpush1.msra.mxu0 0.0
  %4301 = vmatprep.subr.mxu0 0.0
  %4302 = vmatpush1.msra.mxu0 0.0
  %4303 = vmatprep.subr.mxu0 0.0
  %4304 = vmatpush1.msra.mxu0 0.0
  %4305 = vmatprep.mubr.f32.mxu0 0.0
  %4306 = vmatmul.mubr.f32.gmra.mrb[0].mxu0 %v4236
  %v4307 = vpop.f32.mrb[0].mxu0
  %v4308 = vadd.f32 %v4232, %v4307
  %v4309 = vpop.f32.mrb[0].mxu0
  %4310 = vdwg.mxu0
  %v4311 = vld [vmem:[%s11] sm:$0xff]
  %v4312 = vld [vmem:[%s11 + $0x8] sm:$0xff]
  %v4313 = vld [vmem:[%s11 + $0x10] sm:$0xff]
  %v4314 = vld [vmem:[%s11 + $0x18] sm:$0xff]
  %v4315 = vld [vmem:[%s11 + $0x20] sm:$0xff]
  %v4316 = vld [vmem:[%s11 + $0x28] sm:$0xff]
  %v4317 = vld [vmem:[%s11 + $0x30] sm:$0xff]
  %v4318 = vld [vmem:[%s11 + $0x38] sm:$0xff]
  %v4319 = vld [vmem:[%s11 + $0x40] sm:$0xff]
  %v4320 = vld [vmem:[%s11 + $0x48] sm:$0xff]
  %v4321 = vld [vmem:[%s11 + $0x50] sm:$0xff]
  %v4322 = vld [vmem:[%s11 + $0x58] sm:$0xff]
  %v4323 = vld [vmem:[%s11 + $0x60] sm:$0xff]
  %v4324 = vld [vmem:[%s11 + $0x68] sm:$0xff]
  %v4325 = vld [vmem:[%s11 + $0x70] sm:$0xff]
  %v4326 = vld [vmem:[%s11 + $0x78] sm:$0xff]
  %v4327 = vld [vmem:[%s11 + $0x80] sm:$0xff]
  %v4328 = vld [vmem:[%s11 + $0x88] sm:$0xff]
  %v4329 = vld [vmem:[%s11 + $0x90] sm:$0xff]
  %v4330 = vld [vmem:[%s11 + $0x98] sm:$0xff]
  %v4331 = vld [vmem:[%s11 + $0xa0] sm:$0xff]
  %v4332 = vld [vmem:[%s11 + $0xa8] sm:$0xff]
  %v4333 = vld [vmem:[%s11 + $0xb0] sm:$0xff]
  %v4334 = vld [vmem:[%s11 + $0xb8] sm:$0xff]
  %v4335 = vld [vmem:[%s11 + $0xc0] sm:$0xff]
  %v4336 = vld [vmem:[%s11 + $0xc8] sm:$0xff]
  %v4337 = vld [vmem:[%s11 + $0xd0] sm:$0xff]
  %v4338 = vld [vmem:[%s11 + $0xd8] sm:$0xff]
  %v4339 = vld [vmem:[%s11 + $0xe0] sm:$0xff]
  %v4340 = vld [vmem:[%s11 + $0xe8] sm:$0xff]
  %v4341 = vld [vmem:[%s11 + $0xf0] sm:$0xff]
  %v4342 = vld [vmem:[%s11 + $0xf8] sm:$0xff]
  %v4343 = vld [vmem:[%s11 + $0x100] sm:$0xff]
  %v4344 = vld [vmem:[%s11 + $0x108] sm:$0xff]
  %v4345 = vld [vmem:[%s11 + $0x110] sm:$0xff]
  %v4346 = vld [vmem:[%s11 + $0x118] sm:$0xff]
  %v4347 = vld [vmem:[%s11 + $0x120] sm:$0xff]
  %v4348 = vld [vmem:[%s11 + $0x128] sm:$0xff]
  %v4349 = vld [vmem:[%s11 + $0x130] sm:$0xff]
  %v4350 = vld [vmem:[%s11 + $0x138] sm:$0xff]
  %v4351 = vld [vmem:[%s11 + $0x140] sm:$0xff]
  %v4352 = vld [vmem:[%s11 + $0x148] sm:$0xff]
  %v4353 = vld [vmem:[%s11 + $0x150] sm:$0xff]
  %v4354 = vld [vmem:[%s11 + $0x158] sm:$0xff]
  %v4355 = vld [vmem:[%s11 + $0x160] sm:$0xff]
  %v4356 = vld [vmem:[%s11 + $0x168] sm:$0xff]
  %v4357 = vld [vmem:[%s11 + $0x170] sm:$0xff]
  %v4358 = vld [vmem:[%s11 + $0x178] sm:$0xff]
  %v4359 = vld [vmem:[%s12] sm:$0x1]
  %v4360 = vrcp.pop 3.0
  %v4361 = vmul.f32 %v4359, %v4360
  %v4363 = vlaneseq
  %v4364 = vshrl.u32 %v4363, 7
  %v4365 = vsub.s32 0, %v4364
  %v4366 = vrot.slane %v4361, %v4365
  %4368 = vmatprep.subr.mxu0 0.0
  %4369 = vmatpush1.msra.mxu0 %v4311
  %4370 = vmatprep.subr.mxu0 0.0
  %4371 = vmatpush1.msra.mxu0 %v4312
  %4372 = vmatprep.subr.mxu0 0.0
  %4373 = vmatpush1.msra.mxu0 %v4313
  %4374 = vmatprep.subr.mxu0 0.0
  %4375 = vmatpush1.msra.mxu0 %v4314
  %4376 = vmatprep.subr.mxu0 0.0
  %4377 = vmatpush1.msra.mxu0 %v4315
  %4378 = vmatprep.subr.mxu0 0.0
  %4379 = vmatpush1.msra.mxu0 %v4316
  %4380 = vmatprep.subr.mxu0 0.0
  %4381 = vmatpush1.msra.mxu0 %v4317
  %4382 = vmatprep.subr.mxu0 0.0
  %4383 = vmatpush1.msra.mxu0 %v4318
  %4384 = vmatprep.subr.mxu0 0.0
  %4385 = vmatpush1.msra.mxu0 %v4319
  %4386 = vmatprep.subr.mxu0 0.0
  %4387 = vmatpush1.msra.mxu0 %v4320
  %4388 = vmatprep.subr.mxu0 0.0
  %4389 = vmatpush1.msra.mxu0 %v4321
  %4390 = vmatprep.subr.mxu0 0.0
  %4391 = vmatpush1.msra.mxu0 %v4322
  %4392 = vmatprep.subr.mxu0 0.0
  %4393 = vmatpush1.msra.mxu0 %v4323
  %4394 = vmatprep.subr.mxu0 0.0
  %4395 = vmatpush1.msra.mxu0 %v4324
  %4396 = vmatprep.subr.mxu0 0.0
  %4397 = vmatpush1.msra.mxu0 %v4325
  %4398 = vmatprep.subr.mxu0 0.0
  %4399 = vmatpush1.msra.mxu0 %v4326
  %4400 = vmatprep.subr.mxu0 0.0
  %4401 = vmatpush1.msra.mxu0 0.0
  %4402 = vmatprep.subr.mxu0 0.0
  %4403 = vmatpush1.msra.mxu0 0.0
  %4404 = vmatprep.subr.mxu0 0.0
  %4405 = vmatpush1.msra.mxu0 0.0
  %4406 = vmatprep.subr.mxu0 0.0
  %4407 = vmatpush1.msra.mxu0 0.0
  %4408 = vmatprep.subr.mxu0 0.0
  %4409 = vmatpush1.msra.mxu0 0.0
  %4410 = vmatprep.subr.mxu0 0.0
  %4411 = vmatpush1.msra.mxu0 0.0
  %4412 = vmatprep.subr.mxu0 0.0
  %4413 = vmatpush1.msra.mxu0 0.0
  %4414 = vmatprep.subr.mxu0 0.0
  %4415 = vmatpush1.msra.mxu0 0.0
  %4416 = vmatprep.subr.mxu0 0.0
  %4417 = vmatpush1.msra.mxu0 0.0
  %4418 = vmatprep.subr.mxu0 0.0
  %4419 = vmatpush1.msra.mxu0 0.0
  %4420 = vmatprep.subr.mxu0 0.0
  %4421 = vmatpush1.msra.mxu0 0.0
  %4422 = vmatprep.subr.mxu0 0.0
  %4423 = vmatpush1.msra.mxu0 0.0
  %4424 = vmatprep.subr.mxu0 0.0
  %4425 = vmatpush1.msra.mxu0 0.0
  %4426 = vmatprep.subr.mxu0 0.0
  %4427 = vmatpush1.msra.mxu0 0.0
  %4428 = vmatprep.subr.mxu0 0.0
  %4429 = vmatpush1.msra.mxu0 0.0
  %4430 = vmatprep.subr.mxu0 0.0
  %4431 = vmatpush1.msra.mxu0 0.0
  %4432 = vmatprep.mubr.f32.mxu0 0.0
  %4433 = vmatmul.mubr.f32.gmra.mrb[0].mxu0 %v3716
  %v4434 = vpop.f32.mrb[0].mxu0
  %v4435 = vadd.f32 %v4366, %v4434
  %v4436 = vpop.f32.mrb[0].mxu0
  %4437 = vdwg.mxu0
  %4438 = vmatprep.subr.mxu0 0.0
  %4439 = vmatpush1.msra.mxu0 %v4327
  %4440 = vmatprep.subr.mxu0 0.0
  %4441 = vmatpush1.msra.mxu0 %v4328
  %4442 = vmatprep.subr.mxu0 0.0
  %4443 = vmatpush1.msra.mxu0 %v4329
  %4444 = vmatprep.subr.mxu0 0.0
  %4445 = vmatpush1.msra.mxu0 %v4330
  %4446 = vmatprep.subr.mxu0 0.0
  %4447 = vmatpush1.msra.mxu0 %v4331
  %4448 = vmatprep.subr.mxu0 0.0
  %4449 = vmatpush1.msra.mxu0 %v4332
  %4450 = vmatprep.subr.mxu0 0.0
  %4451 = vmatpush1.msra.mxu0 %v4333
  %4452 = vmatprep.subr.mxu0 0.0
  %4453 = vmatpush1.msra.mxu0 %v4334
  %4454 = vmatprep.subr.mxu0 0.0
  %4455 = vmatpush1.msra.mxu0 %v4335
  %4456 = vmatprep.subr.mxu0 0.0
  %4457 = vmatpush1.msra.mxu0 %v4336
  %4458 = vmatprep.subr.mxu0 0.0
  %4459 = vmatpush1.msra.mxu0 %v4337
  %4460 = vmatprep.subr.mxu0 0.0
  %4461 = vmatpush1.msra.mxu0 %v4338
  %4462 = vmatprep.subr.mxu0 0.0
  %4463 = vmatpush1.msra.mxu0 %v4339
  %4464 = vmatprep.subr.mxu0 0.0
  %4465 = vmatpush1.msra.mxu0 %v4340
  %4466 = vmatprep.subr.mxu0 0.0
  %4467 = vmatpush1.msra.mxu0 %v4341
  %4468 = vmatprep.subr.mxu0 0.0
  %4469 = vmatpush1.msra.mxu0 %v4342
  %4470 = vmatprep.subr.mxu0 0.0
  %4471 = vmatpush1.msra.mxu0 0.0
  %4472 = vmatprep.subr.mxu0 0.0
  %4473 = vmatpush1.msra.mxu0 0.0
  %4474 = vmatprep.subr.mxu0 0.0
  %4475 = vmatpush1.msra.mxu0 0.0
  %4476 = vmatprep.subr.mxu0 0.0
  %4477 = vmatpush1.msra.mxu0 0.0
  %4478 = vmatprep.subr.mxu0 0.0
  %4479 = vmatpush1.msra.mxu0 0.0
  %4480 = vmatprep.subr.mxu0 0.0
  %4481 = vmatpush1.msra.mxu0 0.0
  %4482 = vmatprep.subr.mxu0 0.0
  %4483 = vmatpush1.msra.mxu0 0.0
  %4484 = vmatprep.subr.mxu0 0.0
  %4485 = vmatpush1.msra.mxu0 0.0
  %4486 = vmatprep.subr.mxu0 0.0
  %4487 = vmatpush1.msra.mxu0 0.0
  %4488 = vmatprep.subr.mxu0 0.0
  %4489 = vmatpush1.msra.mxu0 0.0
  %4490 = vmatprep.subr.mxu0 0.0
  %4491 = vmatpush1.msra.mxu0 0.0
  %4492 = vmatprep.subr.mxu0 0.0
  %4493 = vmatpush1.msra.mxu0 0.0
  %4494 = vmatprep.subr.mxu0 0.0
  %4495 = vmatpush1.msra.mxu0 0.0
  %4496 = vmatprep.subr.mxu0 0.0
  %4497 = vmatpush1.msra.mxu0 0.0
  %4498 = vmatprep.subr.mxu0 0.0
  %4499 = vmatpush1.msra.mxu0 0.0
  %4500 = vmatprep.subr.mxu0 0.0
  %4501 = vmatpush1.msra.mxu0 0.0
  %4502 = vmatprep.mubr.f32.mxu0 0.0
  %4503 = vmatmul.mubr.f32.gmra.mrb[0].mxu0 %v4220
  %v4504 = vpop.f32.mrb[0].mxu0
  %v4505 = vadd.f32 %v4366, %v4504
  %v4506 = vpop.f32.mrb[0].mxu0
  %4507 = vdwg.mxu0
  %4508 = vmatprep.subr.mxu0 0.0
  %4509 = vmatpush1.msra.mxu0 %v4343
  %4510 = vmatprep.subr.mxu0 0.0
  %4511 = vmatpush1.msra.mxu0 %v4344
  %4512 = vmatprep.subr.mxu0 0.0
  %4513 = vmatpush1.msra.mxu0 %v4345
  %4514 = vmatprep.subr.mxu0 0.0
  %4515 = vmatpush1.msra.mxu0 %v4346
  %4516 = vmatprep.subr.mxu0 0.0
  %4517 = vmatpush1.msra.mxu0 %v4347
  %4518 = vmatprep.subr.mxu0 0.0
  %4519 = vmatpush1.msra.mxu0 %v4348
  %4520 = vmatprep.subr.mxu0 0.0
  %4521 = vmatpush1.msra.mxu0 %v4349
  %4522 = vmatprep.subr.mxu0 0.0
  %4523 = vmatpush1.msra.mxu0 %v4350
  %4524 = vmatprep.subr.mxu0 0.0
  %4525 = vmatpush1.msra.mxu0 %v4351
  %4526 = vmatprep.subr.mxu0 0.0
  %4527 = vmatpush1.msra.mxu0 %v4352
  %4528 = vmatprep.subr.mxu0 0.0
  %4529 = vmatpush1.msra.mxu0 %v4353
  %4530 = vmatprep.subr.mxu0 0.0
  %4531 = vmatpush1.msra.mxu0 %v4354
  %4532 = vmatprep.subr.mxu0 0.0
  %4533 = vmatpush1.msra.mxu0 %v4355
  %4534 = vmatprep.subr.mxu0 0.0
  %4535 = vmatpush1.msra.mxu0 %v4356
  %4536 = vmatprep.subr.mxu0 0.0
  %4537 = vmatpush1.msra.mxu0 %v4357
  %4538 = vmatprep.subr.mxu0 0.0
  %4539 = vmatpush1.msra.mxu0 %v4358
  %4540 = vmatprep.subr.mxu0 0.0
  %4541 = vmatpush1.msra.mxu0 0.0
  %4542 = vmatprep.subr.mxu0 0.0
  %4543 = vmatpush1.msra.mxu0 0.0
  %4544 = vmatprep.subr.mxu0 0.0
  %4545 = vmatpush1.msra.mxu0 0.0
  %4546 = vmatprep.subr.mxu0 0.0
  %4547 = vmatpush1.msra.mxu0 0.0
  %4548 = vmatprep.subr.mxu0 0.0
  %4549 = vmatpush1.msra.mxu0 0.0
  %4550 = vmatprep.subr.mxu0 0.0
  %4551 = vmatpush1.msra.mxu0 0.0
  %4552 = vmatprep.subr.mxu0 0.0
  %4553 = vmatpush1.msra.mxu0 0.0
  %4554 = vmatprep.subr.mxu0 0.0
  %4555 = vmatpush1.msra.mxu0 0.0
  %4556 = vmatprep.subr.mxu0 0.0
  %4557 = vmatpush1.msra.mxu0 0.0
  %4558 = vmatprep.subr.mxu0 0.0
  %4559 = vmatpush1.msra.mxu0 0.0
  %4560 = vmatprep.subr.mxu0 0.0
  %4561 = vmatpush1.msra.mxu0 0.0
  %4562 = vmatprep.subr.mxu0 0.0
  %4563 = vmatpush1.msra.mxu0 0.0
  %4564 = vmatprep.subr.mxu0 0.0
  %4565 = vmatpush1.msra.mxu0 0.0
  %4566 = vmatprep.subr.mxu0 0.0
  %4567 = vmatpush1.msra.mxu0 0.0
  %4568 = vmatprep.subr.mxu0 0.0
  %4569 = vmatpush1.msra.mxu0 0.0
  %4570 = vmatprep.subr.mxu0 0.0
  %4571 = vmatpush1.msra.mxu0 0.0
  %4572 = vmatprep.mubr.f32.mxu0 0.0
  %4573 = vmatmul.mubr.f32.gmra.mrb[0].mxu0 %v4308
  %v4574 = vpop.f32.mrb[0].mxu0
  %v4575 = vadd.f32 %v4366, %v4574
  %v4576 = vpop.f32.mrb[0].mxu0
  %4577 = vdwg.mxu0
  %v4578 = vmax.f32 %v4435, %v4505
  %v4579 = vmax.f32 %v4578, %v4575
  %v4580 = vsub.f32 %v4435, %v4579
  %v4581 = vmul.f32 %v4580, 1.442695
  %v4582 = vpow.pop %v4581
  %v4583 = vsub.f32 %v4505, %v4579
  %v4584 = vmul.f32 %v4583, 1.442695
  %v4585 = vpow.pop %v4584
  %v4586 = vsub.f32 %v4575, %v4579
  %v4587 = vmul.f32 %v4586, 1.442695
  %v4588 = vpow.pop %v4587
  %v4589 = vadd.f32 %v4582, %v4585
  %v4590 = vadd.f32 %v4589, %v4588
  %v4591 = vrcp.pop %v4590
  %v4592 = vadd.f32 %v4435, %v4505
  %v4593 = vadd.f32 %v4592, %v4575
  %vm4594 = vcmask 9216
  %v4595 = vsel %vm4594, %v4593, -inf
  %4596 = vmax.xlane.f32.xlu0 %v4595
  %v4597 = vpop.xlane.xlu0 %4596
  %v4598 = vsub.f32 %v4593, %v4597
  %v4599 = vmul.f32 %v4598, 1.442695
  %v4600 = vpow.pop %v4599
  %v4601 = vsel %vm4594, %v4600, 0.0
  %4602 = vadd.xlane.f32.xlu0 %v4601
  %v4603 = vpop.xlane.xlu0 %4602
  %v4604 = vrcp.pop %v4603
  %v4605 = vmul.f32 %v4600, %v4604
  %v4606 = vmul.f32 %v4582, %v4591
  %v4607 = vmul.f32 %v4585, %v4591
  %v4608 = vmul.f32 %v4588, %v4591
  %4610 = vrot.lane.b32.xlu0 %v4606, 2
  %v4611 = vpop.permute.xlu0 %4610
  %4614 = vrot.lane.b32.xlu0 %v4607, 4
  %v4615 = vpop.permute.xlu0 %4614
  %4618 = vrot.lane.b32.xlu0 %v4608, 6
  %v4619 = vpop.permute.xlu0 %4618
  %4621 = vrot.lane.b32.xlu0 %v3222, 8
  %v4622 = vpop.permute.xlu0 %4621
  %v4624 = vsel %vm4234, %v4605, %v4611
  %vm4625 = vcmask 31744
  %v4626 = vsel %vm4625, %v4624, %v4615
  %vm4627 = vcmask 48128
  %v4628 = vsel %vm4627, %v4626, %v4619
  %vm4629 = vcmask 64512
  %v4630 = vsel %vm4629, %v4628, %v4622
  %vm4631 = vcmask 211968
  %v4632 = vsel %vm4631, %v4630, 0.0
  %4633 = vst [vmem:[%s13] sm:$0x3] %v4632
  // Predicated region
  $region54: #{mm_model_forward.3} parent=0 // pred_check
    _
  $region55: #{mm_model_forward.3} parent=0 // pred_check_branch
    %4635 = sbr.rel (0) target = $region57
  $region56: #{mm_model_forward.3} parent=0 // pred_region
    _
  $region57: #{mm_model_forward.3} parent=0 // pred_fallthru
    _
  // Predicated region
  $region58: #{mm_model_forward.3} parent=0 // pred_check
    _
  $region59: #{mm_model_forward.3} parent=0 // pred_check_branch
    %4637 = sbr.rel (0) target = $region61
  $region60: #{mm_model_forward.3} parent=0 // pred_region
    _
  $region61: #{mm_model_forward.3} parent=0 // pred_fallthru
    _

</llo_original>
